<compile_context>
chip_gen: v5e
topology: v5e:2x2
jax: 0.10.0
libtpu: 0.0.40
codegen_flags: <defaults>
</compile_context>

<pallas_src>
import jax
import jax.numpy as jnp
from jax import lax
from jax.experimental import pallas as pl
from jax.experimental.pallas import tpu as pltpu


# -----------------------------------------------------------------------------
# Padding helpers
# -----------------------------------------------------------------------------
def _round_up(x, m):
    return ((x + m - 1) // m) * m


def _pad_axis(x, axis, new_size):
    pads = [(0, 0)] * x.ndim
    pads[axis] = (0, new_size - x.shape[axis])
    return jnp.pad(x, pads)


def _pad2(x, rows, cols):
    return jnp.pad(x, ((0, rows - x.shape[0]), (0, cols - x.shape[1])))


def _pad_gates(x, h, hp):
    """(..., 3h) -> (..., 3hp): each gate block zero-padded into a lane-aligned slot."""
    if h == hp:
        return x
    parts = [_pad_axis(x[..., g * h:(g + 1) * h], x.ndim - 1, hp) for g in range(3)]
    return jnp.concatenate(parts, axis=-1)


# -----------------------------------------------------------------------------
# Kernel: one prediction step (grid = (batch_blocks, T), carry in VMEM scratch)
# -----------------------------------------------------------------------------
def _gru_step_kernel(
    h0_ref,    # (1, BBLK, Hp)    GRU initial hidden state for this step (bf16/f32)
    hg0_ref,   # (1, BBLK, 3Hp)   h0 @ [Whr|Whz|Whn] + [b_r|b_z|b_hn]
    pg_ref,    # (1, BBLK, 3Hp)   pred @ [Wir|Wiz|Win] + [b_r|b_z|b_in]
    wi3_ref,   # (Op, 3Hp)        fused input-gate weights  (cell 1, x = xy carry)
    wh3_ref,   # (Hp, 3Hp)        fused hidden-gate weights (cell 2, h = h1)
    wfc1_ref, wfc2_ref,           # (Hp, Hp)  hx_fc split on [h1|h2]
    w1_ref,    # (Hp, Mp)
    w2_ref,    # (Mp, Op)
    bin_ref,   # (1, Hp)  f32  b_in  (cell 1 n-gate, outside r)
    bhn_ref,   # (1, Hp)  f32  b_hn  (cell 2 n-gate, inside r)
    bfc_ref,   # (1, Hp)  f32
    b1_ref,    # (1, Mp)  f32
    b2_ref,    # (1, Op)  f32
    out_ref,   # (1, BBLK, Op) f32  accumulated waypoint for this step
    xy_ref,    # (BBLK, Op)    f32  scratch: waypoint carry across the T axis
):
    f32 = jnp.float32
    cd = wi3_ref.dtype                      # MXU operand dtype (bf16 or f32)
    Hp = wh3_ref.shape[0]

    # Reset the waypoint carry at the first prediction step of this batch block.
    @pl.when(pl.program_id(1) == 0)
    def _():
        xy_ref[...] = jnp.zeros_like(xy_ref)

    xy = xy_ref[...]                         # (BBLK, Op) f32 carry
    h0 = h0_ref[0].astype(f32)               # elementwise math stays f32 (v5e-safe)
    hg0 = hg0_ref[0].astype(f32)
    pg = pg_ref[0].astype(f32)

    # ---- GRU cell 1: x = xy (carry), h = h0 (hoisted precompute) ----
    xg = jnp.dot(xy.astype(cd), wi3_ref[...], preferred_element_type=f32)
    r1 = jax.nn.sigmoid(xg[:, :Hp] + hg0[:, :Hp])                    # lane-aligned slices
    z1 = jax.nn.sigmoid(xg[:, Hp:2 * Hp] + hg0[:, Hp:2 * Hp])
    n1 = jnp.tanh(xg[:, 2 * Hp:] + bin_ref[...] + r1 * hg0[:, 2 * Hp:])
    h1 = (1.0 - z1) * n1 + z1 * h0

    # ---- GRU cell 2: x = predicted_values[:, t] (hoisted), h = h1 ----
    hg = jnp.dot(h1.astype(cd), wh3_ref[...], preferred_element_type=f32)
    r2 = jax.nn.sigmoid(pg[:, :Hp] + hg[:, :Hp])
    z2 = jax.nn.sigmoid(pg[:, Hp:2 * Hp] + hg[:, Hp:2 * Hp])
    n2 = jnp.tanh(pg[:, 2 * Hp:] + r2 * (hg[:, 2 * Hp:] + bhn_ref[...]))
    h2 = (1.0 - z2) * n2 + z2 * h1

    # hx_fc(cat(h1, h2))
    hx = (jnp.dot(h1.astype(cd), wfc1_ref[...], preferred_element_type=f32)
          + jnp.dot(h2.astype(cd), wfc2_ref[...], preferred_element_type=f32)
          + bfc_ref[...])

    # mlp: ReLU -> Linear(H, 2048) -> Dropout(identity) -> ReLU -> Linear(2048, O)
    a1 = jnp.maximum(hx, 0.0)
    a2 = jnp.maximum(
        jnp.dot(a1.astype(cd), w1_ref[...], preferred_element_type=f32) + b1_ref[...],
        0.0)
    d_xy = jnp.dot(a2.astype(cd), w2_ref[...], preferred_element_type=f32) + b2_ref[...]

    xy_new = xy + d_xy
    xy_ref[...] = xy_new                      # carry (f32)
    out_ref[0] = xy_new                       # lane-dense (BBLK, Op=128) store


# -----------------------------------------------------------------------------
# Wrapper
# -----------------------------------------------------------------------------
def gru_update_forward(params, predicted_values, states, actions, state_dim,
                       next_state=None, next_reward=None,
                       compute_dtype=jnp.bfloat16):
    """Replicates GRU_update.forward."""
    f32 = jnp.float32
    B, T, O = predicted_values.shape
    A = actions.shape[-1]
    H = params["w_hr"].shape[0]
    M = params["w1"].shape[1]

    # Padded / blocked dims.
    Hp = _round_up(H, 128)
    Op = _round_up(O, 128)
    Mp = _round_up(M, 128)
    Bp = _round_up(B, 16)
    BBLK = Bp
    for cand in (64, 32, 16):                 # >=2 batch blocks when possible (v7x megacore)
        if Bp % cand == 0 and Bp // cand >= 2:
            BBLK = cand
            break
    NB = Bp // BBLK

    is_f32 = jnp.dtype(compute_dtype) == jnp.dtype(jnp.float32)
    prec = lax.Precision.HIGHEST if is_f32 else lax.Precision.DEFAULT

    states_flat = states.reshape(B, -1).astype(f32)                   # (B, Fs)
    Fs = states_flat.shape[-1]
    actions_t = jnp.transpose(actions, (1, 0, 2)).astype(f32)         # (T, B, A)
    pred_t = jnp.transpose(predicted_values, (1, 0, 2)).astype(f32)   # (T, B, O)

    # ---- Hoisted, carry-independent precompute (plain XLA, f32) ----
    w_feat, b_feat = params["w_feat"], params["b_feat"]
    s_part = jnp.dot(states_flat, w_feat[:Fs], precision=prec)        # state half computed ONCE
    a_part = jnp.einsum("tba,ah->tbh", actions_t, w_feat[Fs:], precision=prec)
    h0 = s_part[None] + a_part + b_feat                               # (T, B, H)

    # Cell-1 hidden-side gates (h0 is carry-independent), [r|z|n] fused, biases folded.
    w_h3 = jnp.concatenate([params["w_hr"], params["w_hz"], params["w_hn"]], axis=1)   # (H, 3H)
    b_g1 = jnp.concatenate([params["b_r"], params["b_z"], params["b_hn"]], axis=-1)
    hg0 = jnp.einsum("tbh,hk->tbk", h0, w_h3, precision=prec) + b_g1                   # (T, B, 3H)

    # Cell-2 input-side gates (predicted_values are carry-independent).
    w_i3 = jnp.concatenate([params["w_ir"], params["w_iz"], params["w_in"]], axis=1)   # (O, 3H)
    b_g2 = jnp.concatenate([params["b_r"], params["b_z"], params["b_in"]], axis=-1)
    pg = jnp.einsum("tbo,ok->tbk", pred_t, w_i3, precision=prec) + b_g2                # (T, B, 3H)

    # ---- Pad to lane/sublane-aligned, zero-filled layouts; cast MXU operands ----
    h0_p = _pad_axis(_pad_axis(h0, 2, Hp), 1, Bp).astype(compute_dtype)        # (T, Bp, Hp)
    hg0_p = _pad_axis(_pad_gates(hg0, H, Hp), 1, Bp).astype(compute_dtype)     # (T, Bp, 3Hp)
    pg_p = _pad_axis(_pad_gates(pg, H, Hp), 1, Bp).astype(compute_dtype)       # (T, Bp, 3Hp)

    w_i3_p = _pad_axis(_pad_gates(w_i3, H, Hp), 0, Op).astype(compute_dtype)   # (Op, 3Hp)
    w_h3_p = _pad_axis(_pad_gates(w_h3, H, Hp), 0, Hp).astype(compute_dtype)   # (Hp, 3Hp)
    w_fc1_p = _pad2(params["w_fc1"], Hp, Hp).astype(compute_dtype)
    w_fc2_p = _pad2(params["w_fc2"], Hp, Hp).astype(compute_dtype)
    w1_p = _pad2(params["w1"], Hp, Mp).astype(compute_dtype)
    w2_p = _pad2(params["w2"], Mp, Op).astype(compute_dtype)

    b_in_p = _pad2(params["b_in"], 1, Hp)      # biases stay f32 (VPU math is f32)
    b_hn_p = _pad2(params["b_hn"], 1, Hp)
    b_fc_p = _pad2(params["b_fc"], 1, Hp)
    b1_p = _pad2(params["b1"], 1, Mp)
    b2_p = _pad2(params["b2"], 1, Op)

    # ---- Explicit VMEM budget (resident set + headroom) ----
    cbytes = jnp.dtype(compute_dtype).itemsize
    blk_in = BBLK * (Hp + 3 * Hp + 3 * Hp) * cbytes          # streamed per-step blocks
    blk_out = BBLK * Op * 4
    w_bytes = (Op * 3 * Hp + Hp * 3 * Hp + 2 * Hp * Hp + Hp * Mp + Mp * Op) * cbytes
    b_bytes = (3 * Hp + Mp + Op) * 4
    vmem_limit = (2 * (blk_in + blk_out)          # double-buffered streamed blocks
                  + 2 * (w_bytes + b_bytes)       # weights (constant index -> fetched once)
                  + BBLK * Op * 4                 # xy carry scratch
                  + (4 << 20))                    # headroom for Mosaic internals
    vmem_limit = int(min(max(vmem_limit, 16 << 20), 100 << 20))

    slab_map = lambda b, t: (t, b, 0)
    const_map = lambda b, t: (0, 0)

    in_specs = [
        pl.BlockSpec((1, BBLK, Hp), slab_map),        # h0_p     (streamed)
        pl.BlockSpec((1, BBLK, 3 * Hp), slab_map),    # hg0_p    (streamed)
        pl.BlockSpec((1, BBLK, 3 * Hp), slab_map),    # pg_p     (streamed)
        pl.BlockSpec((Op, 3 * Hp), const_map),        # w_i3
        pl.BlockSpec((Hp, 3 * Hp), const_map),        # w_h3
        pl.BlockSpec((Hp, Hp), const_map),            # w_fc1
        pl.BlockSpec((Hp, Hp), const_map),            # w_fc2
        pl.BlockSpec((Hp, Mp), const_map),            # w1
        pl.BlockSpec((Mp, Op), const_map),            # w2
        pl.BlockSpec((1, Hp), const_map),             # b_in
        pl.BlockSpec((1, Hp), const_map),             # b_hn
        pl.BlockSpec((1, Hp), const_map),             # b_fc
        pl.BlockSpec((1, Mp), const_map),             # b1
        pl.BlockSpec((1, Op), const_map),             # b2
    ]

    out_t = pl.pallas_call(
        _gru_step_kernel,
        out_shape=jax.ShapeDtypeStruct((T, Bp, Op), f32),
        grid=(NB, T),                                  # batch blocks parallel, T serial
        in_specs=in_specs,
        out_specs=pl.BlockSpec((1, BBLK, Op), slab_map),
        scratch_shapes=[pltpu.VMEM((BBLK, Op), f32)],  # xy waypoint carry
        compiler_params=pltpu.CompilerParams(
            dimension_semantics=("parallel", "arbitrary"),
            vmem_limit_bytes=vmem_limit),
    )(h0_p, hg0_p, pg_p, w_i3_p, w_h3_p, w_fc1_p, w_fc2_p, w1_p, w2_p,
      b_in_p, b_hn_p, b_fc_p, b1_p, b2_p)

    pred_wp = jnp.transpose(out_t[:, :B, :O], (1, 0, 2))          # (B, T, O)
    state_pred = pred_wp[:, :, :state_dim]
    reward_pred = pred_wp[:, :, state_dim:state_dim + 1]

    if next_state is not None and next_reward is not None:
        next_state_diff = jnp.mean(
            jnp.sum(((state_pred - next_state) ** 2).reshape(B, -1), axis=-1))
        reward_diff = jnp.mean(
            jnp.sum(((reward_pred - next_reward) ** 2).reshape(B, -1), axis=-1))
        loss = next_state_diff + reward_diff
        return state_pred, reward_pred, loss
    return state_pred, reward_pred, None


# -----------------------------------------------------------------------------
# Deterministic parameter init (mirrors the nn.Module's __init__ shapes)
# -----------------------------------------------------------------------------
def init_params(key, state_dim, action_dim, sequence_num, hidden_dim,
                output_size, mlp_hidden=2048):
    H, O, A = hidden_dim, output_size, action_dim
    Fs = state_dim * sequence_num

    keys = iter(jax.random.split(key, 32))

    def u(shape, fan_in):
        bound = 1.0 / float(fan_in) ** 0.5
        return jax.random.uniform(next(keys), shape, jnp.float32, -bound, bound)

    # linear_states / linear_actions  -> fused block-diagonal feature linear
    w_s, b_s = u((Fs, H // 2), Fs), u((H // 2,), Fs)
    w_a, b_a = u((A, H // 2), A), u((H // 2,), A)
    w_feat = jnp.zeros((Fs + A, H), jnp.float32)
    w_feat = w_feat.at[:Fs, :H // 2].set(w_s).at[Fs:, H // 2:].set(w_a)
    b_feat = jnp.concatenate([b_s, b_a])[None, :]

    # GRU (single layer), per-gate weights, x @ W convention
    w_ir, w_iz, w_in = u((O, H), H), u((O, H), H), u((O, H), H)
    w_hr, w_hz, w_hn = u((H, H), H), u((H, H), H), u((H, H), H)
    b_ir, b_iz, b_in = u((H,), H), u((H,), H), u((H,), H)
    b_hr, b_hz, b_hn = u((H,), H), u((H,), H), u((H,), H)

    # hx_fc: Linear(2H, H) split into the h1 / h2 halves
    w_fc = u((2 * H, H), 2 * H)
    b_fc = u((H,), 2 * H)

    # mlp
    w1, b1 = u((H, mlp_hidden), H), u((mlp_hidden,), H)
    w2, b2 = u((mlp_hidden, O), mlp_hidden), u((O,), mlp_hidden)

    return dict(
        w_feat=w_feat, b_feat=b_feat,
        w_ir=w_ir, w_iz=w_iz, w_in=w_in,
        w_hr=w_hr, w_hz=w_hz, w_hn=w_hn,
        b_r=(b_ir + b_hr)[None, :], b_z=(b_iz + b_hz)[None, :],
        b_in=b_in[None, :], b_hn=b_hn[None, :],
        w_fc1=w_fc[:H], w_fc2=w_fc[H:], b_fc=b_fc[None, :],
        w1=w1, b1=b1[None, :], w2=w2, b2=b2[None, :],
    )


# -----------------------------------------------------------------------------
# Plain-JAX reference (same reparameterized params) for correctness checks
# -----------------------------------------------------------------------------
def reference_forward(P, predicted_values, states, actions, state_dim):
    hi = lax.Precision.HIGHEST
    mm = lambda a, b: jnp.dot(a, b, precision=hi)
    B, T, O = predicted_values.shape
    states_flat = states.reshape(B, -1)
    xy = jnp.zeros((B, O), jnp.float32)
    outs = []
    for i in range(T):
        feat = jnp.concatenate([states_flat, actions[:, i, :]], axis=-1)
        h = mm(feat, P["w_feat"]) + P["b_feat"]

        def cell(x, h):
            r = jax.nn.sigmoid(mm(x, P["w_ir"]) + mm(h, P["w_hr"]) + P["b_r"])
            z = jax.nn.sigmoid(mm(x, P["w_iz"]) + mm(h, P["w_hz"]) + P["b_z"])
            n = jnp.tanh(mm(x, P["w_in"]) + P["b_in"]
                         + r * (mm(h, P["w_hn"]) + P["b_hn"]))
            return (1.0 - z) * n + z * h

        h1 = cell(xy, h)
        h2 = cell(predicted_values[:, i, :], h1)
        hx = mm(h1, P["w_fc1"]) + mm(h2, P["w_fc2"]) + P["b_fc"]
        z1 = jnp.maximum(hx, 0.0)
        z2 = jnp.maximum(mm(z1, P["w1"]) + P["b1"], 0.0)
        xy = xy + (mm(z2, P["w2"]) + P["b2"])
        outs.append(xy)
    pred_wp = jnp.stack(outs, axis=1)
    return pred_wp[:, :, :state_dim], pred_wp[:, :, state_dim:state_dim + 1]


# -----------------------------------------------------------------------------
if __name__ == "__main__":
    # Small config consistent with the module: output_size = state_dim + 1,
    # GRU input_size = output_size, num_layers = 1.
    B = 2
    state_dim = 4
    action_dim = 3
    sequence_num = 2
    hidden_dim = 32
    output_size = state_dim + 1
    horizon = 8

    root = jax.random.PRNGKey(0)
    k_par, k_pv, k_st, k_ac, k_ns, k_nr = jax.random.split(root, 6)

    params = init_params(k_par, state_dim, action_dim, sequence_num,
                         hidden_dim, output_size)

    predicted_values = jax.random.normal(k_pv, (B, horizon, output_size), jnp.float32)
    states = jax.random.normal(k_st, (B, sequence_num, state_dim), jnp.float32)
    actions = jax.random.normal(k_ac, (B, horizon, action_dim), jnp.float32)
    next_state = jax.random.normal(k_ns, (B, horizon, state_dim), jnp.float32)
    next_reward = jax.random.normal(k_nr, (B, horizon, 1), jnp.float32)

    ref_state, ref_reward = reference_forward(
        params, predicted_values, states, actions, state_dim)

    # f32 path: tight correctness check of the kernel structure / layout.
    s32, r32, _ = gru_update_forward(
        params, predicted_values, states, actions, state_dim,
        compute_dtype=jnp.float32)
    jax.block_until_ready((s32, r32))
    assert s32.shape == (B, horizon, state_dim)
    assert r32.shape == (B, horizon, 1)
    assert jnp.allclose(s32, ref_state, atol=2e-3, rtol=2e-3)
    assert jnp.allclose(r32, ref_reward, atol=2e-3, rtol=2e-3)

    # bf16 performance path (default): weights/slabs quantized to bf16, so a
    # looser tolerance vs. the f32 reference is expected.
    state_pred, reward_pred, loss = gru_update_forward(
        params, predicted_values, states, actions, state_dim,
        next_state=next_state, next_reward=next_reward)
    jax.block_until_ready((state_pred, reward_pred, loss))
    assert state_pred.shape == (B, horizon, state_dim)
    assert reward_pred.shape == (B, horizon, 1)
    assert jnp.allclose(state_pred, ref_state, atol=6e-2, rtol=6e-2)
    assert jnp.allclose(reward_pred, ref_reward, atol=6e-2, rtol=6e-2)
    assert bool(jnp.isfinite(loss))

    print("KERNEL_OK")
</pallas_src>

<mosaic_0001>
module attributes {stable_mosaic.version = 11 : i64} {
  func.func @_gru_step_kernel(%arg0: i32, %arg1: i32, %arg2: memref<1x16x128xf32, #tpu.memory_space<vmem>>, %arg3: memref<1x16x384xf32, #tpu.memory_space<vmem>>, %arg4: memref<1x16x384xf32, #tpu.memory_space<vmem>>, %arg5: memref<128x384xf32, #tpu.memory_space<vmem>>, %arg6: memref<128x384xf32, #tpu.memory_space<vmem>>, %arg7: memref<128x128xf32, #tpu.memory_space<vmem>>, %arg8: memref<128x128xf32, #tpu.memory_space<vmem>>, %arg9: memref<128x2048xf32, #tpu.memory_space<vmem>>, %arg10: memref<2048x128xf32, #tpu.memory_space<vmem>>, %arg11: memref<1x128xf32, #tpu.memory_space<vmem>>, %arg12: memref<1x128xf32, #tpu.memory_space<vmem>>, %arg13: memref<1x128xf32, #tpu.memory_space<vmem>>, %arg14: memref<1x2048xf32, #tpu.memory_space<vmem>>, %arg15: memref<1x128xf32, #tpu.memory_space<vmem>>, %arg16: memref<1x16x128xf32, #tpu.memory_space<vmem>>, %arg17: memref<16x128xf32, #tpu.memory_space<vmem>>) attributes {dimension_semantics = [#tpu.dimension_semantics<parallel>, #tpu.dimension_semantics<arbitrary>], iteration_bounds = array<i64: 1, 8>, scalar_prefetch = 0 : i64, scratch_operands = 1 : i64, tpu.core_type = #tpu.core_type<tc>, window_params = [{transform_indices = @transform_0, window_bounds = array<i64: 1, 16, 128>}, {transform_indices = @transform_1, window_bounds = array<i64: 1, 16, 384>}, {transform_indices = @transform_2, window_bounds = array<i64: 1, 16, 384>}, {pipeline_mode = #tpu.pipeline_mode<synchronous>, transform_indices = @transform_3, window_bounds = array<i64: 128, 384>}, {pipeline_mode = #tpu.pipeline_mode<synchronous>, transform_indices = @transform_4, window_bounds = array<i64: 128, 384>}, {pipeline_mode = #tpu.pipeline_mode<synchronous>, transform_indices = @transform_5, window_bounds = array<i64: 128, 128>}, {pipeline_mode = #tpu.pipeline_mode<synchronous>, transform_indices = @transform_6, window_bounds = array<i64: 128, 128>}, {pipeline_mode = #tpu.pipeline_mode<synchronous>, transform_indices = @transform_7, window_bounds = array<i64: 128, 2048>}, {pipeline_mode = #tpu.pipeline_mode<synchronous>, transform_indices = @transform_8, window_bounds = array<i64: 2048, 128>}, {pipeline_mode = #tpu.pipeline_mode<synchronous>, transform_indices = @transform_9, window_bounds = array<i64: 1, 128>}, {pipeline_mode = #tpu.pipeline_mode<synchronous>, transform_indices = @transform_10, window_bounds = array<i64: 1, 128>}, {pipeline_mode = #tpu.pipeline_mode<synchronous>, transform_indices = @transform_11, window_bounds = array<i64: 1, 128>}, {pipeline_mode = #tpu.pipeline_mode<synchronous>, transform_indices = @transform_12, window_bounds = array<i64: 1, 2048>}, {pipeline_mode = #tpu.pipeline_mode<synchronous>, transform_indices = @transform_13, window_bounds = array<i64: 1, 128>}, {transform_indices = @transform_14, window_bounds = array<i64: 1, 16, 128>}]} {
    %c0_i32 = arith.constant 0 : i32
    %0 = arith.cmpi eq, %arg1, %c0_i32 : i32
    %1 = arith.extui %0 : i1 to i32
    %c0_i32_0 = arith.constant 0 : i32
    %2 = arith.cmpi ne, %1, %c0_i32_0 : i32
    scf.if %2 {
      %cst_51 = arith.constant 0.000000e+00 : f32
      %99 = vector.broadcast %cst_51 : f32 to vector<16x128xf32>
      %c0_52 = arith.constant 0 : index
      %c0_53 = arith.constant 0 : index
      %100 = vector.load %arg17[%c0_52, %c0_53] : memref<16x128xf32, #tpu.memory_space<vmem>>, vector<16x128xf32>
      tpu.vector_store %arg17[%c0_52, %c0_53], %99 {strides = array<i32>} : memref<16x128xf32, #tpu.memory_space<vmem>>, vector<16x128xf32>,
    } else {
    }
    %c0 = arith.constant 0 : index
    %c0_1 = arith.constant 0 : index
    %3 = vector.load %arg17[%c0, %c0_1] : memref<16x128xf32, #tpu.memory_space<vmem>>, vector<16x128xf32>
    %c0_2 = arith.constant 0 : index
    %c0_3 = arith.constant 0 : index
    %c0_4 = arith.constant 0 : index
    %4 = vector.load %arg2[%c0_2, %c0_3, %c0_4] : memref<1x16x128xf32, #tpu.memory_space<vmem>>, vector<1x16x128xf32>
    %5 = vector.shape_cast %4 : vector<1x16x128xf32> to vector<16x128xf32>
    %c0_5 = arith.constant 0 : index
    %c0_6 = arith.constant 0 : index
    %c0_7 = arith.constant 0 : index
    %6 = vector.load %arg3[%c0_5, %c0_6, %c0_7] : memref<1x16x384xf32, #tpu.memory_space<vmem>>, vector<1x16x384xf32>
    %7 = vector.shape_cast %6 : vector<1x16x384xf32> to vector<16x384xf32>
    %c0_8 = arith.constant 0 : index
    %c0_9 = arith.constant 0 : index
    %c0_10 = arith.constant 0 : index
    %8 = vector.load %arg4[%c0_8, %c0_9, %c0_10] : memref<1x16x384xf32, #tpu.memory_space<vmem>>, vector<1x16x384xf32>
    %9 = vector.shape_cast %8 : vector<1x16x384xf32> to vector<16x384xf32>
    %c0_11 = arith.constant 0 : index
    %c0_12 = arith.constant 0 : index
    %10 = vector.load %arg5[%c0_11, %c0_12] : memref<128x384xf32, #tpu.memory_space<vmem>>, vector<128x384xf32>
    %cst = arith.constant dense<0.000000e+00> : vector<16x384xf32>
    %11 = tpu.matmul %3, %10, %cst {dimension_numbers = #tpu.dot_dimension_numbers<[1], [0], [0], [1], [0, 0, 1, 1], [], []>} : vector<16x128xf32>, vector<128x384xf32>, vector<16x384xf32> -> vector<16x384xf32>
    %12 = vector.extract_strided_slice %11 {offsets = [0, 0], sizes = [16, 128], strides = [1, 1]} : vector<16x384xf32> to vector<16x128xf32>
    %13 = vector.extract_strided_slice %7 {offsets = [0, 0], sizes = [16, 128], strides = [1, 1]} : vector<16x384xf32> to vector<16x128xf32>
    %14 = arith.addf %12, %13 : vector<16x128xf32>
    %15 = arith.negf %14 : vector<16x128xf32>
    %16 = math.exp %15 : vector<16x128xf32>
    %cst_13 = arith.constant 1.000000e+00 : f32
    %17 = vector.broadcast %cst_13 : f32 to vector<16x128xf32>
    %18 = arith.addf %17, %16 : vector<16x128xf32>
    %19 = arith.divf %17, %18 : vector<16x128xf32>
    %20 = vector.extract_strided_slice %11 {offsets = [0, 128], sizes = [16, 128], strides = [1, 1]} : vector<16x384xf32> to vector<16x128xf32>
    %21 = vector.extract_strided_slice %7 {offsets = [0, 128], sizes = [16, 128], strides = [1, 1]} : vector<16x384xf32> to vector<16x128xf32>
    %22 = arith.addf %20, %21 : vector<16x128xf32>
    %23 = arith.negf %22 : vector<16x128xf32>
    %24 = math.exp %23 : vector<16x128xf32>
    %cst_14 = arith.constant 1.000000e+00 : f32
    %25 = vector.broadcast %cst_14 : f32 to vector<16x128xf32>
    %26 = arith.addf %25, %24 : vector<16x128xf32>
    %27 = arith.divf %25, %26 : vector<16x128xf32>
    %28 = vector.extract_strided_slice %11 {offsets = [0, 256], sizes = [16, 128], strides = [1, 1]} : vector<16x384xf32> to vector<16x128xf32>
    %c0_15 = arith.constant 0 : index
    %c0_16 = arith.constant 0 : index
    %29 = vector.load %arg11[%c0_15, %c0_16] : memref<1x128xf32, #tpu.memory_space<vmem>>, vector<1x128xf32>
    %30 = vector.broadcast %29 : vector<1x128xf32> to vector<16x128xf32>
    %31 = arith.addf %28, %30 : vector<16x128xf32>
    %32 = vector.extract_strided_slice %7 {offsets = [0, 256], sizes = [16, 128], strides = [1, 1]} : vector<16x384xf32> to vector<16x128xf32>
    %33 = arith.mulf %19, %32 : vector<16x128xf32>
    %34 = arith.addf %31, %33 : vector<16x128xf32>
    %35 = math.tanh %34 : vector<16x128xf32>
    %cst_17 = arith.constant 1.000000e+00 : f32
    %36 = vector.broadcast %cst_17 : f32 to vector<16x128xf32>
    %37 = arith.subf %36, %27 : vector<16x128xf32>
    %38 = arith.mulf %37, %35 : vector<16x128xf32>
    %39 = arith.mulf %27, %5 : vector<16x128xf32>
    %40 = arith.addf %38, %39 : vector<16x128xf32>
    %c0_18 = arith.constant 0 : index
    %c0_19 = arith.constant 0 : index
    %41 = vector.load %arg6[%c0_18, %c0_19] : memref<128x384xf32, #tpu.memory_space<vmem>>, vector<128x384xf32>
    %cst_20 = arith.constant dense<0.000000e+00> : vector<16x384xf32>
    %42 = tpu.matmul %40, %41, %cst_20 {dimension_numbers = #tpu.dot_dimension_numbers<[1], [0], [0], [1], [0, 0, 1, 1], [], []>} : vector<16x128xf32>, vector<128x384xf32>, vector<16x384xf32> -> vector<16x384xf32>
    %43 = vector.extract_strided_slice %9 {offsets = [0, 0], sizes = [16, 128], strides = [1, 1]} : vector<16x384xf32> to vector<16x128xf32>
    %44 = vector.extract_strided_slice %42 {offsets = [0, 0], sizes = [16, 128], strides = [1, 1]} : vector<16x384xf32> to vector<16x128xf32>
    %45 = arith.addf %43, %44 : vector<16x128xf32>
    %46 = arith.negf %45 : vector<16x128xf32>
    %47 = math.exp %46 : vector<16x128xf32>
    %cst_21 = arith.constant 1.000000e+00 : f32
    %48 = vector.broadcast %cst_21 : f32 to vector<16x128xf32>
    %49 = arith.addf %48, %47 : vector<16x128xf32>
    %50 = arith.divf %48, %49 : vector<16x128xf32>
    %51 = vector.extract_strided_slice %9 {offsets = [0, 128], sizes = [16, 128], strides = [1, 1]} : vector<16x384xf32> to vector<16x128xf32>
    %52 = vector.extract_strided_slice %42 {offsets = [0, 128], sizes = [16, 128], strides = [1, 1]} : vector<16x384xf32> to vector<16x128xf32>
    %53 = arith.addf %51, %52 : vector<16x128xf32>
    %54 = arith.negf %53 : vector<16x128xf32>
    %55 = math.exp %54 : vector<16x128xf32>
    %cst_22 = arith.constant 1.000000e+00 : f32
    %56 = vector.broadcast %cst_22 : f32 to vector<16x128xf32>
    %57 = arith.addf %56, %55 : vector<16x128xf32>
    %58 = arith.divf %56, %57 : vector<16x128xf32>
    %59 = vector.extract_strided_slice %9 {offsets = [0, 256], sizes = [16, 128], strides = [1, 1]} : vector<16x384xf32> to vector<16x128xf32>
    %60 = vector.extract_strided_slice %42 {offsets = [0, 256], sizes = [16, 128], strides = [1, 1]} : vector<16x384xf32> to vector<16x128xf32>
    %c0_23 = arith.constant 0 : index
    %c0_24 = arith.constant 0 : index
    %61 = vector.load %arg12[%c0_23, %c0_24] : memref<1x128xf32, #tpu.memory_space<vmem>>, vector<1x128xf32>
    %62 = vector.broadcast %61 : vector<1x128xf32> to vector<16x128xf32>
    %63 = arith.addf %60, %62 : vector<16x128xf32>
    %64 = arith.mulf %50, %63 : vector<16x128xf32>
    %65 = arith.addf %59, %64 : vector<16x128xf32>
    %66 = math.tanh %65 : vector<16x128xf32>
    %cst_25 = arith.constant 1.000000e+00 : f32
    %67 = vector.broadcast %cst_25 : f32 to vector<16x128xf32>
    %68 = arith.subf %67, %58 : vector<16x128xf32>
    %69 = arith.mulf %68, %66 : vector<16x128xf32>
    %70 = arith.mulf %58, %40 : vector<16x128xf32>
    %71 = arith.addf %69, %70 : vector<16x128xf32>
    %c0_26 = arith.constant 0 : index
    %c0_27 = arith.constant 0 : index
    %72 = vector.load %arg7[%c0_26, %c0_27] : memref<128x128xf32, #tpu.memory_space<vmem>>, vector<128x128xf32>
    %cst_28 = arith.constant dense<0.000000e+00> : vector<16x128xf32>
    %73 = tpu.matmul %40, %72, %cst_28 {dimension_numbers = #tpu.dot_dimension_numbers<[1], [0], [0], [1], [0, 0, 1, 1], [], []>} : vector<16x128xf32>, vector<128x128xf32>, vector<16x128xf32> -> vector<16x128xf32>
    %c0_29 = arith.constant 0 : index
    %c0_30 = arith.constant 0 : index
    %74 = vector.load %arg8[%c0_29, %c0_30] : memref<128x128xf32, #tpu.memory_space<vmem>>, vector<128x128xf32>
    %cst_31 = arith.constant dense<0.000000e+00> : vector<16x128xf32>
    %75 = tpu.matmul %71, %74, %cst_31 {dimension_numbers = #tpu.dot_dimension_numbers<[1], [0], [0], [1], [0, 0, 1, 1], [], []>} : vector<16x128xf32>, vector<128x128xf32>, vector<16x128xf32> -> vector<16x128xf32>
    %76 = arith.addf %73, %75 : vector<16x128xf32>
    %c0_32 = arith.constant 0 : index
    %c0_33 = arith.constant 0 : index
    %77 = vector.load %arg13[%c0_32, %c0_33] : memref<1x128xf32, #tpu.memory_space<vmem>>, vector<1x128xf32>
    %78 = vector.broadcast %77 : vector<1x128xf32> to vector<16x128xf32>
    %79 = arith.addf %76, %78 : vector<16x128xf32>
    %cst_34 = arith.constant 0.000000e+00 : f32
    %80 = vector.broadcast %cst_34 : f32 to vector<16x128xf32>
    %81 = arith.maximumf %79, %80 : vector<16x128xf32>
    %c0_35 = arith.constant 0 : index
    %c0_36 = arith.constant 0 : index
    %82 = vector.load %arg9[%c0_35, %c0_36] : memref<128x2048xf32, #tpu.memory_space<vmem>>, vector<128x2048xf32>
    %cst_37 = arith.constant dense<0.000000e+00> : vector<16x2048xf32>
    %83 = tpu.matmul %81, %82, %cst_37 {dimension_numbers = #tpu.dot_dimension_numbers<[1], [0], [0], [1], [0, 0, 1, 1], [], []>} : vector<16x128xf32>, vector<128x2048xf32>, vector<16x2048xf32> -> vector<16x2048xf32>
    %c0_38 = arith.constant 0 : index
    %c0_39 = arith.constant 0 : index
    %84 = vector.load %arg14[%c0_38, %c0_39] : memref<1x2048xf32, #tpu.memory_space<vmem>>, vector<1x2048xf32>
    %85 = vector.broadcast %84 : vector<1x2048xf32> to vector<16x2048xf32>
    %86 = arith.addf %83, %85 : vector<16x2048xf32>
    %cst_40 = arith.constant 0.000000e+00 : f32
    %87 = vector.broadcast %cst_40 : f32 to vector<16x2048xf32>
    %88 = arith.maximumf %86, %87 : vector<16x2048xf32>
    %c0_41 = arith.constant 0 : index
    %c0_42 = arith.constant 0 : index
    %89 = vector.load %arg10[%c0_41, %c0_42] : memref<2048x128xf32, #tpu.memory_space<vmem>>, vector<2048x128xf32>
    %cst_43 = arith.constant dense<0.000000e+00> : vector<16x128xf32>
    %90 = tpu.matmul %88, %89, %cst_43 {dimension_numbers = #tpu.dot_dimension_numbers<[1], [0], [0], [1], [0, 0, 1, 1], [], []>} : vector<16x2048xf32>, vector<2048x128xf32>, vector<16x128xf32> -> vector<16x128xf32>
    %c0_44 = arith.constant 0 : index
    %c0_45 = arith.constant 0 : index
    %91 = vector.load %arg15[%c0_44, %c0_45] : memref<1x128xf32, #tpu.memory_space<vmem>>, vector<1x128xf32>
    %92 = vector.broadcast %91 : vector<1x128xf32> to vector<16x128xf32>
    %93 = arith.addf %90, %92 : vector<16x128xf32>
    %94 = arith.addf %3, %93 : vector<16x128xf32>
    %c0_46 = arith.constant 0 : index
    %c0_47 = arith.constant 0 : index
    %95 = vector.load %arg17[%c0_46, %c0_47] : memref<16x128xf32, #tpu.memory_space<vmem>>, vector<16x128xf32>
    tpu.vector_store %arg17[%c0_46, %c0_47], %94 {strides = array<i32>} : memref<16x128xf32, #tpu.memory_space<vmem>>, vector<16x128xf32>,
    %c0_48 = arith.constant 0 : index
    %c0_49 = arith.constant 0 : index
    %c0_50 = arith.constant 0 : index
    %96 = vector.load %arg16[%c0_48, %c0_49, %c0_50] : memref<1x16x128xf32, #tpu.memory_space<vmem>>, vector<1x16x128xf32>
    %97 = vector.shape_cast %96 : vector<1x16x128xf32> to vector<16x128xf32>
    %98 = vector.shape_cast %94 : vector<16x128xf32> to vector<1x16x128xf32>
    tpu.vector_store %arg16[%c0_48, %c0_49, %c0_50], %98 {strides = array<i32>} : memref<1x16x128xf32, #tpu.memory_space<vmem>>, vector<1x16x128xf32>,
    return
  }
  func.func @transform_0(%arg0: i32, %arg1: i32) -> (i32, i32, i32) {
    %c0_i32 = arith.constant 0 : i32
    %c0_i32_0 = arith.constant 0 : i32
    return %arg1, %arg0, %c0_i32 : i32, i32, i32
  }
  func.func @transform_1(%arg0: i32, %arg1: i32) -> (i32, i32, i32) {
    %c0_i32 = arith.constant 0 : i32
    %c0_i32_0 = arith.constant 0 : i32
    return %arg1, %arg0, %c0_i32 : i32, i32, i32
  }
  func.func @transform_2(%arg0: i32, %arg1: i32) -> (i32, i32, i32) {
    %c0_i32 = arith.constant 0 : i32
    %c0_i32_0 = arith.constant 0 : i32
    return %arg1, %arg0, %c0_i32 : i32, i32, i32
  }
  func.func @transform_3(%arg0: i32, %arg1: i32) -> (i32, i32) {
    %c0_i32 = arith.constant 0 : i32
    %c0_i32_0 = arith.constant 0 : i32
    %c0_i32_1 = arith.constant 0 : i32
    return %c0_i32, %c0_i32_0 : i32, i32
  }
  func.func @transform_4(%arg0: i32, %arg1: i32) -> (i32, i32) {
    %c0_i32 = arith.constant 0 : i32
    %c0_i32_0 = arith.constant 0 : i32
    %c0_i32_1 = arith.constant 0 : i32
    return %c0_i32, %c0_i32_0 : i32, i32
  }
  func.func @transform_5(%arg0: i32, %arg1: i32) -> (i32, i32) {
    %c0_i32 = arith.constant 0 : i32
    %c0_i32_0 = arith.constant 0 : i32
    %c0_i32_1 = arith.constant 0 : i32
    return %c0_i32, %c0_i32_0 : i32, i32
  }
  func.func @transform_6(%arg0: i32, %arg1: i32) -> (i32, i32) {
    %c0_i32 = arith.constant 0 : i32
    %c0_i32_0 = arith.constant 0 : i32
    %c0_i32_1 = arith.constant 0 : i32
    return %c0_i32, %c0_i32_0 : i32, i32
  }
  func.func @transform_7(%arg0: i32, %arg1: i32) -> (i32, i32) {
    %c0_i32 = arith.constant 0 : i32
    %c0_i32_0 = arith.constant 0 : i32
    %c0_i32_1 = arith.constant 0 : i32
    return %c0_i32, %c0_i32_0 : i32, i32
  }
  func.func @transform_8(%arg0: i32, %arg1: i32) -> (i32, i32) {
    %c0_i32 = arith.constant 0 : i32
    %c0_i32_0 = arith.constant 0 : i32
    %c0_i32_1 = arith.constant 0 : i32
    return %c0_i32, %c0_i32_0 : i32, i32
  }
  func.func @transform_9(%arg0: i32, %arg1: i32) -> (i32, i32) {
    %c0_i32 = arith.constant 0 : i32
    %c0_i32_0 = arith.constant 0 : i32
    %c0_i32_1 = arith.constant 0 : i32
    return %c0_i32, %c0_i32_0 : i32, i32
  }
  func.func @transform_10(%arg0: i32, %arg1: i32) -> (i32, i32) {
    %c0_i32 = arith.constant 0 : i32
    %c0_i32_0 = arith.constant 0 : i32
    %c0_i32_1 = arith.constant 0 : i32
    return %c0_i32, %c0_i32_0 : i32, i32
  }
  func.func @transform_11(%arg0: i32, %arg1: i32) -> (i32, i32) {
    %c0_i32 = arith.constant 0 : i32
    %c0_i32_0 = arith.constant 0 : i32
    %c0_i32_1 = arith.constant 0 : i32
    return %c0_i32, %c0_i32_0 : i32, i32
  }
  func.func @transform_12(%arg0: i32, %arg1: i32) -> (i32, i32) {
    %c0_i32 = arith.constant 0 : i32
    %c0_i32_0 = arith.constant 0 : i32
    %c0_i32_1 = arith.constant 0 : i32
    return %c0_i32, %c0_i32_0 : i32, i32
  }
  func.func @transform_13(%arg0: i32, %arg1: i32) -> (i32, i32) {
    %c0_i32 = arith.constant 0 : i32
    %c0_i32_0 = arith.constant 0 : i32
    %c0_i32_1 = arith.constant 0 : i32
    return %c0_i32, %c0_i32_0 : i32, i32
  }
  func.func @transform_14(%arg0: i32, %arg1: i32) -> (i32, i32, i32) {
    %c0_i32 = arith.constant 0 : i32
    %c0_i32_0 = arith.constant 0 : i32
    return %arg1, %arg0, %c0_i32 : i32, i32, i32
  }
}

</mosaic_0001>

<llo_original>
// kernel: tpu_custom_call.1
$region0: #{tpu_custom_call.1}
  #allocation0 [shape = 'u32[]', space=smem, size = 0x4, offset = 0x4, fixed_abs, tag = 'smem constant byte address 0x4 - core index']
  #allocation1 [shape = 'u32[72,128]{1,0:T(1,128)}', space=vmem, size = 0x9000, scoped, tag = 'internal scratch']
  #allocation2 [shape = 'f32[16,128]{1,0:T(8,128)}', space=vmem, size = 0x2000, scoped, tag = 'scratch operand']
  %s0 = inlined_call_operand.hbm [shape: f32[8,16,128], index: 0, kind: input, shape index: {}]
  %s1 = inlined_call_operand.hbm [shape: f32[8,16,384], index: 1, kind: input, shape index: {}]
  %s2 = inlined_call_operand.hbm [shape: f32[8,16,384], index: 2, kind: input, shape index: {}]
  %s3 = inlined_call_operand.hbm [shape: f32[128,384], index: 3, kind: input, shape index: {}]
  %s4 = inlined_call_operand.hbm [shape: f32[128,384], index: 4, kind: input, shape index: {}]
  %s5 = inlined_call_operand.hbm [shape: f32[128,128], index: 5, kind: input, shape index: {}]
  %s6 = inlined_call_operand.hbm [shape: f32[128,128], index: 6, kind: input, shape index: {}]
  %s7 = inlined_call_operand.hbm [shape: f32[128,2048], index: 7, kind: input, shape index: {}]
  %s8 = inlined_call_operand.hbm [shape: f32[2048,128], index: 8, kind: input, shape index: {}]
  %s9 = inlined_call_operand.vmem [shape: f32[1,128], index: 9, kind: input, shape index: {}]
  %s10 = inlined_call_operand.vmem [shape: f32[1,128], index: 10, kind: input, shape index: {}]
  %s11 = inlined_call_operand.vmem [shape: f32[1,128], index: 11, kind: input, shape index: {}]
  %s12 = inlined_call_operand.hbm [shape: f32[1,2048], index: 12, kind: input, shape index: {}]
  %s13 = inlined_call_operand.vmem [shape: f32[1,128], index: 13, kind: input, shape index: {}]
  %s14 = inlined_call_operand.hbm [shape: f32[8,16,128], index: 14, kind: output, shape index: {}]
  %s15 = sld [smem:[#allocation0]]
  $region133: #{tpu_custom_call.1} parent=0
    _
  %s17 = ssub.s32 1, %s15
  %s18 = scalar_select 0, %s17, %s15
  $region1: #{tpu_custom_call.1} parent=0
    #allocation3 [shape = 'u8[16384]{0}', space=vmem, size = 0x4000, scoped, tag = 'input window, operand 0']
    #allocation4 [shape = 's32[2]{0}', space=sflag, size = 0x8, scoped, tag = 'scoped memory for tpu_custom_call.1']
    #allocation5 [shape = 's32[2]{0}', space=sflag, size = 0x8, scoped, tag = 'scoped memory for tpu_custom_call.1']
    #allocation6 [shape = 'u8[49152]{0}', space=vmem, size = 0xc000, scoped, tag = 'input window, operand 1']
    #allocation7 [shape = 's32[2]{0}', space=sflag, size = 0x8, scoped, tag = 'scoped memory for tpu_custom_call.1']
    #allocation8 [shape = 'u8[49152]{0}', space=vmem, size = 0xc000, scoped, tag = 'input window, operand 2']
    #allocation9 [shape = 'u8[196608]{0}', space=vmem, size = 0x30000, scoped, tag = 'input window, operand 3, single buffered']
    #allocation10 [shape = 's32[1]{0}', space=sflag, size = 0x4, scoped, tag = 'scoped memory for tpu_custom_call.1']
    #allocation11 [shape = 'u8[196608]{0}', space=vmem, size = 0x30000, scoped, tag = 'input window, operand 4, single buffered']
    #allocation12 [shape = 'u8[65536]{0}', space=vmem, size = 0x10000, scoped, tag = 'input window, operand 5, single buffered']
    #allocation13 [shape = 's32[1]{0}', space=sflag, size = 0x4, scoped, tag = 'scoped memory for tpu_custom_call.1']
    #allocation14 [shape = 'u8[65536]{0}', space=vmem, size = 0x10000, scoped, tag = 'input window, operand 6, single buffered']
    #allocation15 [shape = 'u8[1048576]{0}', space=vmem, size = 0x100000, scoped, tag = 'input window, operand 7, single buffered']
    #allocation16 [shape = 's32[1]{0}', space=sflag, size = 0x4, scoped, tag = 'scoped memory for tpu_custom_call.1']
    #allocation17 [shape = 'u8[1048576]{0}', space=vmem, size = 0x100000, scoped, tag = 'input window, operand 8, single buffered']
    #allocation18 [shape = 'u8[8192]{0}', space=vmem, size = 0x2000, scoped, tag = 'input window, operand 12, single buffered']
    #allocation19 [shape = 's32[1]{0}', space=sflag, size = 0x4, scoped, tag = 'scoped memory for tpu_custom_call.1']
    #allocation20 [shape = 'u8[16384]{0}', space=vmem, size = 0x4000, scoped, tag = 'output window, operand 0']
    %19 = vsyncpa [#allocation4], 0
    %s20 = scalar_lea.sflag [#allocation4], 1
    %21 = vsyncpa %s20, 0
    %22 = vsyncpa [#allocation7], 0
    %s23 = scalar_lea.sflag [#allocation7], 1
    %24 = vsyncpa %s23, 0
    %25 = vsyncpa [#allocation10], 0
    %26 = vsyncpa [#allocation13], 0
    %27 = vsyncpa [#allocation16], 0
    %28 = vsyncpa [#allocation19], 0
    %29 = vsyncpa [#allocation5], 0
    %s30 = scalar_lea.sflag [#allocation5], 1
    %31 = vsyncpa %s30, 0
    loop: start=0, step=1, limit=10
    $region2: #{tpu_custom_call.1} parent=1 // loop_pre_header
      _
    $region3: #{tpu_custom_call.1} parent=1 // loop_header
      %s33 = sphi 0, %s37
      %p34 = scmp.ge.s32.totalorder %s33, 10
      %s40 = sphi 0, %s52
      %s41 = sphi 0, %s48
      %s42 = sphi 0, %s40
      %s43 = sphi 0, %s41
      %s44 = sphi 0, %s42
      %s45 = sphi 0, %s43
      %s57 = sphi 0, %s59
      %s60 = sphi 0, %s57
      %s61 = sphi 0, %s60
      %s77 = sphi 0, %s61
      %s85 = sphi 0, %s87
      %s88 = sphi 0, %s85
      %s89 = sphi 0, %s88
      %s105 = sphi 0, %s89
      %s113 = sphi 0, %s115
      %s116 = sphi 0, %s113
      %s117 = sphi 0, %s116
      %s133 = sphi 0, %s117
      %s137 = sphi 0, %s137
      %s139 = sphi 0, %s137
      %s140 = sphi 0, %s139
      %s154 = sphi 0, %s140
      %s158 = sphi 0, %s158
      %s160 = sphi 0, %s158
      %s161 = sphi 0, %s160
      %s175 = sphi 0, %s161
      %s179 = sphi 0, %s179
      %s181 = sphi 0, %s179
      %s182 = sphi 0, %s181
      %s196 = sphi 0, %s182
      %s200 = sphi 0, %s200
      %s202 = sphi 0, %s200
      %s203 = sphi 0, %s202
      %s217 = sphi 0, %s203
      %s221 = sphi 0, %s221
      %s223 = sphi 0, %s221
      %s224 = sphi 0, %s223
      %s238 = sphi 0, %s224
      %s242 = sphi 0, %s242
      %s244 = sphi 0, %s242
      %s245 = sphi 0, %s244
      %s259 = sphi 0, %s245
      %s263 = sphi 0, %s263
      %s265 = sphi 0, %s263
      %s266 = sphi 0, %s265
      %s280 = sphi 0, %s266
      %s284 = sphi 0, %s284
      %s286 = sphi 0, %s284
      %s287 = sphi 0, %s286
      %s301 = sphi 0, %s287
      %s305 = sphi 0, %s305
      %s307 = sphi 0, %s305
      %s308 = sphi 0, %s307
      %s322 = sphi 0, %s308
      %s326 = sphi 0, %s326
      %s328 = sphi 0, %s326
      %s329 = sphi 0, %s328
      %s343 = sphi 0, %s329
      %s347 = sphi 0, %s347
      %s349 = sphi 0, %s347
      %s350 = sphi 0, %s349
      %s364 = sphi 0, %s350
      %s372 = sphi 0, %s374
      %s375 = sphi 0, %s372
      %s376 = sphi 0, %s375
      %s392 = sphi 0, %s376
    $region4: #{tpu_custom_call.1} parent=1 // loop_header_branch
      %36 = sbr.rel (%p34) target = $region8
    $region5: #{tpu_custom_call.1} parent=1 // loop_body
      %s38 = ssub.s32 %s33, 1
      %s39 = ssub.s32 %s33, 2
      %s46 = sadd.s32 1, %s41
      %p47 = scmp.ge.s32.totalorder %s46, 8
      %s48 = scalar_select %p47, 0, %s46
      %s49 = sadd.s32 1, %s40
      %s50 = scalar_select %p47, %s49, %s40
      %p51 = scmp.ge.s32.totalorder %s50, 1
      %s52 = scalar_select %p51, 0, %s50
      %s53 = ssub.s32 %s41, %s48
      %s54 = ssub.s32 %s40, %s52
      %s55 = sor.u32 %s53, %s54
      %p56 = scmp.eq.s32.totalorder %s55, 0
      %s58 = sadd.s32 %s57, 1
      %s59 = scalar_select %p56, %s57, %s58
      %p62 = pneg %p56
      %p63 = scmp.eq.s32.totalorder %s33, 7
      %p64 = por %p62, %p63
      %p65 = scmp.ne.s32.totalorder %s57, %s60
      %p66 = scmp.eq.s32.totalorder %s33, 0
      %p67 = por %p65, %p66
      %p68 = scmp.ne.s32.totalorder %s57, %s60
      %p69 = scmp.eq.s32.totalorder %s38, 7
      %p70 = por %p68, %p69
      %p71 = scmp.ne.s32.totalorder %s60, %s61
      %p72 = scmp.eq.s32.totalorder %s38, 0
      %p73 = por %p71, %p72
      %p74 = scmp.ne.s32.totalorder %s60, %s61
      %p75 = scmp.eq.s32.totalorder %s39, 7
      %p76 = por %p74, %p75
      %p78 = scmp.ne.s32.totalorder %s61, %s77
      %p79 = scmp.eq.s32.totalorder %s39, 0
      %p80 = por %p78, %p79
      %s81 = ssub.s32 %s41, %s48
      %s82 = ssub.s32 %s40, %s52
      %s83 = sor.u32 %s81, %s82
      %p84 = scmp.eq.s32.totalorder %s83, 0
      %s86 = sadd.s32 %s85, 1
      %s87 = scalar_select %p84, %s85, %s86
      %p90 = pneg %p84
      %p91 = scmp.eq.s32.totalorder %s33, 7
      %p92 = por %p90, %p91
      %p93 = scmp.ne.s32.totalorder %s85, %s88
      %p94 = scmp.eq.s32.totalorder %s33, 0
      %p95 = por %p93, %p94
      %p96 = scmp.ne.s32.totalorder %s85, %s88
      %p97 = scmp.eq.s32.totalorder %s38, 7
      %p98 = por %p96, %p97
      %p99 = scmp.ne.s32.totalorder %s88, %s89
      %p100 = scmp.eq.s32.totalorder %s38, 0
      %p101 = por %p99, %p100
      %p102 = scmp.ne.s32.totalorder %s88, %s89
      %p103 = scmp.eq.s32.totalorder %s39, 7
      %p104 = por %p102, %p103
      %p106 = scmp.ne.s32.totalorder %s89, %s105
      %p107 = scmp.eq.s32.totalorder %s39, 0
      %p108 = por %p106, %p107
      %s109 = ssub.s32 %s41, %s48
      %s110 = ssub.s32 %s40, %s52
      %s111 = sor.u32 %s109, %s110
      %p112 = scmp.eq.s32.totalorder %s111, 0
      %s114 = sadd.s32 %s113, 1
      %s115 = scalar_select %p112, %s113, %s114
      %p118 = pneg %p112
      %p119 = scmp.eq.s32.totalorder %s33, 7
      %p120 = por %p118, %p119
      %p121 = scmp.ne.s32.totalorder %s113, %s116
      %p122 = scmp.eq.s32.totalorder %s33, 0
      %p123 = por %p121, %p122
      %p124 = scmp.ne.s32.totalorder %s113, %s116
      %p125 = scmp.eq.s32.totalorder %s38, 7
      %p126 = por %p124, %p125
      %p127 = scmp.ne.s32.totalorder %s116, %s117
      %p128 = scmp.eq.s32.totalorder %s38, 0
      %p129 = por %p127, %p128
      %p130 = scmp.ne.s32.totalorder %s116, %s117
      %p131 = scmp.eq.s32.totalorder %s39, 7
      %p132 = por %p130, %p131
      %p134 = scmp.ne.s32.totalorder %s117, %s133
      %p135 = scmp.eq.s32.totalorder %s39, 0
      %p136 = por %p134, %p135
      %s138 = sadd.s32 %s137, 1
      %p141 = scmp.eq.s32.totalorder %s33, 7
      %p142 = scmp.ne.s32.totalorder %s137, %s139
      %p143 = scmp.eq.s32.totalorder %s33, 0
      %p144 = por %p142, %p143
      %p145 = scmp.ne.s32.totalorder %s137, %s139
      %p146 = scmp.eq.s32.totalorder %s38, 7
      %p147 = por %p145, %p146
      %p148 = scmp.ne.s32.totalorder %s139, %s140
      %p149 = scmp.eq.s32.totalorder %s38, 0
      %p150 = por %p148, %p149
      %p151 = scmp.ne.s32.totalorder %s139, %s140
      %p152 = scmp.eq.s32.totalorder %s39, 7
      %p153 = por %p151, %p152
      %p155 = scmp.ne.s32.totalorder %s140, %s154
      %p156 = scmp.eq.s32.totalorder %s39, 0
      %p157 = por %p155, %p156
      %s159 = sadd.s32 %s158, 1
      %p162 = scmp.eq.s32.totalorder %s33, 7
      %p163 = scmp.ne.s32.totalorder %s158, %s160
      %p164 = scmp.eq.s32.totalorder %s33, 0
      %p165 = por %p163, %p164
      %p166 = scmp.ne.s32.totalorder %s158, %s160
      %p167 = scmp.eq.s32.totalorder %s38, 7
      %p168 = por %p166, %p167
      %p169 = scmp.ne.s32.totalorder %s160, %s161
      %p170 = scmp.eq.s32.totalorder %s38, 0
      %p171 = por %p169, %p170
      %p172 = scmp.ne.s32.totalorder %s160, %s161
      %p173 = scmp.eq.s32.totalorder %s39, 7
      %p174 = por %p172, %p173
      %p176 = scmp.ne.s32.totalorder %s161, %s175
      %p177 = scmp.eq.s32.totalorder %s39, 0
      %p178 = por %p176, %p177
      %s180 = sadd.s32 %s179, 1
      %p183 = scmp.eq.s32.totalorder %s33, 7
      %p184 = scmp.ne.s32.totalorder %s179, %s181
      %p185 = scmp.eq.s32.totalorder %s33, 0
      %p186 = por %p184, %p185
      %p187 = scmp.ne.s32.totalorder %s179, %s181
      %p188 = scmp.eq.s32.totalorder %s38, 7
      %p189 = por %p187, %p188
      %p190 = scmp.ne.s32.totalorder %s181, %s182
      %p191 = scmp.eq.s32.totalorder %s38, 0
      %p192 = por %p190, %p191
      %p193 = scmp.ne.s32.totalorder %s181, %s182
      %p194 = scmp.eq.s32.totalorder %s39, 7
      %p195 = por %p193, %p194
      %p197 = scmp.ne.s32.totalorder %s182, %s196
      %p198 = scmp.eq.s32.totalorder %s39, 0
      %p199 = por %p197, %p198
      %s201 = sadd.s32 %s200, 1
      %p204 = scmp.eq.s32.totalorder %s33, 7
      %p205 = scmp.ne.s32.totalorder %s200, %s202
      %p206 = scmp.eq.s32.totalorder %s33, 0
      %p207 = por %p205, %p206
      %p208 = scmp.ne.s32.totalorder %s200, %s202
      %p209 = scmp.eq.s32.totalorder %s38, 7
      %p210 = por %p208, %p209
      %p211 = scmp.ne.s32.totalorder %s202, %s203
      %p212 = scmp.eq.s32.totalorder %s38, 0
      %p213 = por %p211, %p212
      %p214 = scmp.ne.s32.totalorder %s202, %s203
      %p215 = scmp.eq.s32.totalorder %s39, 7
      %p216 = por %p214, %p215
      %p218 = scmp.ne.s32.totalorder %s203, %s217
      %p219 = scmp.eq.s32.totalorder %s39, 0
      %p220 = por %p218, %p219
      %s222 = sadd.s32 %s221, 1
      %p225 = scmp.eq.s32.totalorder %s33, 7
      %p226 = scmp.ne.s32.totalorder %s221, %s223
      %p227 = scmp.eq.s32.totalorder %s33, 0
      %p228 = por %p226, %p227
      %p229 = scmp.ne.s32.totalorder %s221, %s223
      %p230 = scmp.eq.s32.totalorder %s38, 7
      %p231 = por %p229, %p230
      %p232 = scmp.ne.s32.totalorder %s223, %s224
      %p233 = scmp.eq.s32.totalorder %s38, 0
      %p234 = por %p232, %p233
      %p235 = scmp.ne.s32.totalorder %s223, %s224
      %p236 = scmp.eq.s32.totalorder %s39, 7
      %p237 = por %p235, %p236
      %p239 = scmp.ne.s32.totalorder %s224, %s238
      %p240 = scmp.eq.s32.totalorder %s39, 0
      %p241 = por %p239, %p240
      %s243 = sadd.s32 %s242, 1
      %p246 = scmp.eq.s32.totalorder %s33, 7
      %p247 = scmp.ne.s32.totalorder %s242, %s244
      %p248 = scmp.eq.s32.totalorder %s33, 0
      %p249 = por %p247, %p248
      %p250 = scmp.ne.s32.totalorder %s242, %s244
      %p251 = scmp.eq.s32.totalorder %s38, 7
      %p252 = por %p250, %p251
      %p253 = scmp.ne.s32.totalorder %s244, %s245
      %p254 = scmp.eq.s32.totalorder %s38, 0
      %p255 = por %p253, %p254
      %p256 = scmp.ne.s32.totalorder %s244, %s245
      %p257 = scmp.eq.s32.totalorder %s39, 7
      %p258 = por %p256, %p257
      %p260 = scmp.ne.s32.totalorder %s245, %s259
      %p261 = scmp.eq.s32.totalorder %s39, 0
      %p262 = por %p260, %p261
      %s264 = sadd.s32 %s263, 1
      %p267 = scmp.eq.s32.totalorder %s33, 7
      %p268 = scmp.ne.s32.totalorder %s263, %s265
      %p269 = scmp.eq.s32.totalorder %s33, 0
      %p270 = por %p268, %p269
      %p271 = scmp.ne.s32.totalorder %s263, %s265
      %p272 = scmp.eq.s32.totalorder %s38, 7
      %p273 = por %p271, %p272
      %p274 = scmp.ne.s32.totalorder %s265, %s266
      %p275 = scmp.eq.s32.totalorder %s38, 0
      %p276 = por %p274, %p275
      %p277 = scmp.ne.s32.totalorder %s265, %s266
      %p278 = scmp.eq.s32.totalorder %s39, 7
      %p279 = por %p277, %p278
      %p281 = scmp.ne.s32.totalorder %s266, %s280
      %p282 = scmp.eq.s32.totalorder %s39, 0
      %p283 = por %p281, %p282
      %s285 = sadd.s32 %s284, 1
      %p288 = scmp.eq.s32.totalorder %s33, 7
      %p289 = scmp.ne.s32.totalorder %s284, %s286
      %p290 = scmp.eq.s32.totalorder %s33, 0
      %p291 = por %p289, %p290
      %p292 = scmp.ne.s32.totalorder %s284, %s286
      %p293 = scmp.eq.s32.totalorder %s38, 7
      %p294 = por %p292, %p293
      %p295 = scmp.ne.s32.totalorder %s286, %s287
      %p296 = scmp.eq.s32.totalorder %s38, 0
      %p297 = por %p295, %p296
      %p298 = scmp.ne.s32.totalorder %s286, %s287
      %p299 = scmp.eq.s32.totalorder %s39, 7
      %p300 = por %p298, %p299
      %p302 = scmp.ne.s32.totalorder %s287, %s301
      %p303 = scmp.eq.s32.totalorder %s39, 0
      %p304 = por %p302, %p303
      %s306 = sadd.s32 %s305, 1
      %p309 = scmp.eq.s32.totalorder %s33, 7
      %p310 = scmp.ne.s32.totalorder %s305, %s307
      %p311 = scmp.eq.s32.totalorder %s33, 0
      %p312 = por %p310, %p311
      %p313 = scmp.ne.s32.totalorder %s305, %s307
      %p314 = scmp.eq.s32.totalorder %s38, 7
      %p315 = por %p313, %p314
      %p316 = scmp.ne.s32.totalorder %s307, %s308
      %p317 = scmp.eq.s32.totalorder %s38, 0
      %p318 = por %p316, %p317
      %p319 = scmp.ne.s32.totalorder %s307, %s308
      %p320 = scmp.eq.s32.totalorder %s39, 7
      %p321 = por %p319, %p320
      %p323 = scmp.ne.s32.totalorder %s308, %s322
      %p324 = scmp.eq.s32.totalorder %s39, 0
      %p325 = por %p323, %p324
      %s327 = sadd.s32 %s326, 1
      %p330 = scmp.eq.s32.totalorder %s33, 7
      %p331 = scmp.ne.s32.totalorder %s326, %s328
      %p332 = scmp.eq.s32.totalorder %s33, 0
      %p333 = por %p331, %p332
      %p334 = scmp.ne.s32.totalorder %s326, %s328
      %p335 = scmp.eq.s32.totalorder %s38, 7
      %p336 = por %p334, %p335
      %p337 = scmp.ne.s32.totalorder %s328, %s329
      %p338 = scmp.eq.s32.totalorder %s38, 0
      %p339 = por %p337, %p338
      %p340 = scmp.ne.s32.totalorder %s328, %s329
      %p341 = scmp.eq.s32.totalorder %s39, 7
      %p342 = por %p340, %p341
      %p344 = scmp.ne.s32.totalorder %s329, %s343
      %p345 = scmp.eq.s32.totalorder %s39, 0
      %p346 = por %p344, %p345
      %s348 = sadd.s32 %s347, 1
      %p351 = scmp.eq.s32.totalorder %s33, 7
      %p352 = scmp.ne.s32.totalorder %s347, %s349
      %p353 = scmp.eq.s32.totalorder %s33, 0
      %p354 = por %p352, %p353
      %p355 = scmp.ne.s32.totalorder %s347, %s349
      %p356 = scmp.eq.s32.totalorder %s38, 7
      %p357 = por %p355, %p356
      %p358 = scmp.ne.s32.totalorder %s349, %s350
      %p359 = scmp.eq.s32.totalorder %s38, 0
      %p360 = por %p358, %p359
      %p361 = scmp.ne.s32.totalorder %s349, %s350
      %p362 = scmp.eq.s32.totalorder %s39, 7
      %p363 = por %p361, %p362
      %p365 = scmp.ne.s32.totalorder %s350, %s364
      %p366 = scmp.eq.s32.totalorder %s39, 0
      %p367 = por %p365, %p366
      %s368 = ssub.s32 %s41, %s48
      %s369 = ssub.s32 %s40, %s52
      %s370 = sor.u32 %s368, %s369
      %p371 = scmp.eq.s32.totalorder %s370, 0
      %s373 = sadd.s32 %s372, 1
      %s374 = scalar_select %p371, %s372, %s373
      %p377 = pneg %p371
      %p378 = scmp.eq.s32.totalorder %s33, 7
      %p379 = por %p377, %p378
      %p380 = scmp.ne.s32.totalorder %s372, %s375
      %p381 = scmp.eq.s32.totalorder %s33, 0
      %p382 = por %p380, %p381
      %p383 = scmp.ne.s32.totalorder %s372, %s375
      %p384 = scmp.eq.s32.totalorder %s38, 7
      %p385 = por %p383, %p384
      %p386 = scmp.ne.s32.totalorder %s375, %s376
      %p387 = scmp.eq.s32.totalorder %s38, 0
      %p388 = por %p386, %p387
      %p389 = scmp.ne.s32.totalorder %s375, %s376
      %p390 = scmp.eq.s32.totalorder %s39, 7
      %p391 = por %p389, %p390
      %p393 = scmp.ne.s32.totalorder %s376, %s392
      %p394 = scmp.eq.s32.totalorder %s39, 0
      %p395 = por %p393, %p394
      %p396 = scmp.le.s32.totalorder 1, %s33
      %p397 = scmp.lt.s32.totalorder %s33, 9
      %p398 = pnand %p396, %p397
      %p399 = pneg %p398
      // Predicated region
      $region9: #{tpu_custom_call.1} parent=5 // pred_check
        _
      $region10: #{tpu_custom_call.1} parent=5 // pred_check_branch
        %401 = sbr.rel (%p398) target = $region12
      $region11: #{tpu_custom_call.1} parent=5 // pred_region
        %s402 = ssub.s32 %s33, 1
        // Predicated region
        $region13: #{tpu_custom_call.1} parent=11 // pred_check
          %p403 = pneg %p150
        $region14: #{tpu_custom_call.1} parent=11 // pred_check_branch
          %405 = sbr.rel (%p403) target = $region16
        $region15: #{tpu_custom_call.1} parent=11 // pred_region
          %407 = vsyncadd [#allocation10], 0
          %s408 = sshll.u32 %s3, 4
          %s409 = int_to_ptr.hbm [resolvable:$true] %s408
          %s410 = sshll.u32 [#allocation9], 4
          %s411 = int_to_ptr.vmem [resolvable:$true] %s410
          %416 = dma.hbm_to_vmem [thread:$0]  %s409, 6144, %s411, [#allocation10], 384, 384, 24
        $region16: #{tpu_custom_call.1} parent=11 // pred_fallthru
          _
        // Predicated region
        $region17: #{tpu_custom_call.1} parent=11 // pred_check
          %p417 = pneg %p171
        $region18: #{tpu_custom_call.1} parent=11 // pred_check_branch
          %419 = sbr.rel (%p417) target = $region20
        $region19: #{tpu_custom_call.1} parent=11 // pred_region
          %421 = vsyncadd [#allocation10], 0
          %s422 = sshll.u32 %s4, 4
          %s423 = int_to_ptr.hbm [resolvable:$true] %s422
          %s424 = sshll.u32 [#allocation11], 4
          %s425 = int_to_ptr.vmem [resolvable:$true] %s424
          %430 = dma.hbm_to_vmem [thread:$0]  %s423, 6144, %s425, [#allocation10], 384, 384, 24
        $region20: #{tpu_custom_call.1} parent=11 // pred_fallthru
          _
        // Predicated region
        $region21: #{tpu_custom_call.1} parent=11 // pred_check
          %p431 = pneg %p192
        $region22: #{tpu_custom_call.1} parent=11 // pred_check_branch
          %433 = sbr.rel (%p431) target = $region24
        $region23: #{tpu_custom_call.1} parent=11 // pred_region
          %435 = vsyncadd [#allocation13], 0
          %s436 = sshll.u32 %s5, 4
          %s437 = int_to_ptr.hbm [resolvable:$true] %s436
          %s438 = sshll.u32 [#allocation12], 4
          %s439 = int_to_ptr.vmem [resolvable:$true] %s438
          %444 = dma.hbm_to_vmem [thread:$0]  %s437, 2048, %s439, [#allocation13], 128, 128, 8
        $region24: #{tpu_custom_call.1} parent=11 // pred_fallthru
          _
        // Predicated region
        $region25: #{tpu_custom_call.1} parent=11 // pred_check
          %p445 = pneg %p213
        $region26: #{tpu_custom_call.1} parent=11 // pred_check_branch
          %447 = sbr.rel (%p445) target = $region28
        $region27: #{tpu_custom_call.1} parent=11 // pred_region
          %449 = vsyncadd [#allocation13], 0
          %s450 = sshll.u32 %s6, 4
          %s451 = int_to_ptr.hbm [resolvable:$true] %s450
          %s452 = sshll.u32 [#allocation14], 4
          %s453 = int_to_ptr.vmem [resolvable:$true] %s452
          %458 = dma.hbm_to_vmem [thread:$0]  %s451, 2048, %s453, [#allocation13], 128, 128, 8
        $region28: #{tpu_custom_call.1} parent=11 // pred_fallthru
          _
        // Predicated region
        $region29: #{tpu_custom_call.1} parent=11 // pred_check
          %p459 = pneg %p234
        $region30: #{tpu_custom_call.1} parent=11 // pred_check_branch
          %461 = sbr.rel (%p459) target = $region32
        $region31: #{tpu_custom_call.1} parent=11 // pred_region
          %463 = vsyncadd [#allocation16], 0
          %s464 = sshll.u32 %s7, 4
          %s465 = int_to_ptr.hbm [resolvable:$true] %s464
          %s466 = sshll.u32 [#allocation15], 4
          %s467 = int_to_ptr.vmem [resolvable:$true] %s466
          %472 = dma.hbm_to_vmem [thread:$0]  %s465, 32768, %s467, [#allocation16], 2048, 2048, 128
        $region32: #{tpu_custom_call.1} parent=11 // pred_fallthru
          _
        // Predicated region
        $region33: #{tpu_custom_call.1} parent=11 // pred_check
          %p473 = pneg %p255
        $region34: #{tpu_custom_call.1} parent=11 // pred_check_branch
          %475 = sbr.rel (%p473) target = $region36
        $region35: #{tpu_custom_call.1} parent=11 // pred_region
          %477 = vsyncadd [#allocation16], 0
          %s478 = sshll.u32 %s8, 4
          %s479 = int_to_ptr.hbm [resolvable:$true] %s478
          %s480 = sshll.u32 [#allocation17], 4
          %s481 = int_to_ptr.vmem [resolvable:$true] %s480
          %486 = dma.hbm_to_vmem [thread:$0]  %s479, 32768, %s481, [#allocation16], 128, 128, 8
        $region36: #{tpu_custom_call.1} parent=11 // pred_fallthru
          _
        // Predicated region
        $region37: #{tpu_custom_call.1} parent=11 // pred_check
          %p487 = pneg %p276
        $region38: #{tpu_custom_call.1} parent=11 // pred_check_branch
          %489 = sbr.rel (%p487) target = $region40
        $region39: #{tpu_custom_call.1} parent=11 // pred_region
          _
        $region40: #{tpu_custom_call.1} parent=11 // pred_fallthru
          _
        // Predicated region
        $region41: #{tpu_custom_call.1} parent=11 // pred_check
          %p490 = pneg %p297
        $region42: #{tpu_custom_call.1} parent=11 // pred_check_branch
          %492 = sbr.rel (%p490) target = $region44
        $region43: #{tpu_custom_call.1} parent=11 // pred_region
          _
        $region44: #{tpu_custom_call.1} parent=11 // pred_fallthru
          _
        // Predicated region
        $region45: #{tpu_custom_call.1} parent=11 // pred_check
          %p493 = pneg %p318
        $region46: #{tpu_custom_call.1} parent=11 // pred_check_branch
          %495 = sbr.rel (%p493) target = $region48
        $region47: #{tpu_custom_call.1} parent=11 // pred_region
          _
        $region48: #{tpu_custom_call.1} parent=11 // pred_fallthru
          _
        // Predicated region
        $region49: #{tpu_custom_call.1} parent=11 // pred_check
          %p496 = pneg %p339
        $region50: #{tpu_custom_call.1} parent=11 // pred_check_branch
          %498 = sbr.rel (%p496) target = $region52
        $region51: #{tpu_custom_call.1} parent=11 // pred_region
          %500 = vsyncadd [#allocation19], 0
          %s502 = sshll.u32 %s12, 4
          %s503 = int_to_ptr.hbm [resolvable:$true] %s502
          %s504 = sshll.u32 [#allocation18], 4
          %s505 = int_to_ptr.vmem [resolvable:$true] %s504
          %507 = dma.hbm_to_vmem [thread:$0]  %s503, 256, %s505, [#allocation19]
        $region52: #{tpu_custom_call.1} parent=11 // pred_fallthru
          _
        // Predicated region
        $region53: #{tpu_custom_call.1} parent=11 // pred_check
          %p508 = pneg %p360
        $region54: #{tpu_custom_call.1} parent=11 // pred_check_branch
          %510 = sbr.rel (%p508) target = $region56
        $region55: #{tpu_custom_call.1} parent=11 // pred_region
          _
        $region56: #{tpu_custom_call.1} parent=11 // pred_fallthru
          _
      $region12: #{tpu_custom_call.1} parent=5 // pred_fallthru
        _
      %p511 = scmp.lt.s32.totalorder %s33, 8
      // Predicated region
      $region57: #{tpu_custom_call.1} parent=5 // pred_check
        %p512 = pneg %p511
      $region58: #{tpu_custom_call.1} parent=5 // pred_check_branch
        %514 = sbr.rel (%p512) target = $region60
      $region59: #{tpu_custom_call.1} parent=5 // pred_region
        // Predicated region
        $region61: #{tpu_custom_call.1} parent=59 // pred_check
          %p515 = pneg %p67
        $region62: #{tpu_custom_call.1} parent=59 // pred_check_branch
          %517 = sbr.rel (%p515) target = $region64
        $region63: #{tpu_custom_call.1} parent=59 // pred_region
          %s518 = sand.u32 %s57, 1
          %s519 = scalar_lea.sflag [#allocation4], %s518
          %s520 = sand.u32 %s57, 1
          %s521 = smul.addr %s520, 16
          %s522 = scalar_lea.vmem [#allocation3], %s521
          %s523 = smul.u32 2, %s40
          %525 = vsyncadd %s519, 0
          %s526 = smul.addr %s41, 2
          %s527 = sadd.s32 %s523, %s526
          %s528 = smul.addr %s527, 8
          %s529 = scalar_lea.hbm %s0, %s528
          %s530 = sshll.u32 %s529, 4
          %s531 = int_to_ptr.hbm [resolvable:$true] %s530
          %s532 = sshll.u32 %s522, 4
          %s533 = int_to_ptr.vmem [resolvable:$true] %s532
          %538 = dma.hbm_to_vmem [thread:$0]  %s531, 256, %s533, %s519, 128, 128, 8
        $region64: #{tpu_custom_call.1} parent=59 // pred_fallthru
          _
        // Predicated region
        $region65: #{tpu_custom_call.1} parent=59 // pred_check
          %p539 = pneg %p95
        $region66: #{tpu_custom_call.1} parent=59 // pred_check_branch
          %541 = sbr.rel (%p539) target = $region68
        $region67: #{tpu_custom_call.1} parent=59 // pred_region
          %s542 = sand.u32 %s33, 1
          %s543 = scalar_lea.sflag [#allocation7], %s542
          %s544 = sand.u32 %s85, 1
          %s545 = smul.addr %s544, 48
          %s546 = scalar_lea.vmem [#allocation6], %s545
          %s547 = smul.u32 2, %s40
          %549 = vsyncadd %s543, 0
          %s550 = smul.addr %s547, 3
          %s551 = smul.addr %s41, 6
          %s552 = sadd.s32 %s550, %s551
          %s553 = smul.addr %s552, 8
          %s554 = scalar_lea.hbm %s1, %s553
          %s555 = sshll.u32 %s554, 4
          %s556 = int_to_ptr.hbm [resolvable:$true] %s555
          %s557 = sshll.u32 %s546, 4
          %s558 = int_to_ptr.vmem [resolvable:$true] %s557
          %563 = dma.hbm_to_vmem [thread:$0]  %s556, 768, %s558, %s543, 384, 384, 24
        $region68: #{tpu_custom_call.1} parent=59 // pred_fallthru
          _
        // Predicated region
        $region69: #{tpu_custom_call.1} parent=59 // pred_check
          %p564 = pneg %p123
        $region70: #{tpu_custom_call.1} parent=59 // pred_check_branch
          %566 = sbr.rel (%p564) target = $region72
        $region71: #{tpu_custom_call.1} parent=59 // pred_region
          %s567 = sand.u32 %s33, 1
          %s568 = scalar_lea.sflag [#allocation7], %s567
          %s569 = sand.u32 %s113, 1
          %s570 = smul.addr %s569, 48
          %s571 = scalar_lea.vmem [#allocation8], %s570
          %s572 = smul.u32 2, %s40
          %574 = vsyncadd %s568, 0
          %s575 = smul.addr %s572, 3
          %s576 = smul.addr %s41, 6
          %s577 = sadd.s32 %s575, %s576
          %s578 = smul.addr %s577, 8
          %s579 = scalar_lea.hbm %s2, %s578
          %s580 = sshll.u32 %s579, 4
          %s581 = int_to_ptr.hbm [resolvable:$true] %s580
          %s582 = sshll.u32 %s571, 4
          %s583 = int_to_ptr.vmem [resolvable:$true] %s582
          %588 = dma.hbm_to_vmem [thread:$0]  %s581, 768, %s583, %s568, 384, 384, 24
        $region72: #{tpu_custom_call.1} parent=59 // pred_fallthru
          _
      $region60: #{tpu_custom_call.1} parent=5 // pred_fallthru
        _
      %p589 = scmp.le.s32.totalorder 1, %s33
      %p590 = scmp.lt.s32.totalorder %s33, 9
      %p591 = pnand %p589, %p590
      %p592 = pneg %p591
      // Predicated region
      $region73: #{tpu_custom_call.1} parent=5 // pred_check
        _
      $region74: #{tpu_custom_call.1} parent=5 // pred_check_branch
        %594 = sbr.rel (%p591) target = $region76
      $region75: #{tpu_custom_call.1} parent=5 // pred_region
        %s595 = ssub.s32 %s33, 1
        %s596 = sand.u32 %s60, 1
        %s597 = scalar_lea.sflag [#allocation4], %s596
        %s598 = sand.u32 %s60, 1
        %s599 = smul.addr %s598, 16
        %s600 = scalar_lea.vmem [#allocation3], %s599
        // Predicated region
        $region77: #{tpu_custom_call.1} parent=75 // pred_check
          %p601 = pneg %p73
        $region78: #{tpu_custom_call.1} parent=75 // pred_check_branch
          %603 = sbr.rel (%p601) target = $region80
        $region79: #{tpu_custom_call.1} parent=75 // pred_region
          %605 = dma.done %s597, 256
        $region80: #{tpu_custom_call.1} parent=75 // pred_fallthru
          _
        %s606 = sand.u32 %s38, 1
        %s607 = scalar_lea.sflag [#allocation7], %s606
        %s608 = sand.u32 %s88, 1
        %s609 = smul.addr %s608, 48
        %s610 = scalar_lea.vmem [#allocation6], %s609
        // Predicated region
        $region81: #{tpu_custom_call.1} parent=75 // pred_check
          %p611 = pneg %p101
        $region82: #{tpu_custom_call.1} parent=75 // pred_check_branch
          %613 = sbr.rel (%p611) target = $region84
        $region83: #{tpu_custom_call.1} parent=75 // pred_region
          %615 = dma.done %s607, 768
        $region84: #{tpu_custom_call.1} parent=75 // pred_fallthru
          _
        %s616 = sand.u32 %s38, 1
        %s617 = scalar_lea.sflag [#allocation7], %s616
        %s618 = sand.u32 %s116, 1
        %s619 = smul.addr %s618, 48
        %s620 = scalar_lea.vmem [#allocation8], %s619
        // Predicated region
        $region85: #{tpu_custom_call.1} parent=75 // pred_check
          %p621 = pneg %p129
        $region86: #{tpu_custom_call.1} parent=75 // pred_check_branch
          %623 = sbr.rel (%p621) target = $region88
        $region87: #{tpu_custom_call.1} parent=75 // pred_region
          %625 = dma.done %s617, 768
        $region88: #{tpu_custom_call.1} parent=75 // pred_fallthru
          _
        // Predicated region
        $region89: #{tpu_custom_call.1} parent=75 // pred_check
          %p626 = pneg %p150
        $region90: #{tpu_custom_call.1} parent=75 // pred_check_branch
          %628 = sbr.rel (%p626) target = $region92
        $region91: #{tpu_custom_call.1} parent=75 // pred_region
          %630 = dma.done [#allocation10], 6144
        $region92: #{tpu_custom_call.1} parent=75 // pred_fallthru
          _
        // Predicated region
        $region93: #{tpu_custom_call.1} parent=75 // pred_check
          %p631 = pneg %p171
        $region94: #{tpu_custom_call.1} parent=75 // pred_check_branch
          %633 = sbr.rel (%p631) target = $region96
        $region95: #{tpu_custom_call.1} parent=75 // pred_region
          %635 = dma.done [#allocation10], 6144
        $region96: #{tpu_custom_call.1} parent=75 // pred_fallthru
          _
        // Predicated region
        $region97: #{tpu_custom_call.1} parent=75 // pred_check
          %p636 = pneg %p192
        $region98: #{tpu_custom_call.1} parent=75 // pred_check_branch
          %638 = sbr.rel (%p636) target = $region100
        $region99: #{tpu_custom_call.1} parent=75 // pred_region
          %640 = dma.done [#allocation13], 2048
        $region100: #{tpu_custom_call.1} parent=75 // pred_fallthru
          _
        // Predicated region
        $region101: #{tpu_custom_call.1} parent=75 // pred_check
          %p641 = pneg %p213
        $region102: #{tpu_custom_call.1} parent=75 // pred_check_branch
          %643 = sbr.rel (%p641) target = $region104
        $region103: #{tpu_custom_call.1} parent=75 // pred_region
          %645 = dma.done [#allocation13], 2048
        $region104: #{tpu_custom_call.1} parent=75 // pred_fallthru
          _
        // Predicated region
        $region105: #{tpu_custom_call.1} parent=75 // pred_check
          %p646 = pneg %p234
        $region106: #{tpu_custom_call.1} parent=75 // pred_check_branch
          %648 = sbr.rel (%p646) target = $region108
        $region107: #{tpu_custom_call.1} parent=75 // pred_region
          %650 = dma.done [#allocation16], 32768
        $region108: #{tpu_custom_call.1} parent=75 // pred_fallthru
          _
        // Predicated region
        $region109: #{tpu_custom_call.1} parent=75 // pred_check
          %p651 = pneg %p255
        $region110: #{tpu_custom_call.1} parent=75 // pred_check_branch
          %653 = sbr.rel (%p651) target = $region112
        $region111: #{tpu_custom_call.1} parent=75 // pred_region
          %655 = dma.done [#allocation16], 32768
        $region112: #{tpu_custom_call.1} parent=75 // pred_fallthru
          _
        // Predicated region
        $region113: #{tpu_custom_call.1} parent=75 // pred_check
          %p656 = pneg %p339
        $region114: #{tpu_custom_call.1} parent=75 // pred_check_branch
          %658 = sbr.rel (%p656) target = $region116
        $region115: #{tpu_custom_call.1} parent=75 // pred_region
          %660 = dma.done [#allocation19], 256
        $region116: #{tpu_custom_call.1} parent=75 // pred_fallthru
          _
        %s661 = sand.u32 %s60, 1
        %s662 = scalar_lea.sflag [#allocation4], %s661
        %s663 = sand.u32 %s60, 1
        %s664 = smul.addr %s663, 16
        %s665 = scalar_lea.vmem [#allocation3], %s664
        %p666 = pneg %p73
        %p667 = pneg %p70
        %s668 = sand.u32 %s38, 1
        %s669 = scalar_lea.sflag [#allocation7], %s668
        %s670 = sand.u32 %s88, 1
        %s671 = smul.addr %s670, 48
        %s672 = scalar_lea.vmem [#allocation6], %s671
        %p673 = pneg %p101
        %p674 = pneg %p98
        %s675 = sand.u32 %s38, 1
        %s676 = scalar_lea.sflag [#allocation7], %s675
        %s677 = sand.u32 %s116, 1
        %s678 = smul.addr %s677, 48
        %s679 = scalar_lea.vmem [#allocation8], %s678
        %p680 = pneg %p129
        %p681 = pneg %p126
        %p682 = pneg %p150
        %p683 = pneg %p147
        %p684 = pneg %p171
        %p685 = pneg %p168
        %p686 = pneg %p192
        %p687 = pneg %p189
        %p688 = pneg %p213
        %p689 = pneg %p210
        %p690 = pneg %p234
        %p691 = pneg %p231
        %p692 = pneg %p255
        %p693 = pneg %p252
        %p694 = pneg %p276
        %p695 = pneg %p273
        %p696 = pneg %p297
        %p697 = pneg %p294
        %p698 = pneg %p318
        %p699 = pneg %p315
        %p700 = pneg %p339
        %p701 = pneg %p336
        %p702 = pneg %p360
        %p703 = pneg %p357
        %p704 = pneg %p388
        %p705 = pneg %p385
        %s706 = sand.u32 %s375, 1
        %s707 = scalar_lea.sflag [#allocation5], %s706
        %s708 = sand.u32 %s375, 1
        %s709 = smul.addr %s708, 16
        %s710 = scalar_lea.vmem [#allocation20], %s709
        %s711 = smul.u32 2, %s42
        %s712 = smul.u32 2, %s42
        %s713 = smul.u32 2, %s42
        %s714 = smul.u32 2, %s42
        %p715 = scmp.eq.s32.totalorder %s43, 0
        // Predicated region
        $region117: #{tpu_custom_call.1} parent=75 // pred_check
          %p716 = pneg %p715
        $region118: #{tpu_custom_call.1} parent=75 // pred_check_branch
          %718 = sbr.rel (%p716) target = $region120
        $region119: #{tpu_custom_call.1} parent=75 // pred_region
          %719 = vst [vmem:[#allocation2] sm:$0xff] 0.0
          %720 = vst [vmem:[#allocation2 + $0x8] sm:$0xff] 0.0
        $region120: #{tpu_custom_call.1} parent=75 // pred_fallthru
          _
        %v721 = vld [vmem:[#allocation2] sm:$0xff]
        %v722 = vld [vmem:[#allocation2 + $0x8] sm:$0xff]
        %v723 = vld [vmem:[%s600] sm:$0xff]
        %v724 = vld [vmem:[%s600 + $0x8] sm:$0xff]
        %v725 = vld [vmem:[%s610] sm:$0xff]
        %v726 = vld [vmem:[%s610 + $0x8] sm:$0xff]
        %v727 = vld [vmem:[%s610 + $0x10] sm:$0xff]
        %v728 = vld [vmem:[%s610 + $0x18] sm:$0xff]
        %v729 = vld [vmem:[%s610 + $0x20] sm:$0xff]
        %v730 = vld [vmem:[%s610 + $0x28] sm:$0xff]
        %v731 = vld [vmem:[%s620] sm:$0xff]
        %v732 = vld [vmem:[%s620 + $0x8] sm:$0xff]
        %v733 = vld [vmem:[%s620 + $0x10] sm:$0xff]
        %v734 = vld [vmem:[%s620 + $0x18] sm:$0xff]
        %v735 = vld [vmem:[%s620 + $0x20] sm:$0xff]
        %v736 = vld [vmem:[%s620 + $0x28] sm:$0xff]
        %v737 = vld [vmem:[#allocation9] sm:$0xff]
        %v738 = vld [vmem:[#allocation9 + $0x8] sm:$0xff]
        %v739 = vld [vmem:[#allocation9 + $0x10] sm:$0xff]
        %v740 = vld [vmem:[#allocation9 + $0x18] sm:$0xff]
        %v741 = vld [vmem:[#allocation9 + $0x20] sm:$0xff]
        %v742 = vld [vmem:[#allocation9 + $0x28] sm:$0xff]
        %v743 = vld [vmem:[#allocation9 + $0x30] sm:$0xff]
        %v744 = vld [vmem:[#allocation9 + $0x38] sm:$0xff]
        %v745 = vld [vmem:[#allocation9 + $0x40] sm:$0xff]
        %v746 = vld [vmem:[#allocation9 + $0x48] sm:$0xff]
        %v747 = vld [vmem:[#allocation9 + $0x50] sm:$0xff]
        %v748 = vld [vmem:[#allocation9 + $0x58] sm:$0xff]
        %v749 = vld [vmem:[#allocation9 + $0x60] sm:$0xff]
        %v750 = vld [vmem:[#allocation9 + $0x68] sm:$0xff]
        %v751 = vld [vmem:[#allocation9 + $0x70] sm:$0xff]
        %v752 = vld [vmem:[#allocation9 + $0x78] sm:$0xff]
        %v753 = vld [vmem:[#allocation9 + $0x80] sm:$0xff]
        %v754 = vld [vmem:[#allocation9 + $0x88] sm:$0xff]
        %v755 = vld [vmem:[#allocation9 + $0x90] sm:$0xff]
        %v756 = vld [vmem:[#allocation9 + $0x98] sm:$0xff]
        %v757 = vld [vmem:[#allocation9 + $0xa0] sm:$0xff]
        %v758 = vld [vmem:[#allocation9 + $0xa8] sm:$0xff]
        %v759 = vld [vmem:[#allocation9 + $0xb0] sm:$0xff]
        %v760 = vld [vmem:[#allocation9 + $0xb8] sm:$0xff]
        %v761 = vld [vmem:[#allocation9 + $0xc0] sm:$0xff]
        %v762 = vld [vmem:[#allocation9 + $0xc8] sm:$0xff]
        %v763 = vld [vmem:[#allocation9 + $0xd0] sm:$0xff]
        %v764 = vld [vmem:[#allocation9 + $0xd8] sm:$0xff]
        %v765 = vld [vmem:[#allocation9 + $0xe0] sm:$0xff]
        %v766 = vld [vmem:[#allocation9 + $0xe8] sm:$0xff]
        %v767 = vld [vmem:[#allocation9 + $0xf0] sm:$0xff]
        %v768 = vld [vmem:[#allocation9 + $0xf8] sm:$0xff]
        %v769 = vld [vmem:[#allocation9 + $0x100] sm:$0xff]
        %v770 = vld [vmem:[#allocation9 + $0x108] sm:$0xff]
        %v771 = vld [vmem:[#allocation9 + $0x110] sm:$0xff]
        %v772 = vld [vmem:[#allocation9 + $0x118] sm:$0xff]
        %v773 = vld [vmem:[#allocation9 + $0x120] sm:$0xff]
        %v774 = vld [vmem:[#allocation9 + $0x128] sm:$0xff]
        %v775 = vld [vmem:[#allocation9 + $0x130] sm:$0xff]
        %v776 = vld [vmem:[#allocation9 + $0x138] sm:$0xff]
        %v777 = vld [vmem:[#allocation9 + $0x140] sm:$0xff]
        %v778 = vld [vmem:[#allocation9 + $0x148] sm:$0xff]
        %v779 = vld [vmem:[#allocation9 + $0x150] sm:$0xff]
        %v780 = vld [vmem:[#allocation9 + $0x158] sm:$0xff]
        %v781 = vld [vmem:[#allocation9 + $0x160] sm:$0xff]
        %v782 = vld [vmem:[#allocation9 + $0x168] sm:$0xff]
        %v783 = vld [vmem:[#allocation9 + $0x170] sm:$0xff]
        %v784 = vld [vmem:[#allocation9 + $0x178] sm:$0xff]
        %785 = vmatpush.msra.mxu0 %v782
        %786 = vmatpush.msra.mxu0 %v779
        %787 = vmatpush.msra.mxu0 %v776
        %788 = vmatpush.msra.mxu0 %v773
        %789 = vmatpush.msra.mxu0 %v770
        %790 = vmatpush.msra.mxu0 %v767
        %791 = vmatpush.msra.mxu0 %v764
        %792 = vmatpush.msra.mxu0 %v761
        %793 = vmatpush.msra.mxu0 %v758
        %794 = vmatpush.msra.mxu0 %v755
        %795 = vmatpush.msra.mxu0 %v752
        %796 = vmatpush.msra.mxu0 %v749
        %797 = vmatpush.msra.mxu0 %v746
        %798 = vmatpush.msra.mxu0 %v743
        %799 = vmatpush.msra.mxu0 %v740
        %800 = vmatpush.msra.mxu0 %v737
        %801 = vmatmul.f32.gmra.mxu0 %v721
        %v802 = vpop.f32.mrf.mxu0
        %v803 = vadd.f32 0.0, %v802
        %804 = vmatmul.f32.gmra.mxu0 %v722
        %v805 = vpop.f32.mrf.mxu0
        %v806 = vadd.f32 0.0, %v805
        %807 = vdwg.mxu0
        %808 = vmatpush.msra.mxu0 %v783
        %809 = vmatpush.msra.mxu0 %v780
        %810 = vmatpush.msra.mxu0 %v777
        %811 = vmatpush.msra.mxu0 %v774
        %812 = vmatpush.msra.mxu0 %v771
        %813 = vmatpush.msra.mxu0 %v768
        %814 = vmatpush.msra.mxu0 %v765
        %815 = vmatpush.msra.mxu0 %v762
        %816 = vmatpush.msra.mxu0 %v759
        %817 = vmatpush.msra.mxu0 %v756
        %818 = vmatpush.msra.mxu0 %v753
        %819 = vmatpush.msra.mxu0 %v750
        %820 = vmatpush.msra.mxu0 %v747
        %821 = vmatpush.msra.mxu0 %v744
        %822 = vmatpush.msra.mxu0 %v741
        %823 = vmatpush.msra.mxu0 %v738
        %824 = vmatmul.f32.gmra.mxu0 %v721
        %v825 = vpop.f32.mrf.mxu0
        %v826 = vadd.f32 0.0, %v825
        %827 = vmatmul.f32.gmra.mxu0 %v722
        %v828 = vpop.f32.mrf.mxu0
        %v829 = vadd.f32 0.0, %v828
        %830 = vdwg.mxu0
        %831 = vmatpush.msra.mxu0 %v784
        %832 = vmatpush.msra.mxu0 %v781
        %833 = vmatpush.msra.mxu0 %v778
        %834 = vmatpush.msra.mxu0 %v775
        %835 = vmatpush.msra.mxu0 %v772
        %836 = vmatpush.msra.mxu0 %v769
        %837 = vmatpush.msra.mxu0 %v766
        %838 = vmatpush.msra.mxu0 %v763
        %839 = vmatpush.msra.mxu0 %v760
        %840 = vmatpush.msra.mxu0 %v757
        %841 = vmatpush.msra.mxu0 %v754
        %842 = vmatpush.msra.mxu0 %v751
        %843 = vmatpush.msra.mxu0 %v748
        %844 = vmatpush.msra.mxu0 %v745
        %845 = vmatpush.msra.mxu0 %v742
        %846 = vmatpush.msra.mxu0 %v739
        %847 = vmatmul.f32.gmra.mxu0 %v721
        %v848 = vpop.f32.mrf.mxu0
        %v849 = vadd.f32 0.0, %v848
        %850 = vmatmul.f32.gmra.mxu0 %v722
        %v851 = vpop.f32.mrf.mxu0
        %v852 = vadd.f32 0.0, %v851
        %853 = vdwg.mxu0
        %v854 = vadd.f32 %v803, %v725
        %v855 = vadd.f32 %v806, %v728
        %v856 = vxor.u32 %v854, 2147483648
        %v857 = vxor.u32 %v855, 2147483648
        %v858 = vmul.f32 %v856, 1.442695
        %v859 = vpow.pop %v858
        %v860 = vmul.f32 %v857, 1.442695
        %v861 = vpow.pop %v860
        %v862 = vadd.f32 %v859, 1.0
        %v863 = vadd.f32 %v861, 1.0
        %v864 = vrcp.pop %v862
        %v865 = vmul.f32 %v862, %v864
        %v866 = vsub.f32 1.0, %v865
        %v867 = vmul.f32 %v864, %v866
        %v868 = vadd.f32 %v864, %v867
        %vm869 = vweird.f32 %v862
        %vm870 = vweird.f32 %v864
        %vm871 = vmor %vm869, %vm870
        %v872 = vsel %vm871, %v864, %v868
        %v873 = vand.u32 2147483647, %v862
        %vm874 = vcmp.eq.f32.partialorder %v873, 8.507059e+37
        %v875 = vand.u32 %v862, 2147483648
        %v876 = vor.u32 1.1754944e-38, %v875
        %v877 = vsel %vm874, %v876, %v872
        %v878 = vmul.f32 1.0, %v877
        %v879 = vrcp.pop %v863
        %v880 = vmul.f32 %v863, %v879
        %v881 = vsub.f32 1.0, %v880
        %v882 = vmul.f32 %v879, %v881
        %v883 = vadd.f32 %v879, %v882
        %vm884 = vweird.f32 %v863
        %vm885 = vweird.f32 %v879
        %vm886 = vmor %vm884, %vm885
        %v887 = vsel %vm886, %v879, %v883
        %v888 = vand.u32 2147483647, %v863
        %vm889 = vcmp.eq.f32.partialorder %v888, 8.507059e+37
        %v890 = vand.u32 %v863, 2147483648
        %v891 = vor.u32 1.1754944e-38, %v890
        %v892 = vsel %vm889, %v891, %v887
        %v893 = vmul.f32 1.0, %v892
        %v894 = vadd.f32 %v826, %v726
        %v895 = vadd.f32 %v829, %v729
        %v896 = vxor.u32 %v894, 2147483648
        %v897 = vxor.u32 %v895, 2147483648
        %v898 = vmul.f32 %v896, 1.442695
        %v899 = vpow.pop %v898
        %v900 = vmul.f32 %v897, 1.442695
        %v901 = vpow.pop %v900
        %v902 = vadd.f32 %v899, 1.0
        %v903 = vadd.f32 %v901, 1.0
        %v904 = vrcp.pop %v902
        %v905 = vmul.f32 %v902, %v904
        %v906 = vsub.f32 1.0, %v905
        %v907 = vmul.f32 %v904, %v906
        %v908 = vadd.f32 %v904, %v907
        %vm909 = vweird.f32 %v902
        %vm910 = vweird.f32 %v904
        %vm911 = vmor %vm909, %vm910
        %v912 = vsel %vm911, %v904, %v908
        %v913 = vand.u32 2147483647, %v902
        %vm914 = vcmp.eq.f32.partialorder %v913, 8.507059e+37
        %v915 = vand.u32 %v902, 2147483648
        %v916 = vor.u32 1.1754944e-38, %v915
        %v917 = vsel %vm914, %v916, %v912
        %v918 = vmul.f32 1.0, %v917
        %v919 = vrcp.pop %v903
        %v920 = vmul.f32 %v903, %v919
        %v921 = vsub.f32 1.0, %v920
        %v922 = vmul.f32 %v919, %v921
        %v923 = vadd.f32 %v919, %v922
        %vm924 = vweird.f32 %v903
        %vm925 = vweird.f32 %v919
        %vm926 = vmor %vm924, %vm925
        %v927 = vsel %vm926, %v919, %v923
        %v928 = vand.u32 2147483647, %v903
        %vm929 = vcmp.eq.f32.partialorder %v928, 8.507059e+37
        %v930 = vand.u32 %v903, 2147483648
        %v931 = vor.u32 1.1754944e-38, %v930
        %v932 = vsel %vm929, %v931, %v927
        %v933 = vmul.f32 1.0, %v932
        %v934 = vld [vmem:[%s9] sm:$0x1]
        %v936 = vperm.slane %v934, 0
        %v938 = vadd.f32 %v849, %v936
        %v939 = vadd.f32 %v852, %v936
        %v940 = vmul.f32 %v878, %v727
        %v941 = vmul.f32 %v893, %v730
        %v942 = vadd.f32 %v938, %v940
        %v943 = vadd.f32 %v939, %v941
        %v944 = vtanh.pop %v942
        %v945 = vtanh.pop %v943
        %v946 = vsub.f32 1.0, %v918
        %v947 = vsub.f32 1.0, %v933
        %v948 = vmul.f32 %v946, %v944
        %v949 = vmul.f32 %v947, %v945
        %v950 = vmul.f32 %v918, %v723
        %v951 = vmul.f32 %v933, %v724
        %v952 = vadd.f32 %v948, %v950
        %v953 = vadd.f32 %v949, %v951
        %v954 = vld [vmem:[#allocation11] sm:$0xff]
        %v955 = vld [vmem:[#allocation11 + $0x8] sm:$0xff]
        %v956 = vld [vmem:[#allocation11 + $0x10] sm:$0xff]
        %v957 = vld [vmem:[#allocation11 + $0x18] sm:$0xff]
        %v958 = vld [vmem:[#allocation11 + $0x20] sm:$0xff]
        %v959 = vld [vmem:[#allocation11 + $0x28] sm:$0xff]
        %v960 = vld [vmem:[#allocation11 + $0x30] sm:$0xff]
        %v961 = vld [vmem:[#allocation11 + $0x38] sm:$0xff]
        %v962 = vld [vmem:[#allocation11 + $0x40] sm:$0xff]
        %v963 = vld [vmem:[#allocation11 + $0x48] sm:$0xff]
        %v964 = vld [vmem:[#allocation11 + $0x50] sm:$0xff]
        %v965 = vld [vmem:[#allocation11 + $0x58] sm:$0xff]
        %v966 = vld [vmem:[#allocation11 + $0x60] sm:$0xff]
        %v967 = vld [vmem:[#allocation11 + $0x68] sm:$0xff]
        %v968 = vld [vmem:[#allocation11 + $0x70] sm:$0xff]
        %v969 = vld [vmem:[#allocation11 + $0x78] sm:$0xff]
        %v970 = vld [vmem:[#allocation11 + $0x80] sm:$0xff]
        %v971 = vld [vmem:[#allocation11 + $0x88] sm:$0xff]
        %v972 = vld [vmem:[#allocation11 + $0x90] sm:$0xff]
        %v973 = vld [vmem:[#allocation11 + $0x98] sm:$0xff]
        %v974 = vld [vmem:[#allocation11 + $0xa0] sm:$0xff]
        %v975 = vld [vmem:[#allocation11 + $0xa8] sm:$0xff]
        %v976 = vld [vmem:[#allocation11 + $0xb0] sm:$0xff]
        %v977 = vld [vmem:[#allocation11 + $0xb8] sm:$0xff]
        %v978 = vld [vmem:[#allocation11 + $0xc0] sm:$0xff]
        %v979 = vld [vmem:[#allocation11 + $0xc8] sm:$0xff]
        %v980 = vld [vmem:[#allocation11 + $0xd0] sm:$0xff]
        %v981 = vld [vmem:[#allocation11 + $0xd8] sm:$0xff]
        %v982 = vld [vmem:[#allocation11 + $0xe0] sm:$0xff]
        %v983 = vld [vmem:[#allocation11 + $0xe8] sm:$0xff]
        %v984 = vld [vmem:[#allocation11 + $0xf0] sm:$0xff]
        %v985 = vld [vmem:[#allocation11 + $0xf8] sm:$0xff]
        %v986 = vld [vmem:[#allocation11 + $0x100] sm:$0xff]
        %v987 = vld [vmem:[#allocation11 + $0x108] sm:$0xff]
        %v988 = vld [vmem:[#allocation11 + $0x110] sm:$0xff]
        %v989 = vld [vmem:[#allocation11 + $0x118] sm:$0xff]
        %v990 = vld [vmem:[#allocation11 + $0x120] sm:$0xff]
        %v991 = vld [vmem:[#allocation11 + $0x128] sm:$0xff]
        %v992 = vld [vmem:[#allocation11 + $0x130] sm:$0xff]
        %v993 = vld [vmem:[#allocation11 + $0x138] sm:$0xff]
        %v994 = vld [vmem:[#allocation11 + $0x140] sm:$0xff]
        %v995 = vld [vmem:[#allocation11 + $0x148] sm:$0xff]
        %v996 = vld [vmem:[#allocation11 + $0x150] sm:$0xff]
        %v997 = vld [vmem:[#allocation11 + $0x158] sm:$0xff]
        %v998 = vld [vmem:[#allocation11 + $0x160] sm:$0xff]
        %v999 = vld [vmem:[#allocation11 + $0x168] sm:$0xff]
        %v1000 = vld [vmem:[#allocation11 + $0x170] sm:$0xff]
        %v1001 = vld [vmem:[#allocation11 + $0x178] sm:$0xff]
        %1002 = vmatpush.msra.mxu0 %v999
        %1003 = vmatpush.msra.mxu0 %v996
        %1004 = vmatpush.msra.mxu0 %v993
        %1005 = vmatpush.msra.mxu0 %v990
        %1006 = vmatpush.msra.mxu0 %v987
        %1007 = vmatpush.msra.mxu0 %v984
        %1008 = vmatpush.msra.mxu0 %v981
        %1009 = vmatpush.msra.mxu0 %v978
        %1010 = vmatpush.msra.mxu0 %v975
        %1011 = vmatpush.msra.mxu0 %v972
        %1012 = vmatpush.msra.mxu0 %v969
        %1013 = vmatpush.msra.mxu0 %v966
        %1014 = vmatpush.msra.mxu0 %v963
        %1015 = vmatpush.msra.mxu0 %v960
        %1016 = vmatpush.msra.mxu0 %v957
        %1017 = vmatpush.msra.mxu0 %v954
        %1018 = vmatmul.f32.gmra.mxu0 %v952
        %v1019 = vpop.f32.mrf.mxu0
        %v1020 = vadd.f32 0.0, %v1019
        %1021 = vmatmul.f32.gmra.mxu0 %v953
        %v1022 = vpop.f32.mrf.mxu0
        %v1023 = vadd.f32 0.0, %v1022
        %1024 = vdwg.mxu0
        %1025 = vmatpush.msra.mxu0 %v1000
        %1026 = vmatpush.msra.mxu0 %v997
        %1027 = vmatpush.msra.mxu0 %v994
        %1028 = vmatpush.msra.mxu0 %v991
        %1029 = vmatpush.msra.mxu0 %v988
        %1030 = vmatpush.msra.mxu0 %v985
        %1031 = vmatpush.msra.mxu0 %v982
        %1032 = vmatpush.msra.mxu0 %v979
        %1033 = vmatpush.msra.mxu0 %v976
        %1034 = vmatpush.msra.mxu0 %v973
        %1035 = vmatpush.msra.mxu0 %v970
        %1036 = vmatpush.msra.mxu0 %v967
        %1037 = vmatpush.msra.mxu0 %v964
        %1038 = vmatpush.msra.mxu0 %v961
        %1039 = vmatpush.msra.mxu0 %v958
        %1040 = vmatpush.msra.mxu0 %v955
        %1041 = vmatmul.f32.gmra.mxu0 %v952
        %v1042 = vpop.f32.mrf.mxu0
        %v1043 = vadd.f32 0.0, %v1042
        %1044 = vmatmul.f32.gmra.mxu0 %v953
        %v1045 = vpop.f32.mrf.mxu0
        %v1046 = vadd.f32 0.0, %v1045
        %1047 = vdwg.mxu0
        %1048 = vmatpush.msra.mxu0 %v1001
        %1049 = vmatpush.msra.mxu0 %v998
        %1050 = vmatpush.msra.mxu0 %v995
        %1051 = vmatpush.msra.mxu0 %v992
        %1052 = vmatpush.msra.mxu0 %v989
        %1053 = vmatpush.msra.mxu0 %v986
        %1054 = vmatpush.msra.mxu0 %v983
        %1055 = vmatpush.msra.mxu0 %v980
        %1056 = vmatpush.msra.mxu0 %v977
        %1057 = vmatpush.msra.mxu0 %v974
        %1058 = vmatpush.msra.mxu0 %v971
        %1059 = vmatpush.msra.mxu0 %v968
        %1060 = vmatpush.msra.mxu0 %v965
        %1061 = vmatpush.msra.mxu0 %v962
        %1062 = vmatpush.msra.mxu0 %v959
        %1063 = vmatpush.msra.mxu0 %v956
        %1064 = vmatmul.f32.gmra.mxu0 %v952
        %v1065 = vpop.f32.mrf.mxu0
        %v1066 = vadd.f32 0.0, %v1065
        %1067 = vmatmul.f32.gmra.mxu0 %v953
        %v1068 = vpop.f32.mrf.mxu0
        %v1069 = vadd.f32 0.0, %v1068
        %1070 = vdwg.mxu0
        %v1071 = vadd.f32 %v731, %v1020
        %v1072 = vadd.f32 %v734, %v1023
        %v1073 = vxor.u32 %v1071, 2147483648
        %v1074 = vxor.u32 %v1072, 2147483648
        %v1075 = vmul.f32 %v1073, 1.442695
        %v1076 = vpow.pop %v1075
        %v1077 = vmul.f32 %v1074, 1.442695
        %v1078 = vpow.pop %v1077
        %v1079 = vadd.f32 %v1076, 1.0
        %v1080 = vadd.f32 %v1078, 1.0
        %v1081 = vrcp.pop %v1079
        %v1082 = vmul.f32 %v1079, %v1081
        %v1083 = vsub.f32 1.0, %v1082
        %v1084 = vmul.f32 %v1081, %v1083
        %v1085 = vadd.f32 %v1081, %v1084
        %vm1086 = vweird.f32 %v1079
        %vm1087 = vweird.f32 %v1081
        %vm1088 = vmor %vm1086, %vm1087
        %v1089 = vsel %vm1088, %v1081, %v1085
        %v1090 = vand.u32 2147483647, %v1079
        %vm1091 = vcmp.eq.f32.partialorder %v1090, 8.507059e+37
        %v1092 = vand.u32 %v1079, 2147483648
        %v1093 = vor.u32 1.1754944e-38, %v1092
        %v1094 = vsel %vm1091, %v1093, %v1089
        %v1095 = vmul.f32 1.0, %v1094
        %v1096 = vrcp.pop %v1080
        %v1097 = vmul.f32 %v1080, %v1096
        %v1098 = vsub.f32 1.0, %v1097
        %v1099 = vmul.f32 %v1096, %v1098
        %v1100 = vadd.f32 %v1096, %v1099
        %vm1101 = vweird.f32 %v1080
        %vm1102 = vweird.f32 %v1096
        %vm1103 = vmor %vm1101, %vm1102
        %v1104 = vsel %vm1103, %v1096, %v1100
        %v1105 = vand.u32 2147483647, %v1080
        %vm1106 = vcmp.eq.f32.partialorder %v1105, 8.507059e+37
        %v1107 = vand.u32 %v1080, 2147483648
        %v1108 = vor.u32 1.1754944e-38, %v1107
        %v1109 = vsel %vm1106, %v1108, %v1104
        %v1110 = vmul.f32 1.0, %v1109
        %v1111 = vadd.f32 %v732, %v1043
        %v1112 = vadd.f32 %v735, %v1046
        %v1113 = vxor.u32 %v1111, 2147483648
        %v1114 = vxor.u32 %v1112, 2147483648
        %v1115 = vmul.f32 %v1113, 1.442695
        %v1116 = vpow.pop %v1115
        %v1117 = vmul.f32 %v1114, 1.442695
        %v1118 = vpow.pop %v1117
        %v1119 = vadd.f32 %v1116, 1.0
        %v1120 = vadd.f32 %v1118, 1.0
        %v1121 = vrcp.pop %v1119
        %v1122 = vmul.f32 %v1119, %v1121
        %v1123 = vsub.f32 1.0, %v1122
        %v1124 = vmul.f32 %v1121, %v1123
        %v1125 = vadd.f32 %v1121, %v1124
        %vm1126 = vweird.f32 %v1119
        %vm1127 = vweird.f32 %v1121
        %vm1128 = vmor %vm1126, %vm1127
        %v1129 = vsel %vm1128, %v1121, %v1125
        %v1130 = vand.u32 2147483647, %v1119
        %vm1131 = vcmp.eq.f32.partialorder %v1130, 8.507059e+37
        %v1132 = vand.u32 %v1119, 2147483648
        %v1133 = vor.u32 1.1754944e-38, %v1132
        %v1134 = vsel %vm1131, %v1133, %v1129
        %v1135 = vmul.f32 1.0, %v1134
        %v1136 = vrcp.pop %v1120
        %v1137 = vmul.f32 %v1120, %v1136
        %v1138 = vsub.f32 1.0, %v1137
        %v1139 = vmul.f32 %v1136, %v1138
        %v1140 = vadd.f32 %v1136, %v1139
        %vm1141 = vweird.f32 %v1120
        %vm1142 = vweird.f32 %v1136
        %vm1143 = vmor %vm1141, %vm1142
        %v1144 = vsel %vm1143, %v1136, %v1140
        %v1145 = vand.u32 2147483647, %v1120
        %vm1146 = vcmp.eq.f32.partialorder %v1145, 8.507059e+37
        %v1147 = vand.u32 %v1120, 2147483648
        %v1148 = vor.u32 1.1754944e-38, %v1147
        %v1149 = vsel %vm1146, %v1148, %v1144
        %v1150 = vmul.f32 1.0, %v1149
        %v1151 = vld [vmem:[%s10] sm:$0x1]
        %v1153 = vperm.slane %v1151, 0
        %v1155 = vadd.f32 %v1066, %v1153
        %v1156 = vadd.f32 %v1069, %v1153
        %v1157 = vmul.f32 %v1095, %v1155
        %v1158 = vmul.f32 %v1110, %v1156
        %v1159 = vadd.f32 %v733, %v1157
        %v1160 = vadd.f32 %v736, %v1158
        %v1161 = vtanh.pop %v1159
        %v1162 = vtanh.pop %v1160
        %v1163 = vsub.f32 1.0, %v1135
        %v1164 = vsub.f32 1.0, %v1150
        %v1165 = vmul.f32 %v1163, %v1161
        %v1166 = vmul.f32 %v1164, %v1162
        %v1167 = vmul.f32 %v1135, %v952
        %v1168 = vmul.f32 %v1150, %v953
        %v1169 = vadd.f32 %v1165, %v1167
        %v1170 = vadd.f32 %v1166, %v1168
        %v1171 = vld [vmem:[#allocation12] sm:$0xff]
        %v1172 = vld [vmem:[#allocation12 + $0x8] sm:$0xff]
        %v1173 = vld [vmem:[#allocation12 + $0x10] sm:$0xff]
        %v1174 = vld [vmem:[#allocation12 + $0x18] sm:$0xff]
        %v1175 = vld [vmem:[#allocation12 + $0x20] sm:$0xff]
        %v1176 = vld [vmem:[#allocation12 + $0x28] sm:$0xff]
        %v1177 = vld [vmem:[#allocation12 + $0x30] sm:$0xff]
        %v1178 = vld [vmem:[#allocation12 + $0x38] sm:$0xff]
        %v1179 = vld [vmem:[#allocation12 + $0x40] sm:$0xff]
        %v1180 = vld [vmem:[#allocation12 + $0x48] sm:$0xff]
        %v1181 = vld [vmem:[#allocation12 + $0x50] sm:$0xff]
        %v1182 = vld [vmem:[#allocation12 + $0x58] sm:$0xff]
        %v1183 = vld [vmem:[#allocation12 + $0x60] sm:$0xff]
        %v1184 = vld [vmem:[#allocation12 + $0x68] sm:$0xff]
        %v1185 = vld [vmem:[#allocation12 + $0x70] sm:$0xff]
        %v1186 = vld [vmem:[#allocation12 + $0x78] sm:$0xff]
        %v1187 = vld [vmem:[#allocation14] sm:$0xff]
        %v1188 = vld [vmem:[#allocation14 + $0x8] sm:$0xff]
        %v1189 = vld [vmem:[#allocation14 + $0x10] sm:$0xff]
        %v1190 = vld [vmem:[#allocation14 + $0x18] sm:$0xff]
        %v1191 = vld [vmem:[#allocation14 + $0x20] sm:$0xff]
        %v1192 = vld [vmem:[#allocation14 + $0x28] sm:$0xff]
        %v1193 = vld [vmem:[#allocation14 + $0x30] sm:$0xff]
        %v1194 = vld [vmem:[#allocation14 + $0x38] sm:$0xff]
        %v1195 = vld [vmem:[#allocation14 + $0x40] sm:$0xff]
        %v1196 = vld [vmem:[#allocation14 + $0x48] sm:$0xff]
        %v1197 = vld [vmem:[#allocation14 + $0x50] sm:$0xff]
        %v1198 = vld [vmem:[#allocation14 + $0x58] sm:$0xff]
        %v1199 = vld [vmem:[#allocation14 + $0x60] sm:$0xff]
        %v1200 = vld [vmem:[#allocation14 + $0x68] sm:$0xff]
        %v1201 = vld [vmem:[#allocation14 + $0x70] sm:$0xff]
        %v1202 = vld [vmem:[#allocation14 + $0x78] sm:$0xff]
        %1203 = vmatpush.msra.mxu0 %v1202
        %1204 = vmatpush.msra.mxu0 %v1201
        %1205 = vmatpush.msra.mxu0 %v1200
        %1206 = vmatpush.msra.mxu0 %v1199
        %1207 = vmatpush.msra.mxu0 %v1198
        %1208 = vmatpush.msra.mxu0 %v1197
        %1209 = vmatpush.msra.mxu0 %v1196
        %1210 = vmatpush.msra.mxu0 %v1195
        %1211 = vmatpush.msra.mxu0 %v1194
        %1212 = vmatpush.msra.mxu0 %v1193
        %1213 = vmatpush.msra.mxu0 %v1192
        %1214 = vmatpush.msra.mxu0 %v1191
        %1215 = vmatpush.msra.mxu0 %v1190
        %1216 = vmatpush.msra.mxu0 %v1189
        %1217 = vmatpush.msra.mxu0 %v1188
        %1218 = vmatpush.msra.mxu0 %v1187
        %1219 = vmatmul.f32.gmra.mxu0 %v1169
        %v1220 = vpop.f32.mrf.mxu0
        %v1221 = vadd.f32 0.0, %v1220
        %1222 = vmatmul.f32.gmra.mxu0 %v1170
        %v1223 = vpop.f32.mrf.mxu0
        %v1224 = vadd.f32 0.0, %v1223
        %1225 = vdwg.mxu0
        %1226 = vmatpush.msra.mxu0 %v1186
        %1227 = vmatpush.msra.mxu0 %v1185
        %1228 = vmatpush.msra.mxu0 %v1184
        %1229 = vmatpush.msra.mxu0 %v1183
        %1230 = vmatpush.msra.mxu0 %v1182
        %1231 = vmatpush.msra.mxu0 %v1181
        %1232 = vmatpush.msra.mxu0 %v1180
        %1233 = vmatpush.msra.mxu0 %v1179
        %1234 = vmatpush.msra.mxu0 %v1178
        %1235 = vmatpush.msra.mxu0 %v1177
        %1236 = vmatpush.msra.mxu0 %v1176
        %1237 = vmatpush.msra.mxu0 %v1175
        %1238 = vmatpush.msra.mxu0 %v1174
        %1239 = vmatpush.msra.mxu0 %v1173
        %1240 = vmatpush.msra.mxu0 %v1172
        %1241 = vmatpush.msra.mxu0 %v1171
        %1242 = vmatmul.f32.gmra.mxu0 %v952
        %v1243 = vpop.f32.mrf.mxu0
        %v1244 = vadd.f32 %v1221, %v1243
        %1245 = vmatmul.f32.gmra.mxu0 %v953
        %v1246 = vpop.f32.mrf.mxu0
        %v1247 = vadd.f32 %v1224, %v1246
        %1248 = vdwg.mxu0
        %v1249 = vld [vmem:[%s11] sm:$0x1]
        %v1251 = vperm.slane %v1249, 0
        %v1253 = vadd.f32 %v1244, %v1251
        %v1254 = vadd.f32 %v1247, %v1251
        %v1255 = vmax.f32 %v1253, 0.0
        %v1256 = vmax.f32 %v1254, 0.0
        %v1257 = vld [vmem:[#allocation15] sm:$0xff]
        %v1258 = vld [vmem:[#allocation15 + $0x8] sm:$0xff]
        %v1259 = vld [vmem:[#allocation15 + $0x10] sm:$0xff]
        %v1260 = vld [vmem:[#allocation15 + $0x18] sm:$0xff]
        %v1261 = vld [vmem:[#allocation15 + $0x20] sm:$0xff]
        %v1262 = vld [vmem:[#allocation15 + $0x28] sm:$0xff]
        %v1263 = vld [vmem:[#allocation15 + $0x30] sm:$0xff]
        %v1264 = vld [vmem:[#allocation15 + $0x38] sm:$0xff]
        %v1265 = vld [vmem:[#allocation15 + $0x40] sm:$0xff]
        %v1266 = vld [vmem:[#allocation15 + $0x48] sm:$0xff]
        %v1267 = vld [vmem:[#allocation15 + $0x50] sm:$0xff]
        %v1268 = vld [vmem:[#allocation15 + $0x58] sm:$0xff]
        %v1269 = vld [vmem:[#allocation15 + $0x60] sm:$0xff]
        %v1270 = vld [vmem:[#allocation15 + $0x68] sm:$0xff]
        %v1271 = vld [vmem:[#allocation15 + $0x70] sm:$0xff]
        %v1272 = vld [vmem:[#allocation15 + $0x78] sm:$0xff]
        %v1273 = vld [vmem:[#allocation15 + $0x80] sm:$0xff]
        %v1274 = vld [vmem:[#allocation15 + $0x88] sm:$0xff]
        %v1275 = vld [vmem:[#allocation15 + $0x90] sm:$0xff]
        %v1276 = vld [vmem:[#allocation15 + $0x98] sm:$0xff]
        %v1277 = vld [vmem:[#allocation15 + $0xa0] sm:$0xff]
        %v1278 = vld [vmem:[#allocation15 + $0xa8] sm:$0xff]
        %v1279 = vld [vmem:[#allocation15 + $0xb0] sm:$0xff]
        %v1280 = vld [vmem:[#allocation15 + $0xb8] sm:$0xff]
        %v1281 = vld [vmem:[#allocation15 + $0xc0] sm:$0xff]
        %v1282 = vld [vmem:[#allocation15 + $0xc8] sm:$0xff]
        %v1283 = vld [vmem:[#allocation15 + $0xd0] sm:$0xff]
        %v1284 = vld [vmem:[#allocation15 + $0xd8] sm:$0xff]
        %v1285 = vld [vmem:[#allocation15 + $0xe0] sm:$0xff]
        %v1286 = vld [vmem:[#allocation15 + $0xe8] sm:$0xff]
        %v1287 = vld [vmem:[#allocation15 + $0xf0] sm:$0xff]
        %v1288 = vld [vmem:[#allocation15 + $0xf8] sm:$0xff]
        %v1289 = vld [vmem:[#allocation15 + $0x100] sm:$0xff]
        %v1290 = vld [vmem:[#allocation15 + $0x108] sm:$0xff]
        %v1291 = vld [vmem:[#allocation15 + $0x110] sm:$0xff]
        %v1292 = vld [vmem:[#allocation15 + $0x118] sm:$0xff]
        %v1293 = vld [vmem:[#allocation15 + $0x120] sm:$0xff]
        %v1294 = vld [vmem:[#allocation15 + $0x128] sm:$0xff]
        %v1295 = vld [vmem:[#allocation15 + $0x130] sm:$0xff]
        %v1296 = vld [vmem:[#allocation15 + $0x138] sm:$0xff]
        %v1297 = vld [vmem:[#allocation15 + $0x140] sm:$0xff]
        %v1298 = vld [vmem:[#allocation15 + $0x148] sm:$0xff]
        %v1299 = vld [vmem:[#allocation15 + $0x150] sm:$0xff]
        %v1300 = vld [vmem:[#allocation15 + $0x158] sm:$0xff]
        %v1301 = vld [vmem:[#allocation15 + $0x160] sm:$0xff]
        %v1302 = vld [vmem:[#allocation15 + $0x168] sm:$0xff]
        %v1303 = vld [vmem:[#allocation15 + $0x170] sm:$0xff]
        %v1304 = vld [vmem:[#allocation15 + $0x178] sm:$0xff]
        %v1305 = vld [vmem:[#allocation15 + $0x180] sm:$0xff]
        %v1306 = vld [vmem:[#allocation15 + $0x188] sm:$0xff]
        %v1307 = vld [vmem:[#allocation15 + $0x190] sm:$0xff]
        %v1308 = vld [vmem:[#allocation15 + $0x198] sm:$0xff]
        %v1309 = vld [vmem:[#allocation15 + $0x1a0] sm:$0xff]
        %v1310 = vld [vmem:[#allocation15 + $0x1a8] sm:$0xff]
        %v1311 = vld [vmem:[#allocation15 + $0x1b0] sm:$0xff]
        %v1312 = vld [vmem:[#allocation15 + $0x1b8] sm:$0xff]
        %v1313 = vld [vmem:[#allocation15 + $0x1c0] sm:$0xff]
        %v1314 = vld [vmem:[#allocation15 + $0x1c8] sm:$0xff]
        %v1315 = vld [vmem:[#allocation15 + $0x1d0] sm:$0xff]
        %v1316 = vld [vmem:[#allocation15 + $0x1d8] sm:$0xff]
        %v1317 = vld [vmem:[#allocation15 + $0x1e0] sm:$0xff]
        %v1318 = vld [vmem:[#allocation15 + $0x1e8] sm:$0xff]
        %v1319 = vld [vmem:[#allocation15 + $0x1f0] sm:$0xff]
        %v1320 = vld [vmem:[#allocation15 + $0x1f8] sm:$0xff]
        %v1321 = vld [vmem:[#allocation15 + $0x200] sm:$0xff]
        %v1322 = vld [vmem:[#allocation15 + $0x208] sm:$0xff]
        %v1323 = vld [vmem:[#allocation15 + $0x210] sm:$0xff]
        %v1324 = vld [vmem:[#allocation15 + $0x218] sm:$0xff]
        %v1325 = vld [vmem:[#allocation15 + $0x220] sm:$0xff]
        %v1326 = vld [vmem:[#allocation15 + $0x228] sm:$0xff]
        %v1327 = vld [vmem:[#allocation15 + $0x230] sm:$0xff]
        %v1328 = vld [vmem:[#allocation15 + $0x238] sm:$0xff]
        %v1329 = vld [vmem:[#allocation15 + $0x240] sm:$0xff]
        %v1330 = vld [vmem:[#allocation15 + $0x248] sm:$0xff]
        %v1331 = vld [vmem:[#allocation15 + $0x250] sm:$0xff]
        %v1332 = vld [vmem:[#allocation15 + $0x258] sm:$0xff]
        %v1333 = vld [vmem:[#allocation15 + $0x260] sm:$0xff]
        %v1334 = vld [vmem:[#allocation15 + $0x268] sm:$0xff]
        %v1335 = vld [vmem:[#allocation15 + $0x270] sm:$0xff]
        %v1336 = vld [vmem:[#allocation15 + $0x278] sm:$0xff]
        %v1337 = vld [vmem:[#allocation15 + $0x280] sm:$0xff]
        %v1338 = vld [vmem:[#allocation15 + $0x288] sm:$0xff]
        %v1339 = vld [vmem:[#allocation15 + $0x290] sm:$0xff]
        %v1340 = vld [vmem:[#allocation15 + $0x298] sm:$0xff]
        %v1341 = vld [vmem:[#allocation15 + $0x2a0] sm:$0xff]
        %v1342 = vld [vmem:[#allocation15 + $0x2a8] sm:$0xff]
        %v1343 = vld [vmem:[#allocation15 + $0x2b0] sm:$0xff]
        %v1344 = vld [vmem:[#allocation15 + $0x2b8] sm:$0xff]
        %v1345 = vld [vmem:[#allocation15 + $0x2c0] sm:$0xff]
        %v1346 = vld [vmem:[#allocation15 + $0x2c8] sm:$0xff]
        %v1347 = vld [vmem:[#allocation15 + $0x2d0] sm:$0xff]
        %v1348 = vld [vmem:[#allocation15 + $0x2d8] sm:$0xff]
        %v1349 = vld [vmem:[#allocation15 + $0x2e0] sm:$0xff]
        %v1350 = vld [vmem:[#allocation15 + $0x2e8] sm:$0xff]
        %v1351 = vld [vmem:[#allocation15 + $0x2f0] sm:$0xff]
        %v1352 = vld [vmem:[#allocation15 + $0x2f8] sm:$0xff]
        %v1353 = vld [vmem:[#allocation15 + $0x300] sm:$0xff]
        %v1354 = vld [vmem:[#allocation15 + $0x308] sm:$0xff]
        %v1355 = vld [vmem:[#allocation15 + $0x310] sm:$0xff]
        %v1356 = vld [vmem:[#allocation15 + $0x318] sm:$0xff]
        %v1357 = vld [vmem:[#allocation15 + $0x320] sm:$0xff]
        %v1358 = vld [vmem:[#allocation15 + $0x328] sm:$0xff]
        %v1359 = vld [vmem:[#allocation15 + $0x330] sm:$0xff]
        %v1360 = vld [vmem:[#allocation15 + $0x338] sm:$0xff]
        %v1361 = vld [vmem:[#allocation15 + $0x340] sm:$0xff]
        %v1362 = vld [vmem:[#allocation15 + $0x348] sm:$0xff]
        %v1363 = vld [vmem:[#allocation15 + $0x350] sm:$0xff]
        %v1364 = vld [vmem:[#allocation15 + $0x358] sm:$0xff]
        %v1365 = vld [vmem:[#allocation15 + $0x360] sm:$0xff]
        %v1366 = vld [vmem:[#allocation15 + $0x368] sm:$0xff]
        %v1367 = vld [vmem:[#allocation15 + $0x370] sm:$0xff]
        %v1368 = vld [vmem:[#allocation15 + $0x378] sm:$0xff]
        %v1369 = vld [vmem:[#allocation15 + $0x380] sm:$0xff]
        %v1370 = vld [vmem:[#allocation15 + $0x388] sm:$0xff]
        %v1371 = vld [vmem:[#allocation15 + $0x390] sm:$0xff]
        %v1372 = vld [vmem:[#allocation15 + $0x398] sm:$0xff]
        %v1373 = vld [vmem:[#allocation15 + $0x3a0] sm:$0xff]
        %v1374 = vld [vmem:[#allocation15 + $0x3a8] sm:$0xff]
        %v1375 = vld [vmem:[#allocation15 + $0x3b0] sm:$0xff]
        %v1376 = vld [vmem:[#allocation15 + $0x3b8] sm:$0xff]
        %v1377 = vld [vmem:[#allocation15 + $0x3c0] sm:$0xff]
        %v1378 = vld [vmem:[#allocation15 + $0x3c8] sm:$0xff]
        %v1379 = vld [vmem:[#allocation15 + $0x3d0] sm:$0xff]
        %v1380 = vld [vmem:[#allocation15 + $0x3d8] sm:$0xff]
        %v1381 = vld [vmem:[#allocation15 + $0x3e0] sm:$0xff]
        %v1382 = vld [vmem:[#allocation15 + $0x3e8] sm:$0xff]
        %v1383 = vld [vmem:[#allocation15 + $0x3f0] sm:$0xff]
        %v1384 = vld [vmem:[#allocation15 + $0x3f8] sm:$0xff]
        %v1385 = vld [vmem:[#allocation15 + $0x400] sm:$0xff]
        %v1386 = vld [vmem:[#allocation15 + $0x408] sm:$0xff]
        %v1387 = vld [vmem:[#allocation15 + $0x410] sm:$0xff]
        %v1388 = vld [vmem:[#allocation15 + $0x418] sm:$0xff]
        %v1389 = vld [vmem:[#allocation15 + $0x420] sm:$0xff]
        %v1390 = vld [vmem:[#allocation15 + $0x428] sm:$0xff]
        %v1391 = vld [vmem:[#allocation15 + $0x430] sm:$0xff]
        %v1392 = vld [vmem:[#allocation15 + $0x438] sm:$0xff]
        %v1393 = vld [vmem:[#allocation15 + $0x440] sm:$0xff]
        %v1394 = vld [vmem:[#allocation15 + $0x448] sm:$0xff]
        %v1395 = vld [vmem:[#allocation15 + $0x450] sm:$0xff]
        %v1396 = vld [vmem:[#allocation15 + $0x458] sm:$0xff]
        %v1397 = vld [vmem:[#allocation15 + $0x460] sm:$0xff]
        %v1398 = vld [vmem:[#allocation15 + $0x468] sm:$0xff]
        %v1399 = vld [vmem:[#allocation15 + $0x470] sm:$0xff]
        %v1400 = vld [vmem:[#allocation15 + $0x478] sm:$0xff]
        %v1401 = vld [vmem:[#allocation15 + $0x480] sm:$0xff]
        %v1402 = vld [vmem:[#allocation15 + $0x488] sm:$0xff]
        %v1403 = vld [vmem:[#allocation15 + $0x490] sm:$0xff]
        %v1404 = vld [vmem:[#allocation15 + $0x498] sm:$0xff]
        %v1405 = vld [vmem:[#allocation15 + $0x4a0] sm:$0xff]
        %v1406 = vld [vmem:[#allocation15 + $0x4a8] sm:$0xff]
        %v1407 = vld [vmem:[#allocation15 + $0x4b0] sm:$0xff]
        %v1408 = vld [vmem:[#allocation15 + $0x4b8] sm:$0xff]
        %v1409 = vld [vmem:[#allocation15 + $0x4c0] sm:$0xff]
        %v1410 = vld [vmem:[#allocation15 + $0x4c8] sm:$0xff]
        %v1411 = vld [vmem:[#allocation15 + $0x4d0] sm:$0xff]
        %v1412 = vld [vmem:[#allocation15 + $0x4d8] sm:$0xff]
        %v1413 = vld [vmem:[#allocation15 + $0x4e0] sm:$0xff]
        %v1414 = vld [vmem:[#allocation15 + $0x4e8] sm:$0xff]
        %v1415 = vld [vmem:[#allocation15 + $0x4f0] sm:$0xff]
        %v1416 = vld [vmem:[#allocation15 + $0x4f8] sm:$0xff]
        %v1417 = vld [vmem:[#allocation15 + $0x500] sm:$0xff]
        %v1418 = vld [vmem:[#allocation15 + $0x508] sm:$0xff]
        %v1419 = vld [vmem:[#allocation15 + $0x510] sm:$0xff]
        %v1420 = vld [vmem:[#allocation15 + $0x518] sm:$0xff]
        %v1421 = vld [vmem:[#allocation15 + $0x520] sm:$0xff]
        %v1422 = vld [vmem:[#allocation15 + $0x528] sm:$0xff]
        %v1423 = vld [vmem:[#allocation15 + $0x530] sm:$0xff]
        %v1424 = vld [vmem:[#allocation15 + $0x538] sm:$0xff]
        %v1425 = vld [vmem:[#allocation15 + $0x540] sm:$0xff]
        %v1426 = vld [vmem:[#allocation15 + $0x548] sm:$0xff]
        %v1427 = vld [vmem:[#allocation15 + $0x550] sm:$0xff]
        %v1428 = vld [vmem:[#allocation15 + $0x558] sm:$0xff]
        %v1429 = vld [vmem:[#allocation15 + $0x560] sm:$0xff]
        %v1430 = vld [vmem:[#allocation15 + $0x568] sm:$0xff]
        %v1431 = vld [vmem:[#allocation15 + $0x570] sm:$0xff]
        %v1432 = vld [vmem:[#allocation15 + $0x578] sm:$0xff]
        %v1433 = vld [vmem:[#allocation15 + $0x580] sm:$0xff]
        %v1434 = vld [vmem:[#allocation15 + $0x588] sm:$0xff]
        %v1435 = vld [vmem:[#allocation15 + $0x590] sm:$0xff]
        %v1436 = vld [vmem:[#allocation15 + $0x598] sm:$0xff]
        %v1437 = vld [vmem:[#allocation15 + $0x5a0] sm:$0xff]
        %v1438 = vld [vmem:[#allocation15 + $0x5a8] sm:$0xff]
        %v1439 = vld [vmem:[#allocation15 + $0x5b0] sm:$0xff]
        %v1440 = vld [vmem:[#allocation15 + $0x5b8] sm:$0xff]
        %v1441 = vld [vmem:[#allocation15 + $0x5c0] sm:$0xff]
        %v1442 = vld [vmem:[#allocation15 + $0x5c8] sm:$0xff]
        %v1443 = vld [vmem:[#allocation15 + $0x5d0] sm:$0xff]
        %v1444 = vld [vmem:[#allocation15 + $0x5d8] sm:$0xff]
        %v1445 = vld [vmem:[#allocation15 + $0x5e0] sm:$0xff]
        %v1446 = vld [vmem:[#allocation15 + $0x5e8] sm:$0xff]
        %v1447 = vld [vmem:[#allocation15 + $0x5f0] sm:$0xff]
        %v1448 = vld [vmem:[#allocation15 + $0x5f8] sm:$0xff]
        %v1449 = vld [vmem:[#allocation15 + $0x600] sm:$0xff]
        %v1450 = vld [vmem:[#allocation15 + $0x608] sm:$0xff]
        %v1451 = vld [vmem:[#allocation15 + $0x610] sm:$0xff]
        %v1452 = vld [vmem:[#allocation15 + $0x618] sm:$0xff]
        %v1453 = vld [vmem:[#allocation15 + $0x620] sm:$0xff]
        %v1454 = vld [vmem:[#allocation15 + $0x628] sm:$0xff]
        %v1455 = vld [vmem:[#allocation15 + $0x630] sm:$0xff]
        %v1456 = vld [vmem:[#allocation15 + $0x638] sm:$0xff]
        %v1457 = vld [vmem:[#allocation15 + $0x640] sm:$0xff]
        %v1458 = vld [vmem:[#allocation15 + $0x648] sm:$0xff]
        %v1459 = vld [vmem:[#allocation15 + $0x650] sm:$0xff]
        %v1460 = vld [vmem:[#allocation15 + $0x658] sm:$0xff]
        %v1461 = vld [vmem:[#allocation15 + $0x660] sm:$0xff]
        %v1462 = vld [vmem:[#allocation15 + $0x668] sm:$0xff]
        %v1463 = vld [vmem:[#allocation15 + $0x670] sm:$0xff]
        %v1464 = vld [vmem:[#allocation15 + $0x678] sm:$0xff]
        %v1465 = vld [vmem:[#allocation15 + $0x680] sm:$0xff]
        %v1466 = vld [vmem:[#allocation15 + $0x688] sm:$0xff]
        %v1467 = vld [vmem:[#allocation15 + $0x690] sm:$0xff]
        %v1468 = vld [vmem:[#allocation15 + $0x698] sm:$0xff]
        %v1469 = vld [vmem:[#allocation15 + $0x6a0] sm:$0xff]
        %v1470 = vld [vmem:[#allocation15 + $0x6a8] sm:$0xff]
        %v1471 = vld [vmem:[#allocation15 + $0x6b0] sm:$0xff]
        %v1472 = vld [vmem:[#allocation15 + $0x6b8] sm:$0xff]
        %v1473 = vld [vmem:[#allocation15 + $0x6c0] sm:$0xff]
        %v1474 = vld [vmem:[#allocation15 + $0x6c8] sm:$0xff]
        %v1475 = vld [vmem:[#allocation15 + $0x6d0] sm:$0xff]
        %v1476 = vld [vmem:[#allocation15 + $0x6d8] sm:$0xff]
        %v1477 = vld [vmem:[#allocation15 + $0x6e0] sm:$0xff]
        %v1478 = vld [vmem:[#allocation15 + $0x6e8] sm:$0xff]
        %v1479 = vld [vmem:[#allocation15 + $0x6f0] sm:$0xff]
        %v1480 = vld [vmem:[#allocation15 + $0x6f8] sm:$0xff]
        %v1481 = vld [vmem:[#allocation15 + $0x700] sm:$0xff]
        %v1482 = vld [vmem:[#allocation15 + $0x708] sm:$0xff]
        %v1483 = vld [vmem:[#allocation15 + $0x710] sm:$0xff]
        %v1484 = vld [vmem:[#allocation15 + $0x718] sm:$0xff]
        %v1485 = vld [vmem:[#allocation15 + $0x720] sm:$0xff]
        %v1486 = vld [vmem:[#allocation15 + $0x728] sm:$0xff]
        %v1487 = vld [vmem:[#allocation15 + $0x730] sm:$0xff]
        %v1488 = vld [vmem:[#allocation15 + $0x738] sm:$0xff]
        %v1489 = vld [vmem:[#allocation15 + $0x740] sm:$0xff]
        %v1490 = vld [vmem:[#allocation15 + $0x748] sm:$0xff]
        %v1491 = vld [vmem:[#allocation15 + $0x750] sm:$0xff]
        %v1492 = vld [vmem:[#allocation15 + $0x758] sm:$0xff]
        %v1493 = vld [vmem:[#allocation15 + $0x760] sm:$0xff]
        %v1494 = vld [vmem:[#allocation15 + $0x768] sm:$0xff]
        %v1495 = vld [vmem:[#allocation15 + $0x770] sm:$0xff]
        %v1496 = vld [vmem:[#allocation15 + $0x778] sm:$0xff]
        %v1497 = vld [vmem:[#allocation15 + $0x780] sm:$0xff]
        %v1498 = vld [vmem:[#allocation15 + $0x788] sm:$0xff]
        %v1499 = vld [vmem:[#allocation15 + $0x790] sm:$0xff]
        %v1500 = vld [vmem:[#allocation15 + $0x798] sm:$0xff]
        %v1501 = vld [vmem:[#allocation15 + $0x7a0] sm:$0xff]
        %v1502 = vld [vmem:[#allocation15 + $0x7a8] sm:$0xff]
        %v1503 = vld [vmem:[#allocation15 + $0x7b0] sm:$0xff]
        %v1504 = vld [vmem:[#allocation15 + $0x7b8] sm:$0xff]
        %v1505 = vld [vmem:[#allocation15 + $0x7c0] sm:$0xff]
        %v1506 = vld [vmem:[#allocation15 + $0x7c8] sm:$0xff]
        %v1507 = vld [vmem:[#allocation15 + $0x7d0] sm:$0xff]
        %v1508 = vld [vmem:[#allocation15 + $0x7d8] sm:$0xff]
        %v1509 = vld [vmem:[#allocation15 + $0x7e0] sm:$0xff]
        %v1510 = vld [vmem:[#allocation15 + $0x7e8] sm:$0xff]
        %v1511 = vld [vmem:[#allocation15 + $0x7f0] sm:$0xff]
        %v1512 = vld [vmem:[#allocation15 + $0x7f8] sm:$0xff]
        %v1513 = vld [vmem:[#allocation18] sm:$0xff]
        %v1514 = vld [vmem:[#allocation18 + $0x8] sm:$0xff]
        %v1517 = vperm.slane %v1513, 0
        %v1518 = vperm.slane %v1513, 1
        %v1519 = vperm.slane %v1513, 2
        %v1520 = vperm.slane %v1513, 3
        %v1521 = vperm.slane %v1513, 4
        %v1522 = vperm.slane %v1513, 5
        %v1523 = vperm.slane %v1513, 6
        %v1524 = vperm.slane %v1513, 7
        %v1525 = vperm.slane %v1514, 0
        %v1526 = vperm.slane %v1514, 1
        %v1527 = vperm.slane %v1514, 2
        %v1528 = vperm.slane %v1514, 3
        %v1529 = vperm.slane %v1514, 4
        %v1530 = vperm.slane %v1514, 5
        %v1531 = vperm.slane %v1514, 6
        %v1532 = vperm.slane %v1514, 7
        %1549 = vmatpush.msra.mxu0 %v1497
        %1550 = vmatpush.msra.mxu0 %v1481
        %1551 = vmatpush.msra.mxu0 %v1465
        %1552 = vmatpush.msra.mxu0 %v1449
        %1553 = vmatpush.msra.mxu0 %v1433
        %1554 = vmatpush.msra.mxu0 %v1417
        %1555 = vmatpush.msra.mxu0 %v1401
        %1556 = vmatpush.msra.mxu0 %v1385
        %1557 = vmatpush.msra.mxu0 %v1369
        %1558 = vmatpush.msra.mxu0 %v1353
        %1559 = vmatpush.msra.mxu0 %v1337
        %1560 = vmatpush.msra.mxu0 %v1321
        %1561 = vmatpush.msra.mxu0 %v1305
        %1562 = vmatpush.msra.mxu0 %v1289
        %1563 = vmatpush.msra.mxu0 %v1273
        %1564 = vmatpush.msra.mxu0 %v1257
        %1565 = vmatmul.f32.gmra.mxu0 %v1255
        %v1566 = vpop.f32.mrf.mxu0
        %v1567 = vadd.f32 %v1517, %v1566
        %1568 = vmatmul.f32.gmra.mxu0 %v1256
        %v1569 = vpop.f32.mrf.mxu0
        %v1570 = vadd.f32 %v1517, %v1569
        %1571 = vdwg.mxu0
        %1572 = vmatpush.msra.mxu0 %v1498
        %1573 = vmatpush.msra.mxu0 %v1482
        %1574 = vmatpush.msra.mxu0 %v1466
        %1575 = vmatpush.msra.mxu0 %v1450
        %1576 = vmatpush.msra.mxu0 %v1434
        %1577 = vmatpush.msra.mxu0 %v1418
        %1578 = vmatpush.msra.mxu0 %v1402
        %1579 = vmatpush.msra.mxu0 %v1386
        %1580 = vmatpush.msra.mxu0 %v1370
        %1581 = vmatpush.msra.mxu0 %v1354
        %1582 = vmatpush.msra.mxu0 %v1338
        %1583 = vmatpush.msra.mxu0 %v1322
        %1584 = vmatpush.msra.mxu0 %v1306
        %1585 = vmatpush.msra.mxu0 %v1290
        %1586 = vmatpush.msra.mxu0 %v1274
        %1587 = vmatpush.msra.mxu0 %v1258
        %1588 = vmatmul.f32.gmra.mxu0 %v1255
        %v1589 = vpop.f32.mrf.mxu0
        %v1590 = vadd.f32 %v1518, %v1589
        %1591 = vmatmul.f32.gmra.mxu0 %v1256
        %v1592 = vpop.f32.mrf.mxu0
        %v1593 = vadd.f32 %v1518, %v1592
        %1594 = vdwg.mxu0
        %1595 = vmatpush.msra.mxu0 %v1499
        %1596 = vmatpush.msra.mxu0 %v1483
        %1597 = vmatpush.msra.mxu0 %v1467
        %1598 = vmatpush.msra.mxu0 %v1451
        %1599 = vmatpush.msra.mxu0 %v1435
        %1600 = vmatpush.msra.mxu0 %v1419
        %1601 = vmatpush.msra.mxu0 %v1403
        %1602 = vmatpush.msra.mxu0 %v1387
        %1603 = vmatpush.msra.mxu0 %v1371
        %1604 = vmatpush.msra.mxu0 %v1355
        %1605 = vmatpush.msra.mxu0 %v1339
        %1606 = vmatpush.msra.mxu0 %v1323
        %1607 = vmatpush.msra.mxu0 %v1307
        %1608 = vmatpush.msra.mxu0 %v1291
        %1609 = vmatpush.msra.mxu0 %v1275
        %1610 = vmatpush.msra.mxu0 %v1259
        %1611 = vmatmul.f32.gmra.mxu0 %v1255
        %v1612 = vpop.f32.mrf.mxu0
        %v1613 = vadd.f32 %v1519, %v1612
        %1614 = vmatmul.f32.gmra.mxu0 %v1256
        %v1615 = vpop.f32.mrf.mxu0
        %v1616 = vadd.f32 %v1519, %v1615
        %1617 = vdwg.mxu0
        %1618 = vmatpush.msra.mxu0 %v1500
        %1619 = vmatpush.msra.mxu0 %v1484
        %1620 = vmatpush.msra.mxu0 %v1468
        %1621 = vmatpush.msra.mxu0 %v1452
        %1622 = vmatpush.msra.mxu0 %v1436
        %1623 = vmatpush.msra.mxu0 %v1420
        %1624 = vmatpush.msra.mxu0 %v1404
        %1625 = vmatpush.msra.mxu0 %v1388
        %1626 = vmatpush.msra.mxu0 %v1372
        %1627 = vmatpush.msra.mxu0 %v1356
        %1628 = vmatpush.msra.mxu0 %v1340
        %1629 = vmatpush.msra.mxu0 %v1324
        %1630 = vmatpush.msra.mxu0 %v1308
        %1631 = vmatpush.msra.mxu0 %v1292
        %1632 = vmatpush.msra.mxu0 %v1276
        %1633 = vmatpush.msra.mxu0 %v1260
        %1634 = vmatmul.f32.gmra.mxu0 %v1255
        %v1635 = vpop.f32.mrf.mxu0
        %v1636 = vadd.f32 %v1520, %v1635
        %1637 = vmatmul.f32.gmra.mxu0 %v1256
        %v1638 = vpop.f32.mrf.mxu0
        %v1639 = vadd.f32 %v1520, %v1638
        %1640 = vdwg.mxu0
        %1641 = vmatpush.msra.mxu0 %v1501
        %1642 = vmatpush.msra.mxu0 %v1485
        %1643 = vmatpush.msra.mxu0 %v1469
        %1644 = vmatpush.msra.mxu0 %v1453
        %1645 = vmatpush.msra.mxu0 %v1437
        %1646 = vmatpush.msra.mxu0 %v1421
        %1647 = vmatpush.msra.mxu0 %v1405
        %1648 = vmatpush.msra.mxu0 %v1389
        %1649 = vmatpush.msra.mxu0 %v1373
        %1650 = vmatpush.msra.mxu0 %v1357
        %1651 = vmatpush.msra.mxu0 %v1341
        %1652 = vmatpush.msra.mxu0 %v1325
        %1653 = vmatpush.msra.mxu0 %v1309
        %1654 = vmatpush.msra.mxu0 %v1293
        %1655 = vmatpush.msra.mxu0 %v1277
        %1656 = vmatpush.msra.mxu0 %v1261
        %1657 = vmatmul.f32.gmra.mxu0 %v1255
        %v1658 = vpop.f32.mrf.mxu0
        %v1659 = vadd.f32 %v1521, %v1658
        %1660 = vmatmul.f32.gmra.mxu0 %v1256
        %v1661 = vpop.f32.mrf.mxu0
        %v1662 = vadd.f32 %v1521, %v1661
        %1663 = vdwg.mxu0
        %1664 = vmatpush.msra.mxu0 %v1502
        %1665 = vmatpush.msra.mxu0 %v1486
        %1666 = vmatpush.msra.mxu0 %v1470
        %1667 = vmatpush.msra.mxu0 %v1454
        %1668 = vmatpush.msra.mxu0 %v1438
        %1669 = vmatpush.msra.mxu0 %v1422
        %1670 = vmatpush.msra.mxu0 %v1406
        %1671 = vmatpush.msra.mxu0 %v1390
        %1672 = vmatpush.msra.mxu0 %v1374
        %1673 = vmatpush.msra.mxu0 %v1358
        %1674 = vmatpush.msra.mxu0 %v1342
        %1675 = vmatpush.msra.mxu0 %v1326
        %1676 = vmatpush.msra.mxu0 %v1310
        %1677 = vmatpush.msra.mxu0 %v1294
        %1678 = vmatpush.msra.mxu0 %v1278
        %1679 = vmatpush.msra.mxu0 %v1262
        %1680 = vmatmul.f32.gmra.mxu0 %v1255
        %v1681 = vpop.f32.mrf.mxu0
        %v1682 = vadd.f32 %v1522, %v1681
        %1683 = vmatmul.f32.gmra.mxu0 %v1256
        %v1684 = vpop.f32.mrf.mxu0
        %v1685 = vadd.f32 %v1522, %v1684
        %1686 = vdwg.mxu0
        %1687 = vmatpush.msra.mxu0 %v1503
        %1688 = vmatpush.msra.mxu0 %v1487
        %1689 = vmatpush.msra.mxu0 %v1471
        %1690 = vmatpush.msra.mxu0 %v1455
        %1691 = vmatpush.msra.mxu0 %v1439
        %1692 = vmatpush.msra.mxu0 %v1423
        %1693 = vmatpush.msra.mxu0 %v1407
        %1694 = vmatpush.msra.mxu0 %v1391
        %1695 = vmatpush.msra.mxu0 %v1375
        %1696 = vmatpush.msra.mxu0 %v1359
        %1697 = vmatpush.msra.mxu0 %v1343
        %1698 = vmatpush.msra.mxu0 %v1327
        %1699 = vmatpush.msra.mxu0 %v1311
        %1700 = vmatpush.msra.mxu0 %v1295
        %1701 = vmatpush.msra.mxu0 %v1279
        %1702 = vmatpush.msra.mxu0 %v1263
        %1703 = vmatmul.f32.gmra.mxu0 %v1255
        %v1704 = vpop.f32.mrf.mxu0
        %v1705 = vadd.f32 %v1523, %v1704
        %1706 = vmatmul.f32.gmra.mxu0 %v1256
        %v1707 = vpop.f32.mrf.mxu0
        %v1708 = vadd.f32 %v1523, %v1707
        %1709 = vdwg.mxu0
        %1710 = vmatpush.msra.mxu0 %v1504
        %1711 = vmatpush.msra.mxu0 %v1488
        %1712 = vmatpush.msra.mxu0 %v1472
        %1713 = vmatpush.msra.mxu0 %v1456
        %1714 = vmatpush.msra.mxu0 %v1440
        %1715 = vmatpush.msra.mxu0 %v1424
        %1716 = vmatpush.msra.mxu0 %v1408
        %1717 = vmatpush.msra.mxu0 %v1392
        %1718 = vmatpush.msra.mxu0 %v1376
        %1719 = vmatpush.msra.mxu0 %v1360
        %1720 = vmatpush.msra.mxu0 %v1344
        %1721 = vmatpush.msra.mxu0 %v1328
        %1722 = vmatpush.msra.mxu0 %v1312
        %1723 = vmatpush.msra.mxu0 %v1296
        %1724 = vmatpush.msra.mxu0 %v1280
        %1725 = vmatpush.msra.mxu0 %v1264
        %1726 = vmatmul.f32.gmra.mxu0 %v1255
        %v1727 = vpop.f32.mrf.mxu0
        %v1728 = vadd.f32 %v1524, %v1727
        %1729 = vmatmul.f32.gmra.mxu0 %v1256
        %v1730 = vpop.f32.mrf.mxu0
        %v1731 = vadd.f32 %v1524, %v1730
        %1732 = vdwg.mxu0
        %1733 = vmatpush.msra.mxu0 %v1505
        %1734 = vmatpush.msra.mxu0 %v1489
        %1735 = vmatpush.msra.mxu0 %v1473
        %1736 = vmatpush.msra.mxu0 %v1457
        %1737 = vmatpush.msra.mxu0 %v1441
        %1738 = vmatpush.msra.mxu0 %v1425
        %1739 = vmatpush.msra.mxu0 %v1409
        %1740 = vmatpush.msra.mxu0 %v1393
        %1741 = vmatpush.msra.mxu0 %v1377
        %1742 = vmatpush.msra.mxu0 %v1361
        %1743 = vmatpush.msra.mxu0 %v1345
        %1744 = vmatpush.msra.mxu0 %v1329
        %1745 = vmatpush.msra.mxu0 %v1313
        %1746 = vmatpush.msra.mxu0 %v1297
        %1747 = vmatpush.msra.mxu0 %v1281
        %1748 = vmatpush.msra.mxu0 %v1265
        %1749 = vmatmul.f32.gmra.mxu0 %v1255
        %v1750 = vpop.f32.mrf.mxu0
        %v1751 = vadd.f32 %v1525, %v1750
        %1752 = vmatmul.f32.gmra.mxu0 %v1256
        %v1753 = vpop.f32.mrf.mxu0
        %v1754 = vadd.f32 %v1525, %v1753
        %1755 = vdwg.mxu0
        %1756 = vmatpush.msra.mxu0 %v1506
        %1757 = vmatpush.msra.mxu0 %v1490
        %1758 = vmatpush.msra.mxu0 %v1474
        %1759 = vmatpush.msra.mxu0 %v1458
        %1760 = vmatpush.msra.mxu0 %v1442
        %1761 = vmatpush.msra.mxu0 %v1426
        %1762 = vmatpush.msra.mxu0 %v1410
        %1763 = vmatpush.msra.mxu0 %v1394
        %1764 = vmatpush.msra.mxu0 %v1378
        %1765 = vmatpush.msra.mxu0 %v1362
        %1766 = vmatpush.msra.mxu0 %v1346
        %1767 = vmatpush.msra.mxu0 %v1330
        %1768 = vmatpush.msra.mxu0 %v1314
        %1769 = vmatpush.msra.mxu0 %v1298
        %1770 = vmatpush.msra.mxu0 %v1282
        %1771 = vmatpush.msra.mxu0 %v1266
        %1772 = vmatmul.f32.gmra.mxu0 %v1255
        %v1773 = vpop.f32.mrf.mxu0
        %v1774 = vadd.f32 %v1526, %v1773
        %1775 = vmatmul.f32.gmra.mxu0 %v1256
        %v1776 = vpop.f32.mrf.mxu0
        %v1777 = vadd.f32 %v1526, %v1776
        %1778 = vdwg.mxu0
        %1779 = vmatpush.msra.mxu0 %v1507
        %1780 = vmatpush.msra.mxu0 %v1491
        %1781 = vmatpush.msra.mxu0 %v1475
        %1782 = vmatpush.msra.mxu0 %v1459
        %1783 = vmatpush.msra.mxu0 %v1443
        %1784 = vmatpush.msra.mxu0 %v1427
        %1785 = vmatpush.msra.mxu0 %v1411
        %1786 = vmatpush.msra.mxu0 %v1395
        %1787 = vmatpush.msra.mxu0 %v1379
        %1788 = vmatpush.msra.mxu0 %v1363
        %1789 = vmatpush.msra.mxu0 %v1347
        %1790 = vmatpush.msra.mxu0 %v1331
        %1791 = vmatpush.msra.mxu0 %v1315
        %1792 = vmatpush.msra.mxu0 %v1299
        %1793 = vmatpush.msra.mxu0 %v1283
        %1794 = vmatpush.msra.mxu0 %v1267
        %1795 = vmatmul.f32.gmra.mxu0 %v1255
        %v1796 = vpop.f32.mrf.mxu0
        %v1797 = vadd.f32 %v1527, %v1796
        %1798 = vmatmul.f32.gmra.mxu0 %v1256
        %v1799 = vpop.f32.mrf.mxu0
        %v1800 = vadd.f32 %v1527, %v1799
        %1801 = vdwg.mxu0
        %1802 = vmatpush.msra.mxu0 %v1508
        %1803 = vmatpush.msra.mxu0 %v1492
        %1804 = vmatpush.msra.mxu0 %v1476
        %1805 = vmatpush.msra.mxu0 %v1460
        %1806 = vmatpush.msra.mxu0 %v1444
        %1807 = vmatpush.msra.mxu0 %v1428
        %1808 = vmatpush.msra.mxu0 %v1412
        %1809 = vmatpush.msra.mxu0 %v1396
        %1810 = vmatpush.msra.mxu0 %v1380
        %1811 = vmatpush.msra.mxu0 %v1364
        %1812 = vmatpush.msra.mxu0 %v1348
        %1813 = vmatpush.msra.mxu0 %v1332
        %1814 = vmatpush.msra.mxu0 %v1316
        %1815 = vmatpush.msra.mxu0 %v1300
        %1816 = vmatpush.msra.mxu0 %v1284
        %1817 = vmatpush.msra.mxu0 %v1268
        %1818 = vmatmul.f32.gmra.mxu0 %v1255
        %v1819 = vpop.f32.mrf.mxu0
        %v1820 = vadd.f32 %v1528, %v1819
        %1821 = vmatmul.f32.gmra.mxu0 %v1256
        %v1822 = vpop.f32.mrf.mxu0
        %v1823 = vadd.f32 %v1528, %v1822
        %1824 = vdwg.mxu0
        %1825 = vmatpush.msra.mxu0 %v1509
        %1826 = vmatpush.msra.mxu0 %v1493
        %1827 = vmatpush.msra.mxu0 %v1477
        %1828 = vmatpush.msra.mxu0 %v1461
        %1829 = vmatpush.msra.mxu0 %v1445
        %1830 = vmatpush.msra.mxu0 %v1429
        %1831 = vmatpush.msra.mxu0 %v1413
        %1832 = vmatpush.msra.mxu0 %v1397
        %1833 = vmatpush.msra.mxu0 %v1381
        %1834 = vmatpush.msra.mxu0 %v1365
        %1835 = vmatpush.msra.mxu0 %v1349
        %1836 = vmatpush.msra.mxu0 %v1333
        %1837 = vmatpush.msra.mxu0 %v1317
        %1838 = vmatpush.msra.mxu0 %v1301
        %1839 = vmatpush.msra.mxu0 %v1285
        %1840 = vmatpush.msra.mxu0 %v1269
        %1841 = vmatmul.f32.gmra.mxu0 %v1255
        %v1842 = vpop.f32.mrf.mxu0
        %v1843 = vadd.f32 %v1529, %v1842
        %1844 = vmatmul.f32.gmra.mxu0 %v1256
        %v1845 = vpop.f32.mrf.mxu0
        %v1846 = vadd.f32 %v1529, %v1845
        %1847 = vdwg.mxu0
        %1848 = vmatpush.msra.mxu0 %v1510
        %1849 = vmatpush.msra.mxu0 %v1494
        %1850 = vmatpush.msra.mxu0 %v1478
        %1851 = vmatpush.msra.mxu0 %v1462
        %1852 = vmatpush.msra.mxu0 %v1446
        %1853 = vmatpush.msra.mxu0 %v1430
        %1854 = vmatpush.msra.mxu0 %v1414
        %1855 = vmatpush.msra.mxu0 %v1398
        %1856 = vmatpush.msra.mxu0 %v1382
        %1857 = vmatpush.msra.mxu0 %v1366
        %1858 = vmatpush.msra.mxu0 %v1350
        %1859 = vmatpush.msra.mxu0 %v1334
        %1860 = vmatpush.msra.mxu0 %v1318
        %1861 = vmatpush.msra.mxu0 %v1302
        %1862 = vmatpush.msra.mxu0 %v1286
        %1863 = vmatpush.msra.mxu0 %v1270
        %1864 = vmatmul.f32.gmra.mxu0 %v1255
        %v1865 = vpop.f32.mrf.mxu0
        %v1866 = vadd.f32 %v1530, %v1865
        %1867 = vmatmul.f32.gmra.mxu0 %v1256
        %v1868 = vpop.f32.mrf.mxu0
        %v1869 = vadd.f32 %v1530, %v1868
        %1870 = vdwg.mxu0
        %1871 = vmatpush.msra.mxu0 %v1511
        %1872 = vmatpush.msra.mxu0 %v1495
        %1873 = vmatpush.msra.mxu0 %v1479
        %1874 = vmatpush.msra.mxu0 %v1463
        %1875 = vmatpush.msra.mxu0 %v1447
        %1876 = vmatpush.msra.mxu0 %v1431
        %1877 = vmatpush.msra.mxu0 %v1415
        %1878 = vmatpush.msra.mxu0 %v1399
        %1879 = vmatpush.msra.mxu0 %v1383
        %1880 = vmatpush.msra.mxu0 %v1367
        %1881 = vmatpush.msra.mxu0 %v1351
        %1882 = vmatpush.msra.mxu0 %v1335
        %1883 = vmatpush.msra.mxu0 %v1319
        %1884 = vmatpush.msra.mxu0 %v1303
        %1885 = vmatpush.msra.mxu0 %v1287
        %1886 = vmatpush.msra.mxu0 %v1271
        %1887 = vmatmul.f32.gmra.mxu0 %v1255
        %v1888 = vpop.f32.mrf.mxu0
        %v1889 = vadd.f32 %v1531, %v1888
        %1890 = vmatmul.f32.gmra.mxu0 %v1256
        %v1891 = vpop.f32.mrf.mxu0
        %v1892 = vadd.f32 %v1531, %v1891
        %1893 = vdwg.mxu0
        %1894 = vmatpush.msra.mxu0 %v1512
        %1895 = vmatpush.msra.mxu0 %v1496
        %1896 = vmatpush.msra.mxu0 %v1480
        %1897 = vmatpush.msra.mxu0 %v1464
        %1898 = vmatpush.msra.mxu0 %v1448
        %1899 = vmatpush.msra.mxu0 %v1432
        %1900 = vmatpush.msra.mxu0 %v1416
        %1901 = vmatpush.msra.mxu0 %v1400
        %1902 = vmatpush.msra.mxu0 %v1384
        %1903 = vmatpush.msra.mxu0 %v1368
        %1904 = vmatpush.msra.mxu0 %v1352
        %1905 = vmatpush.msra.mxu0 %v1336
        %1906 = vmatpush.msra.mxu0 %v1320
        %1907 = vmatpush.msra.mxu0 %v1304
        %1908 = vmatpush.msra.mxu0 %v1288
        %1909 = vmatpush.msra.mxu0 %v1272
        %1910 = vmatmul.f32.gmra.mxu0 %v1255
        %v1911 = vpop.f32.mrf.mxu0
        %v1912 = vadd.f32 %v1532, %v1911
        %1913 = vmatmul.f32.gmra.mxu0 %v1256
        %v1914 = vpop.f32.mrf.mxu0
        %v1915 = vadd.f32 %v1532, %v1914
        %1916 = vdwg.mxu0
        %v1917 = vmax.f32 %v1567, 0.0
        %v1918 = vmax.f32 %v1590, 0.0
        %v1919 = vmax.f32 %v1613, 0.0
        %v1920 = vmax.f32 %v1636, 0.0
        %v1921 = vmax.f32 %v1659, 0.0
        %v1922 = vmax.f32 %v1682, 0.0
        %v1923 = vmax.f32 %v1705, 0.0
        %v1924 = vmax.f32 %v1728, 0.0
        %v1925 = vmax.f32 %v1751, 0.0
        %v1926 = vmax.f32 %v1774, 0.0
        %v1927 = vmax.f32 %v1797, 0.0
        %v1928 = vmax.f32 %v1820, 0.0
        %v1929 = vmax.f32 %v1843, 0.0
        %v1930 = vmax.f32 %v1866, 0.0
        %v1931 = vmax.f32 %v1889, 0.0
        %v1932 = vmax.f32 %v1912, 0.0
        %v1933 = vmax.f32 %v1570, 0.0
        %v1934 = vmax.f32 %v1593, 0.0
        %v1935 = vmax.f32 %v1616, 0.0
        %v1936 = vmax.f32 %v1639, 0.0
        %v1937 = vmax.f32 %v1662, 0.0
        %v1938 = vmax.f32 %v1685, 0.0
        %v1939 = vmax.f32 %v1708, 0.0
        %v1940 = vmax.f32 %v1731, 0.0
        %v1941 = vmax.f32 %v1754, 0.0
        %v1942 = vmax.f32 %v1777, 0.0
        %v1943 = vmax.f32 %v1800, 0.0
        %v1944 = vmax.f32 %v1823, 0.0
        %v1945 = vmax.f32 %v1846, 0.0
        %v1946 = vmax.f32 %v1869, 0.0
        %v1947 = vmax.f32 %v1892, 0.0
        %v1948 = vmax.f32 %v1915, 0.0
        %v1949 = vld [vmem:[#allocation17] sm:$0xff]
        %v1950 = vld [vmem:[#allocation17 + $0x8] sm:$0xff]
        %v1951 = vld [vmem:[#allocation17 + $0x10] sm:$0xff]
        %v1952 = vld [vmem:[#allocation17 + $0x18] sm:$0xff]
        %v1953 = vld [vmem:[#allocation17 + $0x20] sm:$0xff]
        %v1954 = vld [vmem:[#allocation17 + $0x28] sm:$0xff]
        %v1955 = vld [vmem:[#allocation17 + $0x30] sm:$0xff]
        %v1956 = vld [vmem:[#allocation17 + $0x38] sm:$0xff]
        %v1957 = vld [vmem:[#allocation17 + $0x40] sm:$0xff]
        %v1958 = vld [vmem:[#allocation17 + $0x48] sm:$0xff]
        %v1959 = vld [vmem:[#allocation17 + $0x50] sm:$0xff]
        %v1960 = vld [vmem:[#allocation17 + $0x58] sm:$0xff]
        %v1961 = vld [vmem:[#allocation17 + $0x60] sm:$0xff]
        %v1962 = vld [vmem:[#allocation17 + $0x68] sm:$0xff]
        %v1963 = vld [vmem:[#allocation17 + $0x70] sm:$0xff]
        %v1964 = vld [vmem:[#allocation17 + $0x78] sm:$0xff]
        %v1965 = vld [vmem:[#allocation17 + $0x80] sm:$0xff]
        %v1966 = vld [vmem:[#allocation17 + $0x88] sm:$0xff]
        %v1967 = vld [vmem:[#allocation17 + $0x90] sm:$0xff]
        %v1968 = vld [vmem:[#allocation17 + $0x98] sm:$0xff]
        %v1969 = vld [vmem:[#allocation17 + $0xa0] sm:$0xff]
        %v1970 = vld [vmem:[#allocation17 + $0xa8] sm:$0xff]
        %v1971 = vld [vmem:[#allocation17 + $0xb0] sm:$0xff]
        %v1972 = vld [vmem:[#allocation17 + $0xb8] sm:$0xff]
        %v1973 = vld [vmem:[#allocation17 + $0xc0] sm:$0xff]
        %v1974 = vld [vmem:[#allocation17 + $0xc8] sm:$0xff]
        %v1975 = vld [vmem:[#allocation17 + $0xd0] sm:$0xff]
        %v1976 = vld [vmem:[#allocation17 + $0xd8] sm:$0xff]
        %v1977 = vld [vmem:[#allocation17 + $0xe0] sm:$0xff]
        %v1978 = vld [vmem:[#allocation17 + $0xe8] sm:$0xff]
        %v1979 = vld [vmem:[#allocation17 + $0xf0] sm:$0xff]
        %v1980 = vld [vmem:[#allocation17 + $0xf8] sm:$0xff]
        %v1981 = vld [vmem:[#allocation17 + $0x100] sm:$0xff]
        %v1982 = vld [vmem:[#allocation17 + $0x108] sm:$0xff]
        %v1983 = vld [vmem:[#allocation17 + $0x110] sm:$0xff]
        %v1984 = vld [vmem:[#allocation17 + $0x118] sm:$0xff]
        %v1985 = vld [vmem:[#allocation17 + $0x120] sm:$0xff]
        %v1986 = vld [vmem:[#allocation17 + $0x128] sm:$0xff]
        %v1987 = vld [vmem:[#allocation17 + $0x130] sm:$0xff]
        %v1988 = vld [vmem:[#allocation17 + $0x138] sm:$0xff]
        %v1989 = vld [vmem:[#allocation17 + $0x140] sm:$0xff]
        %v1990 = vld [vmem:[#allocation17 + $0x148] sm:$0xff]
        %v1991 = vld [vmem:[#allocation17 + $0x150] sm:$0xff]
        %v1992 = vld [vmem:[#allocation17 + $0x158] sm:$0xff]
        %v1993 = vld [vmem:[#allocation17 + $0x160] sm:$0xff]
        %v1994 = vld [vmem:[#allocation17 + $0x168] sm:$0xff]
        %v1995 = vld [vmem:[#allocation17 + $0x170] sm:$0xff]
        %v1996 = vld [vmem:[#allocation17 + $0x178] sm:$0xff]
        %v1997 = vld [vmem:[#allocation17 + $0x180] sm:$0xff]
        %v1998 = vld [vmem:[#allocation17 + $0x188] sm:$0xff]
        %v1999 = vld [vmem:[#allocation17 + $0x190] sm:$0xff]
        %v2000 = vld [vmem:[#allocation17 + $0x198] sm:$0xff]
        %v2001 = vld [vmem:[#allocation17 + $0x1a0] sm:$0xff]
        %v2002 = vld [vmem:[#allocation17 + $0x1a8] sm:$0xff]
        %v2003 = vld [vmem:[#allocation17 + $0x1b0] sm:$0xff]
        %v2004 = vld [vmem:[#allocation17 + $0x1b8] sm:$0xff]
        %v2005 = vld [vmem:[#allocation17 + $0x1c0] sm:$0xff]
        %v2006 = vld [vmem:[#allocation17 + $0x1c8] sm:$0xff]
        %v2007 = vld [vmem:[#allocation17 + $0x1d0] sm:$0xff]
        %v2008 = vld [vmem:[#allocation17 + $0x1d8] sm:$0xff]
        %v2009 = vld [vmem:[#allocation17 + $0x1e0] sm:$0xff]
        %v2010 = vld [vmem:[#allocation17 + $0x1e8] sm:$0xff]
        %v2011 = vld [vmem:[#allocation17 + $0x1f0] sm:$0xff]
        %v2012 = vld [vmem:[#allocation17 + $0x1f8] sm:$0xff]
        %v2013 = vld [vmem:[#allocation17 + $0x200] sm:$0xff]
        %v2014 = vld [vmem:[#allocation17 + $0x208] sm:$0xff]
        %v2015 = vld [vmem:[#allocation17 + $0x210] sm:$0xff]
        %v2016 = vld [vmem:[#allocation17 + $0x218] sm:$0xff]
        %v2017 = vld [vmem:[#allocation17 + $0x220] sm:$0xff]
        %v2018 = vld [vmem:[#allocation17 + $0x228] sm:$0xff]
        %v2019 = vld [vmem:[#allocation17 + $0x230] sm:$0xff]
        %v2020 = vld [vmem:[#allocation17 + $0x238] sm:$0xff]
        %v2021 = vld [vmem:[#allocation17 + $0x240] sm:$0xff]
        %v2022 = vld [vmem:[#allocation17 + $0x248] sm:$0xff]
        %v2023 = vld [vmem:[#allocation17 + $0x250] sm:$0xff]
        %v2024 = vld [vmem:[#allocation17 + $0x258] sm:$0xff]
        %v2025 = vld [vmem:[#allocation17 + $0x260] sm:$0xff]
        %v2026 = vld [vmem:[#allocation17 + $0x268] sm:$0xff]
        %v2027 = vld [vmem:[#allocation17 + $0x270] sm:$0xff]
        %v2028 = vld [vmem:[#allocation17 + $0x278] sm:$0xff]
        %v2029 = vld [vmem:[#allocation17 + $0x280] sm:$0xff]
        %v2030 = vld [vmem:[#allocation17 + $0x288] sm:$0xff]
        %v2031 = vld [vmem:[#allocation17 + $0x290] sm:$0xff]
        %v2032 = vld [vmem:[#allocation17 + $0x298] sm:$0xff]
        %v2033 = vld [vmem:[#allocation17 + $0x2a0] sm:$0xff]
        %v2034 = vld [vmem:[#allocation17 + $0x2a8] sm:$0xff]
        %v2035 = vld [vmem:[#allocation17 + $0x2b0] sm:$0xff]
        %v2036 = vld [vmem:[#allocation17 + $0x2b8] sm:$0xff]
        %v2037 = vld [vmem:[#allocation17 + $0x2c0] sm:$0xff]
        %v2038 = vld [vmem:[#allocation17 + $0x2c8] sm:$0xff]
        %v2039 = vld [vmem:[#allocation17 + $0x2d0] sm:$0xff]
        %v2040 = vld [vmem:[#allocation17 + $0x2d8] sm:$0xff]
        %v2041 = vld [vmem:[#allocation17 + $0x2e0] sm:$0xff]
        %v2042 = vld [vmem:[#allocation17 + $0x2e8] sm:$0xff]
        %v2043 = vld [vmem:[#allocation17 + $0x2f0] sm:$0xff]
        %v2044 = vld [vmem:[#allocation17 + $0x2f8] sm:$0xff]
        %v2045 = vld [vmem:[#allocation17 + $0x300] sm:$0xff]
        %v2046 = vld [vmem:[#allocation17 + $0x308] sm:$0xff]
        %v2047 = vld [vmem:[#allocation17 + $0x310] sm:$0xff]
        %v2048 = vld [vmem:[#allocation17 + $0x318] sm:$0xff]
        %v2049 = vld [vmem:[#allocation17 + $0x320] sm:$0xff]
        %v2050 = vld [vmem:[#allocation17 + $0x328] sm:$0xff]
        %v2051 = vld [vmem:[#allocation17 + $0x330] sm:$0xff]
        %v2052 = vld [vmem:[#allocation17 + $0x338] sm:$0xff]
        %v2053 = vld [vmem:[#allocation17 + $0x340] sm:$0xff]
        %v2054 = vld [vmem:[#allocation17 + $0x348] sm:$0xff]
        %v2055 = vld [vmem:[#allocation17 + $0x350] sm:$0xff]
        %v2056 = vld [vmem:[#allocation17 + $0x358] sm:$0xff]
        %v2057 = vld [vmem:[#allocation17 + $0x360] sm:$0xff]
        %v2058 = vld [vmem:[#allocation17 + $0x368] sm:$0xff]
        %v2059 = vld [vmem:[#allocation17 + $0x370] sm:$0xff]
        %v2060 = vld [vmem:[#allocation17 + $0x378] sm:$0xff]
        %v2061 = vld [vmem:[#allocation17 + $0x380] sm:$0xff]
        %v2062 = vld [vmem:[#allocation17 + $0x388] sm:$0xff]
        %v2063 = vld [vmem:[#allocation17 + $0x390] sm:$0xff]
        %v2064 = vld [vmem:[#allocation17 + $0x398] sm:$0xff]
        %v2065 = vld [vmem:[#allocation17 + $0x3a0] sm:$0xff]
        %v2066 = vld [vmem:[#allocation17 + $0x3a8] sm:$0xff]
        %v2067 = vld [vmem:[#allocation17 + $0x3b0] sm:$0xff]
        %v2068 = vld [vmem:[#allocation17 + $0x3b8] sm:$0xff]
        %v2069 = vld [vmem:[#allocation17 + $0x3c0] sm:$0xff]
        %v2070 = vld [vmem:[#allocation17 + $0x3c8] sm:$0xff]
        %v2071 = vld [vmem:[#allocation17 + $0x3d0] sm:$0xff]
        %v2072 = vld [vmem:[#allocation17 + $0x3d8] sm:$0xff]
        %v2073 = vld [vmem:[#allocation17 + $0x3e0] sm:$0xff]
        %v2074 = vld [vmem:[#allocation17 + $0x3e8] sm:$0xff]
        %v2075 = vld [vmem:[#allocation17 + $0x3f0] sm:$0xff]
        %v2076 = vld [vmem:[#allocation17 + $0x3f8] sm:$0xff]
        %v2077 = vld [vmem:[#allocation17 + $0x400] sm:$0xff]
        %v2078 = vld [vmem:[#allocation17 + $0x408] sm:$0xff]
        %v2079 = vld [vmem:[#allocation17 + $0x410] sm:$0xff]
        %v2080 = vld [vmem:[#allocation17 + $0x418] sm:$0xff]
        %v2081 = vld [vmem:[#allocation17 + $0x420] sm:$0xff]
        %v2082 = vld [vmem:[#allocation17 + $0x428] sm:$0xff]
        %v2083 = vld [vmem:[#allocation17 + $0x430] sm:$0xff]
        %v2084 = vld [vmem:[#allocation17 + $0x438] sm:$0xff]
        %v2085 = vld [vmem:[#allocation17 + $0x440] sm:$0xff]
        %v2086 = vld [vmem:[#allocation17 + $0x448] sm:$0xff]
        %v2087 = vld [vmem:[#allocation17 + $0x450] sm:$0xff]
        %v2088 = vld [vmem:[#allocation17 + $0x458] sm:$0xff]
        %v2089 = vld [vmem:[#allocation17 + $0x460] sm:$0xff]
        %v2090 = vld [vmem:[#allocation17 + $0x468] sm:$0xff]
        %v2091 = vld [vmem:[#allocation17 + $0x470] sm:$0xff]
        %v2092 = vld [vmem:[#allocation17 + $0x478] sm:$0xff]
        %v2093 = vld [vmem:[#allocation17 + $0x480] sm:$0xff]
        %v2094 = vld [vmem:[#allocation17 + $0x488] sm:$0xff]
        %v2095 = vld [vmem:[#allocation17 + $0x490] sm:$0xff]
        %v2096 = vld [vmem:[#allocation17 + $0x498] sm:$0xff]
        %v2097 = vld [vmem:[#allocation17 + $0x4a0] sm:$0xff]
        %v2098 = vld [vmem:[#allocation17 + $0x4a8] sm:$0xff]
        %v2099 = vld [vmem:[#allocation17 + $0x4b0] sm:$0xff]
        %v2100 = vld [vmem:[#allocation17 + $0x4b8] sm:$0xff]
        %v2101 = vld [vmem:[#allocation17 + $0x4c0] sm:$0xff]
        %v2102 = vld [vmem:[#allocation17 + $0x4c8] sm:$0xff]
        %v2103 = vld [vmem:[#allocation17 + $0x4d0] sm:$0xff]
        %v2104 = vld [vmem:[#allocation17 + $0x4d8] sm:$0xff]
        %v2105 = vld [vmem:[#allocation17 + $0x4e0] sm:$0xff]
        %v2106 = vld [vmem:[#allocation17 + $0x4e8] sm:$0xff]
        %v2107 = vld [vmem:[#allocation17 + $0x4f0] sm:$0xff]
        %v2108 = vld [vmem:[#allocation17 + $0x4f8] sm:$0xff]
        %v2109 = vld [vmem:[#allocation17 + $0x500] sm:$0xff]
        %v2110 = vld [vmem:[#allocation17 + $0x508] sm:$0xff]
        %v2111 = vld [vmem:[#allocation17 + $0x510] sm:$0xff]
        %v2112 = vld [vmem:[#allocation17 + $0x518] sm:$0xff]
        %v2113 = vld [vmem:[#allocation17 + $0x520] sm:$0xff]
        %v2114 = vld [vmem:[#allocation17 + $0x528] sm:$0xff]
        %v2115 = vld [vmem:[#allocation17 + $0x530] sm:$0xff]
        %v2116 = vld [vmem:[#allocation17 + $0x538] sm:$0xff]
        %v2117 = vld [vmem:[#allocation17 + $0x540] sm:$0xff]
        %v2118 = vld [vmem:[#allocation17 + $0x548] sm:$0xff]
        %v2119 = vld [vmem:[#allocation17 + $0x550] sm:$0xff]
        %v2120 = vld [vmem:[#allocation17 + $0x558] sm:$0xff]
        %v2121 = vld [vmem:[#allocation17 + $0x560] sm:$0xff]
        %v2122 = vld [vmem:[#allocation17 + $0x568] sm:$0xff]
        %v2123 = vld [vmem:[#allocation17 + $0x570] sm:$0xff]
        %v2124 = vld [vmem:[#allocation17 + $0x578] sm:$0xff]
        %v2125 = vld [vmem:[#allocation17 + $0x580] sm:$0xff]
        %v2126 = vld [vmem:[#allocation17 + $0x588] sm:$0xff]
        %v2127 = vld [vmem:[#allocation17 + $0x590] sm:$0xff]
        %v2128 = vld [vmem:[#allocation17 + $0x598] sm:$0xff]
        %v2129 = vld [vmem:[#allocation17 + $0x5a0] sm:$0xff]
        %v2130 = vld [vmem:[#allocation17 + $0x5a8] sm:$0xff]
        %v2131 = vld [vmem:[#allocation17 + $0x5b0] sm:$0xff]
        %v2132 = vld [vmem:[#allocation17 + $0x5b8] sm:$0xff]
        %v2133 = vld [vmem:[#allocation17 + $0x5c0] sm:$0xff]
        %v2134 = vld [vmem:[#allocation17 + $0x5c8] sm:$0xff]
        %v2135 = vld [vmem:[#allocation17 + $0x5d0] sm:$0xff]
        %v2136 = vld [vmem:[#allocation17 + $0x5d8] sm:$0xff]
        %v2137 = vld [vmem:[#allocation17 + $0x5e0] sm:$0xff]
        %v2138 = vld [vmem:[#allocation17 + $0x5e8] sm:$0xff]
        %v2139 = vld [vmem:[#allocation17 + $0x5f0] sm:$0xff]
        %v2140 = vld [vmem:[#allocation17 + $0x5f8] sm:$0xff]
        %v2141 = vld [vmem:[#allocation17 + $0x600] sm:$0xff]
        %v2142 = vld [vmem:[#allocation17 + $0x608] sm:$0xff]
        %v2143 = vld [vmem:[#allocation17 + $0x610] sm:$0xff]
        %v2144 = vld [vmem:[#allocation17 + $0x618] sm:$0xff]
        %v2145 = vld [vmem:[#allocation17 + $0x620] sm:$0xff]
        %v2146 = vld [vmem:[#allocation17 + $0x628] sm:$0xff]
        %v2147 = vld [vmem:[#allocation17 + $0x630] sm:$0xff]
        %v2148 = vld [vmem:[#allocation17 + $0x638] sm:$0xff]
        %v2149 = vld [vmem:[#allocation17 + $0x640] sm:$0xff]
        %v2150 = vld [vmem:[#allocation17 + $0x648] sm:$0xff]
        %v2151 = vld [vmem:[#allocation17 + $0x650] sm:$0xff]
        %v2152 = vld [vmem:[#allocation17 + $0x658] sm:$0xff]
        %v2153 = vld [vmem:[#allocation17 + $0x660] sm:$0xff]
        %v2154 = vld [vmem:[#allocation17 + $0x668] sm:$0xff]
        %v2155 = vld [vmem:[#allocation17 + $0x670] sm:$0xff]
        %v2156 = vld [vmem:[#allocation17 + $0x678] sm:$0xff]
        %v2157 = vld [vmem:[#allocation17 + $0x680] sm:$0xff]
        %v2158 = vld [vmem:[#allocation17 + $0x688] sm:$0xff]
        %v2159 = vld [vmem:[#allocation17 + $0x690] sm:$0xff]
        %v2160 = vld [vmem:[#allocation17 + $0x698] sm:$0xff]
        %v2161 = vld [vmem:[#allocation17 + $0x6a0] sm:$0xff]
        %v2162 = vld [vmem:[#allocation17 + $0x6a8] sm:$0xff]
        %v2163 = vld [vmem:[#allocation17 + $0x6b0] sm:$0xff]
        %v2164 = vld [vmem:[#allocation17 + $0x6b8] sm:$0xff]
        %v2165 = vld [vmem:[#allocation17 + $0x6c0] sm:$0xff]
        %v2166 = vld [vmem:[#allocation17 + $0x6c8] sm:$0xff]
        %v2167 = vld [vmem:[#allocation17 + $0x6d0] sm:$0xff]
        %v2168 = vld [vmem:[#allocation17 + $0x6d8] sm:$0xff]
        %v2169 = vld [vmem:[#allocation17 + $0x6e0] sm:$0xff]
        %v2170 = vld [vmem:[#allocation17 + $0x6e8] sm:$0xff]
        %v2171 = vld [vmem:[#allocation17 + $0x6f0] sm:$0xff]
        %v2172 = vld [vmem:[#allocation17 + $0x6f8] sm:$0xff]
        %v2173 = vld [vmem:[#allocation17 + $0x700] sm:$0xff]
        %v2174 = vld [vmem:[#allocation17 + $0x708] sm:$0xff]
        %v2175 = vld [vmem:[#allocation17 + $0x710] sm:$0xff]
        %v2176 = vld [vmem:[#allocation17 + $0x718] sm:$0xff]
        %v2177 = vld [vmem:[#allocation17 + $0x720] sm:$0xff]
        %v2178 = vld [vmem:[#allocation17 + $0x728] sm:$0xff]
        %v2179 = vld [vmem:[#allocation17 + $0x730] sm:$0xff]
        %v2180 = vld [vmem:[#allocation17 + $0x738] sm:$0xff]
        %v2181 = vld [vmem:[#allocation17 + $0x740] sm:$0xff]
        %v2182 = vld [vmem:[#allocation17 + $0x748] sm:$0xff]
        %v2183 = vld [vmem:[#allocation17 + $0x750] sm:$0xff]
        %v2184 = vld [vmem:[#allocation17 + $0x758] sm:$0xff]
        %v2185 = vld [vmem:[#allocation17 + $0x760] sm:$0xff]
        %v2186 = vld [vmem:[#allocation17 + $0x768] sm:$0xff]
        %v2187 = vld [vmem:[#allocation17 + $0x770] sm:$0xff]
        %v2188 = vld [vmem:[#allocation17 + $0x778] sm:$0xff]
        %v2189 = vld [vmem:[#allocation17 + $0x780] sm:$0xff]
        %v2190 = vld [vmem:[#allocation17 + $0x788] sm:$0xff]
        %v2191 = vld [vmem:[#allocation17 + $0x790] sm:$0xff]
        %v2192 = vld [vmem:[#allocation17 + $0x798] sm:$0xff]
        %v2193 = vld [vmem:[#allocation17 + $0x7a0] sm:$0xff]
        %v2194 = vld [vmem:[#allocation17 + $0x7a8] sm:$0xff]
        %v2195 = vld [vmem:[#allocation17 + $0x7b0] sm:$0xff]
        %v2196 = vld [vmem:[#allocation17 + $0x7b8] sm:$0xff]
        %v2197 = vld [vmem:[#allocation17 + $0x7c0] sm:$0xff]
        %v2198 = vld [vmem:[#allocation17 + $0x7c8] sm:$0xff]
        %v2199 = vld [vmem:[#allocation17 + $0x7d0] sm:$0xff]
        %v2200 = vld [vmem:[#allocation17 + $0x7d8] sm:$0xff]
        %v2201 = vld [vmem:[#allocation17 + $0x7e0] sm:$0xff]
        %v2202 = vld [vmem:[#allocation17 + $0x7e8] sm:$0xff]
        %v2203 = vld [vmem:[#allocation17 + $0x7f0] sm:$0xff]
        %v2204 = vld [vmem:[#allocation17 + $0x7f8] sm:$0xff]
        %v2205 = vld [vmem:[%s13] sm:$0x1]
        %v2207 = vperm.slane %v2205, 0
        %2209 = vmatpush.msra.mxu0 %v1964
        %2210 = vmatpush.msra.mxu0 %v1963
        %2211 = vmatpush.msra.mxu0 %v1962
        %2212 = vmatpush.msra.mxu0 %v1961
        %2213 = vmatpush.msra.mxu0 %v1960
        %2214 = vmatpush.msra.mxu0 %v1959
        %2215 = vmatpush.msra.mxu0 %v1958
        %2216 = vmatpush.msra.mxu0 %v1957
        %2217 = vmatpush.msra.mxu0 %v1956
        %2218 = vmatpush.msra.mxu0 %v1955
        %2219 = vmatpush.msra.mxu0 %v1954
        %2220 = vmatpush.msra.mxu0 %v1953
        %2221 = vmatpush.msra.mxu0 %v1952
        %2222 = vmatpush.msra.mxu0 %v1951
        %2223 = vmatpush.msra.mxu0 %v1950
        %2224 = vmatpush.msra.mxu0 %v1949
        %2225 = vmatmul.f32.gmra.mxu0 %v1917
        %v2226 = vpop.f32.mrf.mxu0
        %v2227 = vadd.f32 %v2207, %v2226
        %2228 = vmatmul.f32.gmra.mxu0 %v1933
        %v2229 = vpop.f32.mrf.mxu0
        %v2230 = vadd.f32 %v2207, %v2229
        %2231 = vdwg.mxu0
        %2232 = vmatpush.msra.mxu0 %v1980
        %2233 = vmatpush.msra.mxu0 %v1979
        %2234 = vmatpush.msra.mxu0 %v1978
        %2235 = vmatpush.msra.mxu0 %v1977
        %2236 = vmatpush.msra.mxu0 %v1976
        %2237 = vmatpush.msra.mxu0 %v1975
        %2238 = vmatpush.msra.mxu0 %v1974
        %2239 = vmatpush.msra.mxu0 %v1973
        %2240 = vmatpush.msra.mxu0 %v1972
        %2241 = vmatpush.msra.mxu0 %v1971
        %2242 = vmatpush.msra.mxu0 %v1970
        %2243 = vmatpush.msra.mxu0 %v1969
        %2244 = vmatpush.msra.mxu0 %v1968
        %2245 = vmatpush.msra.mxu0 %v1967
        %2246 = vmatpush.msra.mxu0 %v1966
        %2247 = vmatpush.msra.mxu0 %v1965
        %2248 = vmatmul.f32.gmra.mxu0 %v1918
        %v2249 = vpop.f32.mrf.mxu0
        %v2250 = vadd.f32 %v2227, %v2249
        %2251 = vmatmul.f32.gmra.mxu0 %v1934
        %v2252 = vpop.f32.mrf.mxu0
        %v2253 = vadd.f32 %v2230, %v2252
        %2254 = vdwg.mxu0
        %2255 = vmatpush.msra.mxu0 %v1996
        %2256 = vmatpush.msra.mxu0 %v1995
        %2257 = vmatpush.msra.mxu0 %v1994
        %2258 = vmatpush.msra.mxu0 %v1993
        %2259 = vmatpush.msra.mxu0 %v1992
        %2260 = vmatpush.msra.mxu0 %v1991
        %2261 = vmatpush.msra.mxu0 %v1990
        %2262 = vmatpush.msra.mxu0 %v1989
        %2263 = vmatpush.msra.mxu0 %v1988
        %2264 = vmatpush.msra.mxu0 %v1987
        %2265 = vmatpush.msra.mxu0 %v1986
        %2266 = vmatpush.msra.mxu0 %v1985
        %2267 = vmatpush.msra.mxu0 %v1984
        %2268 = vmatpush.msra.mxu0 %v1983
        %2269 = vmatpush.msra.mxu0 %v1982
        %2270 = vmatpush.msra.mxu0 %v1981
        %2271 = vmatmul.f32.gmra.mxu0 %v1919
        %v2272 = vpop.f32.mrf.mxu0
        %v2273 = vadd.f32 %v2250, %v2272
        %2274 = vmatmul.f32.gmra.mxu0 %v1935
        %v2275 = vpop.f32.mrf.mxu0
        %v2276 = vadd.f32 %v2253, %v2275
        %2277 = vdwg.mxu0
        %2278 = vmatpush.msra.mxu0 %v2012
        %2279 = vmatpush.msra.mxu0 %v2011
        %2280 = vmatpush.msra.mxu0 %v2010
        %2281 = vmatpush.msra.mxu0 %v2009
        %2282 = vmatpush.msra.mxu0 %v2008
        %2283 = vmatpush.msra.mxu0 %v2007
        %2284 = vmatpush.msra.mxu0 %v2006
        %2285 = vmatpush.msra.mxu0 %v2005
        %2286 = vmatpush.msra.mxu0 %v2004
        %2287 = vmatpush.msra.mxu0 %v2003
        %2288 = vmatpush.msra.mxu0 %v2002
        %2289 = vmatpush.msra.mxu0 %v2001
        %2290 = vmatpush.msra.mxu0 %v2000
        %2291 = vmatpush.msra.mxu0 %v1999
        %2292 = vmatpush.msra.mxu0 %v1998
        %2293 = vmatpush.msra.mxu0 %v1997
        %2294 = vmatmul.f32.gmra.mxu0 %v1920
        %v2295 = vpop.f32.mrf.mxu0
        %v2296 = vadd.f32 %v2273, %v2295
        %2297 = vmatmul.f32.gmra.mxu0 %v1936
        %v2298 = vpop.f32.mrf.mxu0
        %v2299 = vadd.f32 %v2276, %v2298
        %2300 = vdwg.mxu0
        %2301 = vmatpush.msra.mxu0 %v2028
        %2302 = vmatpush.msra.mxu0 %v2027
        %2303 = vmatpush.msra.mxu0 %v2026
        %2304 = vmatpush.msra.mxu0 %v2025
        %2305 = vmatpush.msra.mxu0 %v2024
        %2306 = vmatpush.msra.mxu0 %v2023
        %2307 = vmatpush.msra.mxu0 %v2022
        %2308 = vmatpush.msra.mxu0 %v2021
        %2309 = vmatpush.msra.mxu0 %v2020
        %2310 = vmatpush.msra.mxu0 %v2019
        %2311 = vmatpush.msra.mxu0 %v2018
        %2312 = vmatpush.msra.mxu0 %v2017
        %2313 = vmatpush.msra.mxu0 %v2016
        %2314 = vmatpush.msra.mxu0 %v2015
        %2315 = vmatpush.msra.mxu0 %v2014
        %2316 = vmatpush.msra.mxu0 %v2013
        %2317 = vmatmul.f32.gmra.mxu0 %v1921
        %v2318 = vpop.f32.mrf.mxu0
        %v2319 = vadd.f32 %v2296, %v2318
        %2320 = vmatmul.f32.gmra.mxu0 %v1937
        %v2321 = vpop.f32.mrf.mxu0
        %v2322 = vadd.f32 %v2299, %v2321
        %2323 = vdwg.mxu0
        %2324 = vmatpush.msra.mxu0 %v2044
        %2325 = vmatpush.msra.mxu0 %v2043
        %2326 = vmatpush.msra.mxu0 %v2042
        %2327 = vmatpush.msra.mxu0 %v2041
        %2328 = vmatpush.msra.mxu0 %v2040
        %2329 = vmatpush.msra.mxu0 %v2039
        %2330 = vmatpush.msra.mxu0 %v2038
        %2331 = vmatpush.msra.mxu0 %v2037
        %2332 = vmatpush.msra.mxu0 %v2036
        %2333 = vmatpush.msra.mxu0 %v2035
        %2334 = vmatpush.msra.mxu0 %v2034
        %2335 = vmatpush.msra.mxu0 %v2033
        %2336 = vmatpush.msra.mxu0 %v2032
        %2337 = vmatpush.msra.mxu0 %v2031
        %2338 = vmatpush.msra.mxu0 %v2030
        %2339 = vmatpush.msra.mxu0 %v2029
        %2340 = vmatmul.f32.gmra.mxu0 %v1922
        %v2341 = vpop.f32.mrf.mxu0
        %v2342 = vadd.f32 %v2319, %v2341
        %2343 = vmatmul.f32.gmra.mxu0 %v1938
        %v2344 = vpop.f32.mrf.mxu0
        %v2345 = vadd.f32 %v2322, %v2344
        %2346 = vdwg.mxu0
        %2347 = vmatpush.msra.mxu0 %v2060
        %2348 = vmatpush.msra.mxu0 %v2059
        %2349 = vmatpush.msra.mxu0 %v2058
        %2350 = vmatpush.msra.mxu0 %v2057
        %2351 = vmatpush.msra.mxu0 %v2056
        %2352 = vmatpush.msra.mxu0 %v2055
        %2353 = vmatpush.msra.mxu0 %v2054
        %2354 = vmatpush.msra.mxu0 %v2053
        %2355 = vmatpush.msra.mxu0 %v2052
        %2356 = vmatpush.msra.mxu0 %v2051
        %2357 = vmatpush.msra.mxu0 %v2050
        %2358 = vmatpush.msra.mxu0 %v2049
        %2359 = vmatpush.msra.mxu0 %v2048
        %2360 = vmatpush.msra.mxu0 %v2047
        %2361 = vmatpush.msra.mxu0 %v2046
        %2362 = vmatpush.msra.mxu0 %v2045
        %2363 = vmatmul.f32.gmra.mxu0 %v1923
        %v2364 = vpop.f32.mrf.mxu0
        %v2365 = vadd.f32 %v2342, %v2364
        %2366 = vmatmul.f32.gmra.mxu0 %v1939
        %v2367 = vpop.f32.mrf.mxu0
        %v2368 = vadd.f32 %v2345, %v2367
        %2369 = vdwg.mxu0
        %2370 = vmatpush.msra.mxu0 %v2076
        %2371 = vmatpush.msra.mxu0 %v2075
        %2372 = vmatpush.msra.mxu0 %v2074
        %2373 = vmatpush.msra.mxu0 %v2073
        %2374 = vmatpush.msra.mxu0 %v2072
        %2375 = vmatpush.msra.mxu0 %v2071
        %2376 = vmatpush.msra.mxu0 %v2070
        %2377 = vmatpush.msra.mxu0 %v2069
        %2378 = vmatpush.msra.mxu0 %v2068
        %2379 = vmatpush.msra.mxu0 %v2067
        %2380 = vmatpush.msra.mxu0 %v2066
        %2381 = vmatpush.msra.mxu0 %v2065
        %2382 = vmatpush.msra.mxu0 %v2064
        %2383 = vmatpush.msra.mxu0 %v2063
        %2384 = vmatpush.msra.mxu0 %v2062
        %2385 = vmatpush.msra.mxu0 %v2061
        %2386 = vmatmul.f32.gmra.mxu0 %v1924
        %v2387 = vpop.f32.mrf.mxu0
        %v2388 = vadd.f32 %v2365, %v2387
        %2389 = vmatmul.f32.gmra.mxu0 %v1940
        %v2390 = vpop.f32.mrf.mxu0
        %v2391 = vadd.f32 %v2368, %v2390
        %2392 = vdwg.mxu0
        %2393 = vmatpush.msra.mxu0 %v2092
        %2394 = vmatpush.msra.mxu0 %v2091
        %2395 = vmatpush.msra.mxu0 %v2090
        %2396 = vmatpush.msra.mxu0 %v2089
        %2397 = vmatpush.msra.mxu0 %v2088
        %2398 = vmatpush.msra.mxu0 %v2087
        %2399 = vmatpush.msra.mxu0 %v2086
        %2400 = vmatpush.msra.mxu0 %v2085
        %2401 = vmatpush.msra.mxu0 %v2084
        %2402 = vmatpush.msra.mxu0 %v2083
        %2403 = vmatpush.msra.mxu0 %v2082
        %2404 = vmatpush.msra.mxu0 %v2081
        %2405 = vmatpush.msra.mxu0 %v2080
        %2406 = vmatpush.msra.mxu0 %v2079
        %2407 = vmatpush.msra.mxu0 %v2078
        %2408 = vmatpush.msra.mxu0 %v2077
        %2409 = vmatmul.f32.gmra.mxu0 %v1925
        %v2410 = vpop.f32.mrf.mxu0
        %v2411 = vadd.f32 %v2388, %v2410
        %2412 = vmatmul.f32.gmra.mxu0 %v1941
        %v2413 = vpop.f32.mrf.mxu0
        %v2414 = vadd.f32 %v2391, %v2413
        %2415 = vdwg.mxu0
        %2416 = vmatpush.msra.mxu0 %v2108
        %2417 = vmatpush.msra.mxu0 %v2107
        %2418 = vmatpush.msra.mxu0 %v2106
        %2419 = vmatpush.msra.mxu0 %v2105
        %2420 = vmatpush.msra.mxu0 %v2104
        %2421 = vmatpush.msra.mxu0 %v2103
        %2422 = vmatpush.msra.mxu0 %v2102
        %2423 = vmatpush.msra.mxu0 %v2101
        %2424 = vmatpush.msra.mxu0 %v2100
        %2425 = vmatpush.msra.mxu0 %v2099
        %2426 = vmatpush.msra.mxu0 %v2098
        %2427 = vmatpush.msra.mxu0 %v2097
        %2428 = vmatpush.msra.mxu0 %v2096
        %2429 = vmatpush.msra.mxu0 %v2095
        %2430 = vmatpush.msra.mxu0 %v2094
        %2431 = vmatpush.msra.mxu0 %v2093
        %2432 = vmatmul.f32.gmra.mxu0 %v1926
        %v2433 = vpop.f32.mrf.mxu0
        %v2434 = vadd.f32 %v2411, %v2433
        %2435 = vmatmul.f32.gmra.mxu0 %v1942
        %v2436 = vpop.f32.mrf.mxu0
        %v2437 = vadd.f32 %v2414, %v2436
        %2438 = vdwg.mxu0
        %2439 = vmatpush.msra.mxu0 %v2124
        %2440 = vmatpush.msra.mxu0 %v2123
        %2441 = vmatpush.msra.mxu0 %v2122
        %2442 = vmatpush.msra.mxu0 %v2121
        %2443 = vmatpush.msra.mxu0 %v2120
        %2444 = vmatpush.msra.mxu0 %v2119
        %2445 = vmatpush.msra.mxu0 %v2118
        %2446 = vmatpush.msra.mxu0 %v2117
        %2447 = vmatpush.msra.mxu0 %v2116
        %2448 = vmatpush.msra.mxu0 %v2115
        %2449 = vmatpush.msra.mxu0 %v2114
        %2450 = vmatpush.msra.mxu0 %v2113
        %2451 = vmatpush.msra.mxu0 %v2112
        %2452 = vmatpush.msra.mxu0 %v2111
        %2453 = vmatpush.msra.mxu0 %v2110
        %2454 = vmatpush.msra.mxu0 %v2109
        %2455 = vmatmul.f32.gmra.mxu0 %v1927
        %v2456 = vpop.f32.mrf.mxu0
        %v2457 = vadd.f32 %v2434, %v2456
        %2458 = vmatmul.f32.gmra.mxu0 %v1943
        %v2459 = vpop.f32.mrf.mxu0
        %v2460 = vadd.f32 %v2437, %v2459
        %2461 = vdwg.mxu0
        %2462 = vmatpush.msra.mxu0 %v2140
        %2463 = vmatpush.msra.mxu0 %v2139
        %2464 = vmatpush.msra.mxu0 %v2138
        %2465 = vmatpush.msra.mxu0 %v2137
        %2466 = vmatpush.msra.mxu0 %v2136
        %2467 = vmatpush.msra.mxu0 %v2135
        %2468 = vmatpush.msra.mxu0 %v2134
        %2469 = vmatpush.msra.mxu0 %v2133
        %2470 = vmatpush.msra.mxu0 %v2132
        %2471 = vmatpush.msra.mxu0 %v2131
        %2472 = vmatpush.msra.mxu0 %v2130
        %2473 = vmatpush.msra.mxu0 %v2129
        %2474 = vmatpush.msra.mxu0 %v2128
        %2475 = vmatpush.msra.mxu0 %v2127
        %2476 = vmatpush.msra.mxu0 %v2126
        %2477 = vmatpush.msra.mxu0 %v2125
        %2478 = vmatmul.f32.gmra.mxu0 %v1928
        %v2479 = vpop.f32.mrf.mxu0
        %v2480 = vadd.f32 %v2457, %v2479
        %2481 = vmatmul.f32.gmra.mxu0 %v1944
        %v2482 = vpop.f32.mrf.mxu0
        %v2483 = vadd.f32 %v2460, %v2482
        %2484 = vdwg.mxu0
        %2485 = vmatpush.msra.mxu0 %v2156
        %2486 = vmatpush.msra.mxu0 %v2155
        %2487 = vmatpush.msra.mxu0 %v2154
        %2488 = vmatpush.msra.mxu0 %v2153
        %2489 = vmatpush.msra.mxu0 %v2152
        %2490 = vmatpush.msra.mxu0 %v2151
        %2491 = vmatpush.msra.mxu0 %v2150
        %2492 = vmatpush.msra.mxu0 %v2149
        %2493 = vmatpush.msra.mxu0 %v2148
        %2494 = vmatpush.msra.mxu0 %v2147
        %2495 = vmatpush.msra.mxu0 %v2146
        %2496 = vmatpush.msra.mxu0 %v2145
        %2497 = vmatpush.msra.mxu0 %v2144
        %2498 = vmatpush.msra.mxu0 %v2143
        %2499 = vmatpush.msra.mxu0 %v2142
        %2500 = vmatpush.msra.mxu0 %v2141
        %2501 = vmatmul.f32.gmra.mxu0 %v1929
        %v2502 = vpop.f32.mrf.mxu0
        %v2503 = vadd.f32 %v2480, %v2502
        %2504 = vmatmul.f32.gmra.mxu0 %v1945
        %v2505 = vpop.f32.mrf.mxu0
        %v2506 = vadd.f32 %v2483, %v2505
        %2507 = vdwg.mxu0
        %2508 = vmatpush.msra.mxu0 %v2172
        %2509 = vmatpush.msra.mxu0 %v2171
        %2510 = vmatpush.msra.mxu0 %v2170
        %2511 = vmatpush.msra.mxu0 %v2169
        %2512 = vmatpush.msra.mxu0 %v2168
        %2513 = vmatpush.msra.mxu0 %v2167
        %2514 = vmatpush.msra.mxu0 %v2166
        %2515 = vmatpush.msra.mxu0 %v2165
        %2516 = vmatpush.msra.mxu0 %v2164
        %2517 = vmatpush.msra.mxu0 %v2163
        %2518 = vmatpush.msra.mxu0 %v2162
        %2519 = vmatpush.msra.mxu0 %v2161
        %2520 = vmatpush.msra.mxu0 %v2160
        %2521 = vmatpush.msra.mxu0 %v2159
        %2522 = vmatpush.msra.mxu0 %v2158
        %2523 = vmatpush.msra.mxu0 %v2157
        %2524 = vmatmul.f32.gmra.mxu0 %v1930
        %v2525 = vpop.f32.mrf.mxu0
        %v2526 = vadd.f32 %v2503, %v2525
        %2527 = vmatmul.f32.gmra.mxu0 %v1946
        %v2528 = vpop.f32.mrf.mxu0
        %v2529 = vadd.f32 %v2506, %v2528
        %2530 = vdwg.mxu0
        %2531 = vmatpush.msra.mxu0 %v2188
        %2532 = vmatpush.msra.mxu0 %v2187
        %2533 = vmatpush.msra.mxu0 %v2186
        %2534 = vmatpush.msra.mxu0 %v2185
        %2535 = vmatpush.msra.mxu0 %v2184
        %2536 = vmatpush.msra.mxu0 %v2183
        %2537 = vmatpush.msra.mxu0 %v2182
        %2538 = vmatpush.msra.mxu0 %v2181
        %2539 = vmatpush.msra.mxu0 %v2180
        %2540 = vmatpush.msra.mxu0 %v2179
        %2541 = vmatpush.msra.mxu0 %v2178
        %2542 = vmatpush.msra.mxu0 %v2177
        %2543 = vmatpush.msra.mxu0 %v2176
        %2544 = vmatpush.msra.mxu0 %v2175
        %2545 = vmatpush.msra.mxu0 %v2174
        %2546 = vmatpush.msra.mxu0 %v2173
        %2547 = vmatmul.f32.gmra.mxu0 %v1931
        %v2548 = vpop.f32.mrf.mxu0
        %v2549 = vadd.f32 %v2526, %v2548
        %2550 = vmatmul.f32.gmra.mxu0 %v1947
        %v2551 = vpop.f32.mrf.mxu0
        %v2552 = vadd.f32 %v2529, %v2551
        %2553 = vdwg.mxu0
        %2554 = vmatpush.msra.mxu0 %v2204
        %2555 = vmatpush.msra.mxu0 %v2203
        %2556 = vmatpush.msra.mxu0 %v2202
        %2557 = vmatpush.msra.mxu0 %v2201
        %2558 = vmatpush.msra.mxu0 %v2200
        %2559 = vmatpush.msra.mxu0 %v2199
        %2560 = vmatpush.msra.mxu0 %v2198
        %2561 = vmatpush.msra.mxu0 %v2197
        %2562 = vmatpush.msra.mxu0 %v2196
        %2563 = vmatpush.msra.mxu0 %v2195
        %2564 = vmatpush.msra.mxu0 %v2194
        %2565 = vmatpush.msra.mxu0 %v2193
        %2566 = vmatpush.msra.mxu0 %v2192
        %2567 = vmatpush.msra.mxu0 %v2191
        %2568 = vmatpush.msra.mxu0 %v2190
        %2569 = vmatpush.msra.mxu0 %v2189
        %2570 = vmatmul.f32.gmra.mxu0 %v1932
        %v2571 = vpop.f32.mrf.mxu0
        %v2572 = vadd.f32 %v2549, %v2571
        %2573 = vmatmul.f32.gmra.mxu0 %v1948
        %v2574 = vpop.f32.mrf.mxu0
        %v2575 = vadd.f32 %v2552, %v2574
        %2576 = vdwg.mxu0
        %v2577 = vadd.f32 %v721, %v2572
        %v2578 = vadd.f32 %v722, %v2575
        %2579 = vst [vmem:[#allocation2] sm:$0xff] %v2577
        %2580 = vst [vmem:[#allocation2 + $0x8] sm:$0xff] %v2578
        %2581 = vst [vmem:[%s710] sm:$0xff] %v2577
        %2582 = vst [vmem:[%s710 + $0x8] sm:$0xff] %v2578
        %s2583 = sand.u32 %s375, 1
        %s2584 = scalar_lea.sflag [#allocation5], %s2583
        %s2585 = sand.u32 %s375, 1
        %s2586 = smul.addr %s2585, 16
        %s2587 = scalar_lea.vmem [#allocation20], %s2586
        // Predicated region
        $region121: #{tpu_custom_call.1} parent=75 // pred_check
          %p2588 = pneg %p385
        $region122: #{tpu_custom_call.1} parent=75 // pred_check_branch
          %2590 = sbr.rel (%p2588) target = $region124
        $region123: #{tpu_custom_call.1} parent=75 // pred_region
          %s2591 = smul.u32 2, %s42
          %2593 = vsyncadd %s2584, 0
          %s2594 = smul.addr %s43, 2
          %s2595 = sadd.s32 %s2591, %s2594
          %s2596 = smul.addr %s2595, 8
          %s2597 = scalar_lea.hbm %s14, %s2596
          %s2598 = sshll.u32 %s2587, 4
          %s2599 = int_to_ptr.vmem [resolvable:$true] %s2598
          %s2600 = sshll.u32 %s2597, 4
          %s2601 = int_to_ptr.hbm [resolvable:$true] %s2600
          %2606 = dma.vmem_to_hbm [thread:$0]  %s2599, 256, %s2601, %s2584, 128, 128, 8
        $region124: #{tpu_custom_call.1} parent=75 // pred_fallthru
          _
      $region76: #{tpu_custom_call.1} parent=5 // pred_fallthru
        _
      %p2607 = scmp.le.s32.totalorder 2, %s33
      // Predicated region
      $region125: #{tpu_custom_call.1} parent=5 // pred_check
        %p2608 = pneg %p2607
      $region126: #{tpu_custom_call.1} parent=5 // pred_check_branch
        %2610 = sbr.rel (%p2608) target = $region128
      $region127: #{tpu_custom_call.1} parent=5 // pred_region
        %s2611 = ssub.s32 %s33, 2
        // Predicated region
        $region129: #{tpu_custom_call.1} parent=127 // pred_check
          %p2612 = pneg %p391
        $region130: #{tpu_custom_call.1} parent=127 // pred_check_branch
          %2614 = sbr.rel (%p2612) target = $region132
        $region131: #{tpu_custom_call.1} parent=127 // pred_region
          %s2615 = sand.u32 %s376, 1
          %s2616 = scalar_lea.sflag [#allocation5], %s2615
          %s2617 = sand.u32 %s376, 1
          %s2618 = smul.addr %s2617, 16
          %s2619 = scalar_lea.vmem [#allocation20], %s2618
          %2621 = dma.done %s2616, 256
        $region132: #{tpu_custom_call.1} parent=127 // pred_fallthru
          _
      $region128: #{tpu_custom_call.1} parent=5 // pred_fallthru
        _
    $region6: #{tpu_custom_call.1} parent=1 // loop_footer
      %s37 = sadd.s32 1, %s33
    $region7: #{tpu_custom_call.1} parent=1 // loop_footer_branch
      %32 = sbr.rel target = $region3
    $region8: #{tpu_custom_call.1} parent=1 // loop_exit
      _
    %2622 = vsyncpa [#allocation4], 1
    %s2623 = scalar_lea.sflag [#allocation4], 1
    %2624 = vsyncpa %s2623, 1
    %2625 = vsyncpa [#allocation7], 1
    %s2626 = scalar_lea.sflag [#allocation7], 1
    %2627 = vsyncpa %s2626, 1
    %2628 = vsyncpa [#allocation10], 1
    %2629 = vsyncpa [#allocation13], 1
    %2630 = vsyncpa [#allocation16], 1
    %2631 = vsyncpa [#allocation19], 1
    %2632 = vsyncpa [#allocation5], 1
    %s2633 = scalar_lea.sflag [#allocation5], 1
    %2634 = vsyncpa %s2633, 1

</llo_original>
